<compile_context>
chip_gen: v7x
topology: tpu7x:2x2x1
jax: 0.10.0
libtpu: 0.0.40
codegen_flags: <defaults>
</compile_context>

<pallas_src>
import functools

import jax
import jax.numpy as jnp
from jax.experimental import pallas as pl
from jax.experimental.pallas import tpu as pltpu

_LANE = 128  # vreg lane width


def _round_up(x, m):
    return ((x + m - 1) // m) * m


def _sublane_multiple(dtype):
    """Rows per fully-packed sublane group: 8 for f32, 16 for bf16, 32 for int8/fp8."""
    itemsize = jnp.dtype(dtype).itemsize
    return 8 * max(1, 4 // itemsize)


def _default_num_batch_tiles():
    """One grid step per TensorCore: 1 on single-TC v5e/v6e, 2 on dual-TC chips."""
    try:
        kind = jax.devices()[0].device_kind.lower().replace(" ", "")
    except Exception:  # pragma: no cover - defensive
        return 1
    if "v7" in kind or "tpu7" in kind or "v5p" in kind or "v4" in kind:
        return 2
    return 1


def _foonet_kernel(x_ref, w1_ref, w2_ref, w3_ref, o_ref, *, precision):
    """One batch tile: o = relu(relu(relu(x@W1)@W2)@W3).

    Operands are fed to the MXU in their native / compute dtype, accumulation
    is f32 via preferred_element_type, ReLU runs on the f32 accumulator.
    """
    compute_dtype = w1_ref.dtype
    h = x_ref[...].astype(compute_dtype)
    for w_ref in (w1_ref, w2_ref):
        acc = jnp.dot(h, w_ref[...], preferred_element_type=jnp.float32,
                      precision=precision)
        h = jnp.maximum(acc, 0.0).astype(compute_dtype)
    acc = jnp.dot(h, w3_ref[...], preferred_element_type=jnp.float32,
                  precision=precision)
    o_ref[...] = jnp.maximum(acc, 0.0).astype(o_ref.dtype)


def prepare_foonet_weights(weights, *, use_bf16_operands=False):
    """Pad FooNet weights ONCE at init time (they are static).

    weights[i] has shape [in_features, out_features] (i.e. W_torch.T).
    W1 is padded only on its output dim (its input dim matches the unpadded x);
    W2/W3 are padded on both dims.  Zero-padding is exact for bias-free
    Linear -> ReLU chains: padded rows/cols contribute 0 and relu(0) = 0.
    """
    n_in, n_out = weights[0].shape
    Np = _round_up(n_out, _LANE)
    dt = jnp.bfloat16 if use_bf16_operands else weights[0].dtype
    w1 = jnp.zeros((n_in, Np), dt).at[:, :n_out].set(weights[0].astype(dt))
    rest = [
        jnp.zeros((Np, Np), dt).at[:w.shape[0], :w.shape[1]].set(w.astype(dt))
        for w in weights[1:]
    ]
    return [w1] + rest


def foonet_forward(x, padded_weights, *, num_batch_tiles=None,
                   max_block_batch=1024, precision=None):
    """x: [B, N] (unpadded); padded_weights: output of prepare_foonet_weights."""
    B, K = x.shape
    k_w1, Np = padded_weights[0].shape
    assert k_w1 == K, "W1 input dim must match x feature dim (unpadded)"

    if num_batch_tiles is None:
        num_batch_tiles = _default_num_batch_tiles()

    sub = _sublane_multiple(x.dtype)
    block_batch = _round_up(pl.cdiv(B, num_batch_tiles), sub)
    block_batch = min(block_batch, _round_up(max_block_batch, sub))
    grid_b = pl.cdiv(B, block_batch)
    Bp = grid_b * block_batch

    # Only pad the batch if it is not already tile-aligned (it is, for B=256).
    x_in = x if Bp == B else jnp.zeros((Bp, K), x.dtype).at[:B, :].set(x)

    compute_dtype = padded_weights[0].dtype
    if precision is None:
        precision = (jax.lax.Precision.HIGHEST
                     if compute_dtype == jnp.float32
                     else jax.lax.Precision.DEFAULT)

    kernel = functools.partial(_foonet_kernel, precision=precision)

    x_spec = pl.BlockSpec((block_batch, K), lambda i: (i, 0))      # streams
    w1_spec = pl.BlockSpec((K, Np), lambda i: (0, 0))              # resident
    w_spec = pl.BlockSpec((Np, Np), lambda i: (0, 0))              # resident
    out_spec = pl.BlockSpec((block_batch, Np), lambda i: (i, 0))   # lane-dense

    # TODO(synk): large-N path — once 3*Np*Np*itemsize (x buffering) approaches
    # the VMEM budget (~24-32 MiB on v7x's 64 MiB VMEM), move the weights to
    # memory_space=pl.ANY and stream (K-block, N-block) weight tiles with
    # pltpu.emit_pipeline (keeping the per-layer activation resident), and set
    # vmem_limit_bytes explicitly.
    # TODO(synk): at large Np, single-buffer the resident weights
    # (pipeline_mode=pl.Buffered(1)); irrelevant at Np=128.
    out_p = pl.pallas_call(
        kernel,
        out_shape=jax.ShapeDtypeStruct((Bp, Np), x.dtype),
        grid=(grid_b,),
        in_specs=[x_spec, w1_spec, w_spec, w_spec],
        out_specs=out_spec,
        compiler_params=pltpu.CompilerParams(
            # TODO(synk): on v7x verify "parallel" actually shards the batch
            # tiles across both TensorCores; if not, switch to
            # pltpu.CORE_PARALLEL / pl.core_map.
            dimension_semantics=("parallel",),
        ),
    )(x_in, *padded_weights)

    # Slice only the dims that were actually padded.
    out = out_p if Bp == B else out_p[:B]
    return out if Np == K else out[:, :K]


def foonet_reference(x, weights):
    h = x
    for w in weights:
        h = jnp.maximum(
            jnp.dot(h, w, precision=jax.lax.Precision.HIGHEST), 0.0)
    return h


if __name__ == "__main__":
    neural_num = 32    # hidden size (nn.Linear(neural_num, neural_num, bias=False))
    layers = 3
    batch = 256

    key = jax.random.PRNGKey(0)
    kx, *kws = jax.random.split(key, 1 + layers)

    x = jax.random.normal(kx, (batch, neural_num), dtype=jnp.float32)

    # W_torch has shape (out, in); we store W = W_torch.T = (in, out).
    bound = 1.0 / (neural_num ** 0.5)
    weights = [
        jax.random.uniform(k, (neural_num, neural_num), dtype=jnp.float32,
                           minval=-bound, maxval=bound)
        for k in kws
    ]

    # Pad weights ONCE at init time (static parameters), not per forward call.
    padded_weights = prepare_foonet_weights(weights, use_bf16_operands=False)
    padded_weights = [jax.block_until_ready(w) for w in padded_weights]

    out = foonet_forward(x, padded_weights)
    out = jax.block_until_ready(out)

    ref = foonet_reference(x, weights)
    assert out.shape == (batch, neural_num)
    assert jnp.allclose(out, ref, atol=1e-5, rtol=1e-5), "mismatch vs reference"

    print("KERNEL_OK")
</pallas_src>

<mosaic_0001>
module attributes {stable_mosaic.version = 11 : i64} {
  func.func @_foonet_kernel(%arg0: i32, %arg1: memref<256x32xf32, #tpu.memory_space<vmem>>, %arg2: memref<32x128xf32, #tpu.memory_space<vmem>>, %arg3: memref<128x128xf32, #tpu.memory_space<vmem>>, %arg4: memref<128x128xf32, #tpu.memory_space<vmem>>, %arg5: memref<256x128xf32, #tpu.memory_space<vmem>>) attributes {dimension_semantics = [#tpu.dimension_semantics<parallel>], iteration_bounds = array<i64: 1>, scalar_prefetch = 0 : i64, scratch_operands = 0 : i64, tpu.core_type = #tpu.core_type<tc>, window_params = [{transform_indices = @transform_0, window_bounds = array<i64: 256, 32>}, {pipeline_mode = #tpu.pipeline_mode<synchronous>, transform_indices = @transform_1, window_bounds = array<i64: 32, 128>}, {pipeline_mode = #tpu.pipeline_mode<synchronous>, transform_indices = @transform_2, window_bounds = array<i64: 128, 128>}, {pipeline_mode = #tpu.pipeline_mode<synchronous>, transform_indices = @transform_3, window_bounds = array<i64: 128, 128>}, {transform_indices = @transform_4, window_bounds = array<i64: 256, 128>}]} {
    %c0 = arith.constant 0 : index
    %c0_0 = arith.constant 0 : index
    %0 = vector.load %arg1[%c0, %c0_0] : memref<256x32xf32, #tpu.memory_space<vmem>>, vector<256x32xf32>
    %c0_1 = arith.constant 0 : index
    %c0_2 = arith.constant 0 : index
    %1 = vector.load %arg2[%c0_1, %c0_2] : memref<32x128xf32, #tpu.memory_space<vmem>>, vector<32x128xf32>
    %cst = arith.constant dense<0.000000e+00> : vector<256x128xf32>
    %2 = tpu.matmul %0, %1, %cst {dimension_numbers = #tpu.dot_dimension_numbers<[1], [0], [0], [1], [0, 0, 1, 1], [], []>, precision = #tpu.contract_precision<fp32>} : vector<256x32xf32>, vector<32x128xf32>, vector<256x128xf32> -> vector<256x128xf32>
    %cst_3 = arith.constant 0.000000e+00 : f32
    %3 = vector.broadcast %cst_3 : f32 to vector<256x128xf32>
    %4 = arith.maximumf %2, %3 : vector<256x128xf32>
    %c0_4 = arith.constant 0 : index
    %c0_5 = arith.constant 0 : index
    %5 = vector.load %arg3[%c0_4, %c0_5] : memref<128x128xf32, #tpu.memory_space<vmem>>, vector<128x128xf32>
    %cst_6 = arith.constant dense<0.000000e+00> : vector<256x128xf32>
    %6 = tpu.matmul %4, %5, %cst_6 {dimension_numbers = #tpu.dot_dimension_numbers<[1], [0], [0], [1], [0, 0, 1, 1], [], []>, precision = #tpu.contract_precision<fp32>} : vector<256x128xf32>, vector<128x128xf32>, vector<256x128xf32> -> vector<256x128xf32>
    %cst_7 = arith.constant 0.000000e+00 : f32
    %7 = vector.broadcast %cst_7 : f32 to vector<256x128xf32>
    %8 = arith.maximumf %6, %7 : vector<256x128xf32>
    %c0_8 = arith.constant 0 : index
    %c0_9 = arith.constant 0 : index
    %9 = vector.load %arg4[%c0_8, %c0_9] : memref<128x128xf32, #tpu.memory_space<vmem>>, vector<128x128xf32>
    %cst_10 = arith.constant dense<0.000000e+00> : vector<256x128xf32>
    %10 = tpu.matmul %8, %9, %cst_10 {dimension_numbers = #tpu.dot_dimension_numbers<[1], [0], [0], [1], [0, 0, 1, 1], [], []>, precision = #tpu.contract_precision<fp32>} : vector<256x128xf32>, vector<128x128xf32>, vector<256x128xf32> -> vector<256x128xf32>
    %cst_11 = arith.constant 0.000000e+00 : f32
    %11 = vector.broadcast %cst_11 : f32 to vector<256x128xf32>
    %12 = arith.maximumf %10, %11 : vector<256x128xf32>
    %c0_12 = arith.constant 0 : index
    %c0_13 = arith.constant 0 : index
    %13 = vector.load %arg5[%c0_12, %c0_13] : memref<256x128xf32, #tpu.memory_space<vmem>>, vector<256x128xf32>
    tpu.vector_store %arg5[%c0_12, %c0_13], %12 {strides = array<i32>} : memref<256x128xf32, #tpu.memory_space<vmem>>, vector<256x128xf32>,
    return
  }
  func.func @transform_0(%arg0: i32) -> (i32, i32) {
    %c0_i32 = arith.constant 0 : i32
    %c0_i32_0 = arith.constant 0 : i32
    return %arg0, %c0_i32 : i32, i32
  }
  func.func @transform_1(%arg0: i32) -> (i32, i32) {
    %c0_i32 = arith.constant 0 : i32
    %c0_i32_0 = arith.constant 0 : i32
    %c0_i32_1 = arith.constant 0 : i32
    return %c0_i32, %c0_i32_0 : i32, i32
  }
  func.func @transform_2(%arg0: i32) -> (i32, i32) {
    %c0_i32 = arith.constant 0 : i32
    %c0_i32_0 = arith.constant 0 : i32
    %c0_i32_1 = arith.constant 0 : i32
    return %c0_i32, %c0_i32_0 : i32, i32
  }
  func.func @transform_3(%arg0: i32) -> (i32, i32) {
    %c0_i32 = arith.constant 0 : i32
    %c0_i32_0 = arith.constant 0 : i32
    %c0_i32_1 = arith.constant 0 : i32
    return %c0_i32, %c0_i32_0 : i32, i32
  }
  func.func @transform_4(%arg0: i32) -> (i32, i32) {
    %c0_i32 = arith.constant 0 : i32
    %c0_i32_0 = arith.constant 0 : i32
    return %arg0, %c0_i32 : i32, i32
  }
}

</mosaic_0001>

<llo_original>
// kernel: tpu_custom_call.1
$region0: #{tpu_custom_call.1}
  #allocation0 [shape = 'u32[]', space=smem, size = 0x4, offset = 0x4, fixed_abs, tag = 'smem constant byte address 0x4 - core index']
  #allocation1 [shape = 'u32[144,128]{1,0:T(1,128)}', space=vmem, size = 0x12000, scoped, tag = 'internal scratch']
  %s0 = inlined_call_operand.vmem [shape: f32[256,32], index: 0, kind: input, shape index: {}]
  %s1 = inlined_call_operand.vmem [shape: f32[32,128], index: 1, kind: input, shape index: {}]
  %s2 = inlined_call_operand.vmem [shape: f32[128,128], index: 2, kind: input, shape index: {}]
  %s3 = inlined_call_operand.vmem [shape: f32[128,128], index: 3, kind: input, shape index: {}]
  %s4 = inlined_call_operand.hbm [shape: f32[256,128], index: 4, kind: output, shape index: {}]
  %s5 = sld [smem:[#allocation0]]
  $region26: #{tpu_custom_call.1} parent=0
    _
  %s7 = ssub.s32 1, %s5
  %s8 = scalar_select 0, %s7, %s5
  $region1: #{tpu_custom_call.1} parent=0
    #allocation2 [shape = 'u8[131072]{0}', space=vmem, size = 0x20000, scoped, tag = 'output window, operand 0, single buffered']
    #allocation3 [shape = 's32[1]{0}', space=sflag, size = 0x4, scoped, tag = 'scoped memory for tpu_custom_call.1']
    %9 = vsyncpa [#allocation3], 0
    // Predicated region
    $region2: #{tpu_custom_call.1} parent=1 // pred_check
      _
    $region3: #{tpu_custom_call.1} parent=1 // pred_check_branch
      %11 = sbr.rel (0) target = $region5
    $region4: #{tpu_custom_call.1} parent=1 // pred_region
      _
    $region5: #{tpu_custom_call.1} parent=1 // pred_fallthru
      _
    // Predicated region
    $region6: #{tpu_custom_call.1} parent=1 // pred_check
      _
    $region7: #{tpu_custom_call.1} parent=1 // pred_check_branch
      %13 = sbr.rel (0) target = $region9
    $region8: #{tpu_custom_call.1} parent=1 // pred_region
      _
    $region9: #{tpu_custom_call.1} parent=1 // pred_fallthru
      _
    // Predicated region
    $region10: #{tpu_custom_call.1} parent=1 // pred_check
      _
    $region11: #{tpu_custom_call.1} parent=1 // pred_check_branch
      %15 = sbr.rel (0) target = $region13
    $region12: #{tpu_custom_call.1} parent=1 // pred_region
      _
    $region13: #{tpu_custom_call.1} parent=1 // pred_fallthru
      _
    // Predicated region
    $region14: #{tpu_custom_call.1} parent=1 // pred_check
      _
    $region15: #{tpu_custom_call.1} parent=1 // pred_check_branch
      %17 = sbr.rel (0) target = $region17
    $region16: #{tpu_custom_call.1} parent=1 // pred_region
      _
    $region17: #{tpu_custom_call.1} parent=1 // pred_fallthru
      _
    %v18 = vld [vmem:[%s0] sm:$0xff]
    %v19 = vld [vmem:[%s0 + $0x8] sm:$0xff]
    %v20 = vld [vmem:[%s0 + $0x10] sm:$0xff]
    %v21 = vld [vmem:[%s0 + $0x18] sm:$0xff]
    %v22 = vld [vmem:[%s0 + $0x20] sm:$0xff]
    %v23 = vld [vmem:[%s0 + $0x28] sm:$0xff]
    %v24 = vld [vmem:[%s0 + $0x30] sm:$0xff]
    %v25 = vld [vmem:[%s0 + $0x38] sm:$0xff]
    %v26 = vld [vmem:[%s0 + $0x40] sm:$0xff]
    %v27 = vld [vmem:[%s0 + $0x48] sm:$0xff]
    %v28 = vld [vmem:[%s0 + $0x50] sm:$0xff]
    %v29 = vld [vmem:[%s0 + $0x58] sm:$0xff]
    %v30 = vld [vmem:[%s0 + $0x60] sm:$0xff]
    %v31 = vld [vmem:[%s0 + $0x68] sm:$0xff]
    %v32 = vld [vmem:[%s0 + $0x70] sm:$0xff]
    %v33 = vld [vmem:[%s0 + $0x78] sm:$0xff]
    %v34 = vld [vmem:[%s0 + $0x80] sm:$0xff]
    %v35 = vld [vmem:[%s0 + $0x88] sm:$0xff]
    %v36 = vld [vmem:[%s0 + $0x90] sm:$0xff]
    %v37 = vld [vmem:[%s0 + $0x98] sm:$0xff]
    %v38 = vld [vmem:[%s0 + $0xa0] sm:$0xff]
    %v39 = vld [vmem:[%s0 + $0xa8] sm:$0xff]
    %v40 = vld [vmem:[%s0 + $0xb0] sm:$0xff]
    %v41 = vld [vmem:[%s0 + $0xb8] sm:$0xff]
    %v42 = vld [vmem:[%s0 + $0xc0] sm:$0xff]
    %v43 = vld [vmem:[%s0 + $0xc8] sm:$0xff]
    %v44 = vld [vmem:[%s0 + $0xd0] sm:$0xff]
    %v45 = vld [vmem:[%s0 + $0xd8] sm:$0xff]
    %v46 = vld [vmem:[%s0 + $0xe0] sm:$0xff]
    %v47 = vld [vmem:[%s0 + $0xe8] sm:$0xff]
    %v48 = vld [vmem:[%s0 + $0xf0] sm:$0xff]
    %v49 = vld [vmem:[%s0 + $0xf8] sm:$0xff]
    %v50 = vld [vmem:[%s1] sm:$0xff]
    %v51 = vld [vmem:[%s1 + $0x8] sm:$0xff]
    %v52 = vld [vmem:[%s1 + $0x10] sm:$0xff]
    %v53 = vld [vmem:[%s1 + $0x18] sm:$0xff]
    %vm54 = vcmask 261120
    %v56 = vsel %vm54, %v18, 0
    %v59 = vsel %vm54, %v19, 0
    %v62 = vsel %vm54, %v20, 0
    %v65 = vsel %vm54, %v21, 0
    %v68 = vsel %vm54, %v22, 0
    %v71 = vsel %vm54, %v23, 0
    %v74 = vsel %vm54, %v24, 0
    %v77 = vsel %vm54, %v25, 0
    %v80 = vsel %vm54, %v26, 0
    %v83 = vsel %vm54, %v27, 0
    %v86 = vsel %vm54, %v28, 0
    %v89 = vsel %vm54, %v29, 0
    %v92 = vsel %vm54, %v30, 0
    %v95 = vsel %vm54, %v31, 0
    %v98 = vsel %vm54, %v32, 0
    %v101 = vsel %vm54, %v33, 0
    %v104 = vsel %vm54, %v34, 0
    %v107 = vsel %vm54, %v35, 0
    %v110 = vsel %vm54, %v36, 0
    %v113 = vsel %vm54, %v37, 0
    %v116 = vsel %vm54, %v38, 0
    %v119 = vsel %vm54, %v39, 0
    %v122 = vsel %vm54, %v40, 0
    %v125 = vsel %vm54, %v41, 0
    %v128 = vsel %vm54, %v42, 0
    %v131 = vsel %vm54, %v43, 0
    %v134 = vsel %vm54, %v44, 0
    %v137 = vsel %vm54, %v45, 0
    %v140 = vsel %vm54, %v46, 0
    %v143 = vsel %vm54, %v47, 0
    %v146 = vsel %vm54, %v48, 0
    %v149 = vsel %vm54, %v49, 0
    %151 = vmatprep.subr.mxu0 0.0
    %v152 = vand.u32 %v50, 4294901760
    %153 = vmatpush1.msra.mxu0 %v152
    %154 = vmatprep.subr.mxu0 0.0
    %v155 = vand.u32 %v51, 4294901760
    %156 = vmatpush1.msra.mxu0 %v155
    %157 = vmatprep.subr.mxu0 0.0
    %v158 = vand.u32 %v52, 4294901760
    %159 = vmatpush1.msra.mxu0 %v158
    %160 = vmatprep.subr.mxu0 0.0
    %v161 = vand.u32 %v53, 4294901760
    %162 = vmatpush1.msra.mxu0 %v161
    %163 = vmatprep.subr.mxu0 0.0
    %164 = vmatpush1.msra.mxu0 0.0
    %165 = vmatprep.subr.mxu0 0.0
    %166 = vmatpush1.msra.mxu0 0.0
    %167 = vmatprep.subr.mxu0 0.0
    %168 = vmatpush1.msra.mxu0 0.0
    %169 = vmatprep.subr.mxu0 0.0
    %170 = vmatpush1.msra.mxu0 0.0
    %171 = vmatprep.subr.mxu0 0.0
    %172 = vmatpush1.msra.mxu0 0.0
    %173 = vmatprep.subr.mxu0 0.0
    %174 = vmatpush1.msra.mxu0 0.0
    %175 = vmatprep.subr.mxu0 0.0
    %176 = vmatpush1.msra.mxu0 0.0
    %177 = vmatprep.subr.mxu0 0.0
    %178 = vmatpush1.msra.mxu0 0.0
    %179 = vmatprep.subr.mxu0 0.0
    %180 = vmatpush1.msra.mxu0 0.0
    %181 = vmatprep.subr.mxu0 0.0
    %182 = vmatpush1.msra.mxu0 0.0
    %183 = vmatprep.subr.mxu0 0.0
    %184 = vmatpush1.msra.mxu0 0.0
    %185 = vmatprep.subr.mxu0 0.0
    %186 = vmatpush1.msra.mxu0 0.0
    %187 = vmatprep.subr.mxu0 0.0
    %188 = vmatpush1.msra.mxu0 0.0
    %189 = vmatprep.subr.mxu0 0.0
    %190 = vmatpush1.msra.mxu0 0.0
    %191 = vmatprep.subr.mxu0 0.0
    %192 = vmatpush1.msra.mxu0 0.0
    %193 = vmatprep.subr.mxu0 0.0
    %194 = vmatpush1.msra.mxu0 0.0
    %195 = vmatprep.subr.mxu0 0.0
    %196 = vmatpush1.msra.mxu0 0.0
    %197 = vmatprep.subr.mxu0 0.0
    %198 = vmatpush1.msra.mxu0 0.0
    %199 = vmatprep.subr.mxu0 0.0
    %200 = vmatpush1.msra.mxu0 0.0
    %201 = vmatprep.subr.mxu0 0.0
    %202 = vmatpush1.msra.mxu0 0.0
    %203 = vmatprep.subr.mxu0 0.0
    %204 = vmatpush1.msra.mxu0 0.0
    %205 = vmatprep.subr.mxu0 0.0
    %206 = vmatpush1.msra.mxu0 0.0
    %207 = vmatprep.subr.mxu0 0.0
    %208 = vmatpush1.msra.mxu0 0.0
    %209 = vmatprep.subr.mxu0 0.0
    %210 = vmatpush1.msra.mxu0 0.0
    %211 = vmatprep.subr.mxu0 0.0
    %212 = vmatpush1.msra.mxu0 0.0
    %213 = vmatprep.subr.mxu0 0.0
    %214 = vmatpush1.msra.mxu0 0.0
    %215 = vmatprep.subr.mxu0 0.0
    %216 = vmatpush1.msra.mxu0 0.0
    %217 = vmatprep.subr.mxu0 0.0
    %218 = vmatpush1.msra.mxu0 0.0
    %219 = vmatprep.mubr.f32.mxu0 0.0
    %v220 = vand.u32 %v56, 4294901760
    %v221 = vsub.f32 %v56, %v220
    %v222 = vand.u32 %v221, 4294901760
    %v223 = vsub.f32 %v221, %v222
    %v224 = vand.u32 %v223, 4294901760
    %225 = vmatmul.mubr.f32.gmra.mrb[0].mxu0 %v224
    %v226 = vpop.f32.mrb[0].mxu0
    %v227 = vadd.f32 0.0, %v226
    %v228 = vpop.f32.mrb[0].mxu0
    %229 = vmatprep.mubr.f32.mxu0 0.0
    %v230 = vand.u32 %v59, 4294901760
    %v231 = vsub.f32 %v59, %v230
    %v232 = vand.u32 %v231, 4294901760
    %v233 = vsub.f32 %v231, %v232
    %v234 = vand.u32 %v233, 4294901760
    %235 = vmatmul.mubr.f32.gmra.mrb[0].mxu0 %v234
    %v236 = vpop.f32.mrb[0].mxu0
    %v237 = vadd.f32 0.0, %v236
    %v238 = vpop.f32.mrb[0].mxu0
    %239 = vmatprep.mubr.f32.mxu0 0.0
    %v240 = vand.u32 %v62, 4294901760
    %v241 = vsub.f32 %v62, %v240
    %v242 = vand.u32 %v241, 4294901760
    %v243 = vsub.f32 %v241, %v242
    %v244 = vand.u32 %v243, 4294901760
    %245 = vmatmul.mubr.f32.gmra.mrb[0].mxu0 %v244
    %v246 = vpop.f32.mrb[0].mxu0
    %v247 = vadd.f32 0.0, %v246
    %v248 = vpop.f32.mrb[0].mxu0
    %249 = vmatprep.mubr.f32.mxu0 0.0
    %v250 = vand.u32 %v65, 4294901760
    %v251 = vsub.f32 %v65, %v250
    %v252 = vand.u32 %v251, 4294901760
    %v253 = vsub.f32 %v251, %v252
    %v254 = vand.u32 %v253, 4294901760
    %255 = vmatmul.mubr.f32.gmra.mrb[0].mxu0 %v254
    %v256 = vpop.f32.mrb[0].mxu0
    %v257 = vadd.f32 0.0, %v256
    %v258 = vpop.f32.mrb[0].mxu0
    %259 = vmatprep.mubr.f32.mxu0 0.0
    %v260 = vand.u32 %v68, 4294901760
    %v261 = vsub.f32 %v68, %v260
    %v262 = vand.u32 %v261, 4294901760
    %v263 = vsub.f32 %v261, %v262
    %v264 = vand.u32 %v263, 4294901760
    %265 = vmatmul.mubr.f32.gmra.mrb[0].mxu0 %v264
    %v266 = vpop.f32.mrb[0].mxu0
    %v267 = vadd.f32 0.0, %v266
    %v268 = vpop.f32.mrb[0].mxu0
    %269 = vmatprep.mubr.f32.mxu0 0.0
    %v270 = vand.u32 %v71, 4294901760
    %v271 = vsub.f32 %v71, %v270
    %v272 = vand.u32 %v271, 4294901760
    %v273 = vsub.f32 %v271, %v272
    %v274 = vand.u32 %v273, 4294901760
    %275 = vmatmul.mubr.f32.gmra.mrb[0].mxu0 %v274
    %v276 = vpop.f32.mrb[0].mxu0
    %v277 = vadd.f32 0.0, %v276
    %v278 = vpop.f32.mrb[0].mxu0
    %279 = vmatprep.mubr.f32.mxu0 0.0
    %v280 = vand.u32 %v74, 4294901760
    %v281 = vsub.f32 %v74, %v280
    %v282 = vand.u32 %v281, 4294901760
    %v283 = vsub.f32 %v281, %v282
    %v284 = vand.u32 %v283, 4294901760
    %285 = vmatmul.mubr.f32.gmra.mrb[0].mxu0 %v284
    %v286 = vpop.f32.mrb[0].mxu0
    %v287 = vadd.f32 0.0, %v286
    %v288 = vpop.f32.mrb[0].mxu0
    %289 = vmatprep.mubr.f32.mxu0 0.0
    %v290 = vand.u32 %v77, 4294901760
    %v291 = vsub.f32 %v77, %v290
    %v292 = vand.u32 %v291, 4294901760
    %v293 = vsub.f32 %v291, %v292
    %v294 = vand.u32 %v293, 4294901760
    %295 = vmatmul.mubr.f32.gmra.mrb[0].mxu0 %v294
    %v296 = vpop.f32.mrb[0].mxu0
    %v297 = vadd.f32 0.0, %v296
    %v298 = vpop.f32.mrb[0].mxu0
    %299 = vmatprep.mubr.f32.mxu0 0.0
    %v300 = vand.u32 %v80, 4294901760
    %v301 = vsub.f32 %v80, %v300
    %v302 = vand.u32 %v301, 4294901760
    %v303 = vsub.f32 %v301, %v302
    %v304 = vand.u32 %v303, 4294901760
    %305 = vmatmul.mubr.f32.gmra.mrb[0].mxu0 %v304
    %v306 = vpop.f32.mrb[0].mxu0
    %v307 = vadd.f32 0.0, %v306
    %v308 = vpop.f32.mrb[0].mxu0
    %309 = vmatprep.mubr.f32.mxu0 0.0
    %v310 = vand.u32 %v83, 4294901760
    %v311 = vsub.f32 %v83, %v310
    %v312 = vand.u32 %v311, 4294901760
    %v313 = vsub.f32 %v311, %v312
    %v314 = vand.u32 %v313, 4294901760
    %315 = vmatmul.mubr.f32.gmra.mrb[0].mxu0 %v314
    %v316 = vpop.f32.mrb[0].mxu0
    %v317 = vadd.f32 0.0, %v316
    %v318 = vpop.f32.mrb[0].mxu0
    %319 = vmatprep.mubr.f32.mxu0 0.0
    %v320 = vand.u32 %v86, 4294901760
    %v321 = vsub.f32 %v86, %v320
    %v322 = vand.u32 %v321, 4294901760
    %v323 = vsub.f32 %v321, %v322
    %v324 = vand.u32 %v323, 4294901760
    %325 = vmatmul.mubr.f32.gmra.mrb[0].mxu0 %v324
    %v326 = vpop.f32.mrb[0].mxu0
    %v327 = vadd.f32 0.0, %v326
    %v328 = vpop.f32.mrb[0].mxu0
    %329 = vmatprep.mubr.f32.mxu0 0.0
    %v330 = vand.u32 %v89, 4294901760
    %v331 = vsub.f32 %v89, %v330
    %v332 = vand.u32 %v331, 4294901760
    %v333 = vsub.f32 %v331, %v332
    %v334 = vand.u32 %v333, 4294901760
    %335 = vmatmul.mubr.f32.gmra.mrb[0].mxu0 %v334
    %v336 = vpop.f32.mrb[0].mxu0
    %v337 = vadd.f32 0.0, %v336
    %v338 = vpop.f32.mrb[0].mxu0
    %339 = vmatprep.mubr.f32.mxu0 0.0
    %v340 = vand.u32 %v92, 4294901760
    %v341 = vsub.f32 %v92, %v340
    %v342 = vand.u32 %v341, 4294901760
    %v343 = vsub.f32 %v341, %v342
    %v344 = vand.u32 %v343, 4294901760
    %345 = vmatmul.mubr.f32.gmra.mrb[0].mxu0 %v344
    %v346 = vpop.f32.mrb[0].mxu0
    %v347 = vadd.f32 0.0, %v346
    %v348 = vpop.f32.mrb[0].mxu0
    %349 = vmatprep.mubr.f32.mxu0 0.0
    %v350 = vand.u32 %v95, 4294901760
    %v351 = vsub.f32 %v95, %v350
    %v352 = vand.u32 %v351, 4294901760
    %v353 = vsub.f32 %v351, %v352
    %v354 = vand.u32 %v353, 4294901760
    %355 = vmatmul.mubr.f32.gmra.mrb[0].mxu0 %v354
    %v356 = vpop.f32.mrb[0].mxu0
    %v357 = vadd.f32 0.0, %v356
    %v358 = vpop.f32.mrb[0].mxu0
    %359 = vmatprep.mubr.f32.mxu0 0.0
    %v360 = vand.u32 %v98, 4294901760
    %v361 = vsub.f32 %v98, %v360
    %v362 = vand.u32 %v361, 4294901760
    %v363 = vsub.f32 %v361, %v362
    %v364 = vand.u32 %v363, 4294901760
    %365 = vmatmul.mubr.f32.gmra.mrb[0].mxu0 %v364
    %v366 = vpop.f32.mrb[0].mxu0
    %v367 = vadd.f32 0.0, %v366
    %v368 = vpop.f32.mrb[0].mxu0
    %369 = vmatprep.mubr.f32.mxu0 0.0
    %v370 = vand.u32 %v101, 4294901760
    %v371 = vsub.f32 %v101, %v370
    %v372 = vand.u32 %v371, 4294901760
    %v373 = vsub.f32 %v371, %v372
    %v374 = vand.u32 %v373, 4294901760
    %375 = vmatmul.mubr.f32.gmra.mrb[0].mxu0 %v374
    %v376 = vpop.f32.mrb[0].mxu0
    %v377 = vadd.f32 0.0, %v376
    %v378 = vpop.f32.mrb[0].mxu0
    %379 = vmatprep.mubr.f32.mxu0 0.0
    %v380 = vand.u32 %v104, 4294901760
    %v381 = vsub.f32 %v104, %v380
    %v382 = vand.u32 %v381, 4294901760
    %v383 = vsub.f32 %v381, %v382
    %v384 = vand.u32 %v383, 4294901760
    %385 = vmatmul.mubr.f32.gmra.mrb[0].mxu0 %v384
    %v386 = vpop.f32.mrb[0].mxu0
    %v387 = vadd.f32 0.0, %v386
    %v388 = vpop.f32.mrb[0].mxu0
    %389 = vmatprep.mubr.f32.mxu0 0.0
    %v390 = vand.u32 %v107, 4294901760
    %v391 = vsub.f32 %v107, %v390
    %v392 = vand.u32 %v391, 4294901760
    %v393 = vsub.f32 %v391, %v392
    %v394 = vand.u32 %v393, 4294901760
    %395 = vmatmul.mubr.f32.gmra.mrb[0].mxu0 %v394
    %v396 = vpop.f32.mrb[0].mxu0
    %v397 = vadd.f32 0.0, %v396
    %v398 = vpop.f32.mrb[0].mxu0
    %399 = vmatprep.mubr.f32.mxu0 0.0
    %v400 = vand.u32 %v110, 4294901760
    %v401 = vsub.f32 %v110, %v400
    %v402 = vand.u32 %v401, 4294901760
    %v403 = vsub.f32 %v401, %v402
    %v404 = vand.u32 %v403, 4294901760
    %405 = vmatmul.mubr.f32.gmra.mrb[0].mxu0 %v404
    %v406 = vpop.f32.mrb[0].mxu0
    %v407 = vadd.f32 0.0, %v406
    %v408 = vpop.f32.mrb[0].mxu0
    %409 = vmatprep.mubr.f32.mxu0 0.0
    %v410 = vand.u32 %v113, 4294901760
    %v411 = vsub.f32 %v113, %v410
    %v412 = vand.u32 %v411, 4294901760
    %v413 = vsub.f32 %v411, %v412
    %v414 = vand.u32 %v413, 4294901760
    %415 = vmatmul.mubr.f32.gmra.mrb[0].mxu0 %v414
    %v416 = vpop.f32.mrb[0].mxu0
    %v417 = vadd.f32 0.0, %v416
    %v418 = vpop.f32.mrb[0].mxu0
    %419 = vmatprep.mubr.f32.mxu0 0.0
    %v420 = vand.u32 %v116, 4294901760
    %v421 = vsub.f32 %v116, %v420
    %v422 = vand.u32 %v421, 4294901760
    %v423 = vsub.f32 %v421, %v422
    %v424 = vand.u32 %v423, 4294901760
    %425 = vmatmul.mubr.f32.gmra.mrb[0].mxu0 %v424
    %v426 = vpop.f32.mrb[0].mxu0
    %v427 = vadd.f32 0.0, %v426
    %v428 = vpop.f32.mrb[0].mxu0
    %429 = vmatprep.mubr.f32.mxu0 0.0
    %v430 = vand.u32 %v119, 4294901760
    %v431 = vsub.f32 %v119, %v430
    %v432 = vand.u32 %v431, 4294901760
    %v433 = vsub.f32 %v431, %v432
    %v434 = vand.u32 %v433, 4294901760
    %435 = vmatmul.mubr.f32.gmra.mrb[0].mxu0 %v434
    %v436 = vpop.f32.mrb[0].mxu0
    %v437 = vadd.f32 0.0, %v436
    %v438 = vpop.f32.mrb[0].mxu0
    %439 = vmatprep.mubr.f32.mxu0 0.0
    %v440 = vand.u32 %v122, 4294901760
    %v441 = vsub.f32 %v122, %v440
    %v442 = vand.u32 %v441, 4294901760
    %v443 = vsub.f32 %v441, %v442
    %v444 = vand.u32 %v443, 4294901760
    %445 = vmatmul.mubr.f32.gmra.mrb[0].mxu0 %v444
    %v446 = vpop.f32.mrb[0].mxu0
    %v447 = vadd.f32 0.0, %v446
    %v448 = vpop.f32.mrb[0].mxu0
    %449 = vmatprep.mubr.f32.mxu0 0.0
    %v450 = vand.u32 %v125, 4294901760
    %v451 = vsub.f32 %v125, %v450
    %v452 = vand.u32 %v451, 4294901760
    %v453 = vsub.f32 %v451, %v452
    %v454 = vand.u32 %v453, 4294901760
    %455 = vmatmul.mubr.f32.gmra.mrb[0].mxu0 %v454
    %v456 = vpop.f32.mrb[0].mxu0
    %v457 = vadd.f32 0.0, %v456
    %v458 = vpop.f32.mrb[0].mxu0
    %459 = vmatprep.mubr.f32.mxu0 0.0
    %v460 = vand.u32 %v128, 4294901760
    %v461 = vsub.f32 %v128, %v460
    %v462 = vand.u32 %v461, 4294901760
    %v463 = vsub.f32 %v461, %v462
    %v464 = vand.u32 %v463, 4294901760
    %465 = vmatmul.mubr.f32.gmra.mrb[0].mxu0 %v464
    %v466 = vpop.f32.mrb[0].mxu0
    %v467 = vadd.f32 0.0, %v466
    %v468 = vpop.f32.mrb[0].mxu0
    %469 = vmatprep.mubr.f32.mxu0 0.0
    %v470 = vand.u32 %v131, 4294901760
    %v471 = vsub.f32 %v131, %v470
    %v472 = vand.u32 %v471, 4294901760
    %v473 = vsub.f32 %v471, %v472
    %v474 = vand.u32 %v473, 4294901760
    %475 = vmatmul.mubr.f32.gmra.mrb[0].mxu0 %v474
    %v476 = vpop.f32.mrb[0].mxu0
    %v477 = vadd.f32 0.0, %v476
    %v478 = vpop.f32.mrb[0].mxu0
    %479 = vmatprep.mubr.f32.mxu0 0.0
    %v480 = vand.u32 %v134, 4294901760
    %v481 = vsub.f32 %v134, %v480
    %v482 = vand.u32 %v481, 4294901760
    %v483 = vsub.f32 %v481, %v482
    %v484 = vand.u32 %v483, 4294901760
    %485 = vmatmul.mubr.f32.gmra.mrb[0].mxu0 %v484
    %v486 = vpop.f32.mrb[0].mxu0
    %v487 = vadd.f32 0.0, %v486
    %v488 = vpop.f32.mrb[0].mxu0
    %489 = vmatprep.mubr.f32.mxu0 0.0
    %v490 = vand.u32 %v137, 4294901760
    %v491 = vsub.f32 %v137, %v490
    %v492 = vand.u32 %v491, 4294901760
    %v493 = vsub.f32 %v491, %v492
    %v494 = vand.u32 %v493, 4294901760
    %495 = vmatmul.mubr.f32.gmra.mrb[0].mxu0 %v494
    %v496 = vpop.f32.mrb[0].mxu0
    %v497 = vadd.f32 0.0, %v496
    %v498 = vpop.f32.mrb[0].mxu0
    %499 = vmatprep.mubr.f32.mxu0 0.0
    %v500 = vand.u32 %v140, 4294901760
    %v501 = vsub.f32 %v140, %v500
    %v502 = vand.u32 %v501, 4294901760
    %v503 = vsub.f32 %v501, %v502
    %v504 = vand.u32 %v503, 4294901760
    %505 = vmatmul.mubr.f32.gmra.mrb[0].mxu0 %v504
    %v506 = vpop.f32.mrb[0].mxu0
    %v507 = vadd.f32 0.0, %v506
    %v508 = vpop.f32.mrb[0].mxu0
    %509 = vmatprep.mubr.f32.mxu0 0.0
    %v510 = vand.u32 %v143, 4294901760
    %v511 = vsub.f32 %v143, %v510
    %v512 = vand.u32 %v511, 4294901760
    %v513 = vsub.f32 %v511, %v512
    %v514 = vand.u32 %v513, 4294901760
    %515 = vmatmul.mubr.f32.gmra.mrb[0].mxu0 %v514
    %v516 = vpop.f32.mrb[0].mxu0
    %v517 = vadd.f32 0.0, %v516
    %v518 = vpop.f32.mrb[0].mxu0
    %519 = vmatprep.mubr.f32.mxu0 0.0
    %v520 = vand.u32 %v146, 4294901760
    %v521 = vsub.f32 %v146, %v520
    %v522 = vand.u32 %v521, 4294901760
    %v523 = vsub.f32 %v521, %v522
    %v524 = vand.u32 %v523, 4294901760
    %525 = vmatmul.mubr.f32.gmra.mrb[0].mxu0 %v524
    %v526 = vpop.f32.mrb[0].mxu0
    %v527 = vadd.f32 0.0, %v526
    %v528 = vpop.f32.mrb[0].mxu0
    %529 = vmatprep.mubr.f32.mxu0 0.0
    %v530 = vand.u32 %v149, 4294901760
    %v531 = vsub.f32 %v149, %v530
    %v532 = vand.u32 %v531, 4294901760
    %v533 = vsub.f32 %v531, %v532
    %v534 = vand.u32 %v533, 4294901760
    %535 = vmatmul.mubr.f32.gmra.mrb[0].mxu0 %v534
    %v536 = vpop.f32.mrb[0].mxu0
    %v537 = vadd.f32 0.0, %v536
    %v538 = vpop.f32.mrb[0].mxu0
    %539 = vdwg.mxu0
    %540 = vmatprep.subr.mxu0 0.0
    %v541 = vand.u32 %v50, 4294901760
    %v542 = vsub.f32 %v50, %v541
    %v543 = vand.u32 %v542, 4294901760
    %v544 = vsub.f32 %v542, %v543
    %v545 = vand.u32 %v544, 4294901760
    %546 = vmatpush1.msra.mxu0 %v545
    %547 = vmatprep.subr.mxu0 0.0
    %v548 = vand.u32 %v51, 4294901760
    %v549 = vsub.f32 %v51, %v548
    %v550 = vand.u32 %v549, 4294901760
    %v551 = vsub.f32 %v549, %v550
    %v552 = vand.u32 %v551, 4294901760
    %553 = vmatpush1.msra.mxu0 %v552
    %554 = vmatprep.subr.mxu0 0.0
    %v555 = vand.u32 %v52, 4294901760
    %v556 = vsub.f32 %v52, %v555
    %v557 = vand.u32 %v556, 4294901760
    %v558 = vsub.f32 %v556, %v557
    %v559 = vand.u32 %v558, 4294901760
    %560 = vmatpush1.msra.mxu0 %v559
    %561 = vmatprep.subr.mxu0 0.0
    %v562 = vand.u32 %v53, 4294901760
    %v563 = vsub.f32 %v53, %v562
    %v564 = vand.u32 %v563, 4294901760
    %v565 = vsub.f32 %v563, %v564
    %v566 = vand.u32 %v565, 4294901760
    %567 = vmatpush1.msra.mxu0 %v566
    %568 = vmatprep.subr.mxu0 0.0
    %569 = vmatpush1.msra.mxu0 0.0
    %570 = vmatprep.subr.mxu0 0.0
    %571 = vmatpush1.msra.mxu0 0.0
    %572 = vmatprep.subr.mxu0 0.0
    %573 = vmatpush1.msra.mxu0 0.0
    %574 = vmatprep.subr.mxu0 0.0
    %575 = vmatpush1.msra.mxu0 0.0
    %576 = vmatprep.subr.mxu0 0.0
    %577 = vmatpush1.msra.mxu0 0.0
    %578 = vmatprep.subr.mxu0 0.0
    %579 = vmatpush1.msra.mxu0 0.0
    %580 = vmatprep.subr.mxu0 0.0
    %581 = vmatpush1.msra.mxu0 0.0
    %582 = vmatprep.subr.mxu0 0.0
    %583 = vmatpush1.msra.mxu0 0.0
    %584 = vmatprep.subr.mxu0 0.0
    %585 = vmatpush1.msra.mxu0 0.0
    %586 = vmatprep.subr.mxu0 0.0
    %587 = vmatpush1.msra.mxu0 0.0
    %588 = vmatprep.subr.mxu0 0.0
    %589 = vmatpush1.msra.mxu0 0.0
    %590 = vmatprep.subr.mxu0 0.0
    %591 = vmatpush1.msra.mxu0 0.0
    %592 = vmatprep.subr.mxu0 0.0
    %593 = vmatpush1.msra.mxu0 0.0
    %594 = vmatprep.subr.mxu0 0.0
    %595 = vmatpush1.msra.mxu0 0.0
    %596 = vmatprep.subr.mxu0 0.0
    %597 = vmatpush1.msra.mxu0 0.0
    %598 = vmatprep.subr.mxu0 0.0
    %599 = vmatpush1.msra.mxu0 0.0
    %600 = vmatprep.subr.mxu0 0.0
    %601 = vmatpush1.msra.mxu0 0.0
    %602 = vmatprep.subr.mxu0 0.0
    %603 = vmatpush1.msra.mxu0 0.0
    %604 = vmatprep.subr.mxu0 0.0
    %605 = vmatpush1.msra.mxu0 0.0
    %606 = vmatprep.subr.mxu0 0.0
    %607 = vmatpush1.msra.mxu0 0.0
    %608 = vmatprep.subr.mxu0 0.0
    %609 = vmatpush1.msra.mxu0 0.0
    %610 = vmatprep.subr.mxu0 0.0
    %611 = vmatpush1.msra.mxu0 0.0
    %612 = vmatprep.subr.mxu0 0.0
    %613 = vmatpush1.msra.mxu0 0.0
    %614 = vmatprep.subr.mxu0 0.0
    %615 = vmatpush1.msra.mxu0 0.0
    %616 = vmatprep.subr.mxu0 0.0
    %617 = vmatpush1.msra.mxu0 0.0
    %618 = vmatprep.subr.mxu0 0.0
    %619 = vmatpush1.msra.mxu0 0.0
    %620 = vmatprep.subr.mxu0 0.0
    %621 = vmatpush1.msra.mxu0 0.0
    %622 = vmatprep.subr.mxu0 0.0
    %623 = vmatpush1.msra.mxu0 0.0
    %624 = vmatprep.mubr.f32.mxu0 0.0
    %v625 = vand.u32 %v56, 4294901760
    %626 = vmatmul.mubr.f32.gmra.mrb[0].mxu0 %v625
    %v627 = vpop.f32.mrb[0].mxu0
    %v628 = vadd.f32 %v227, %v627
    %v629 = vpop.f32.mrb[0].mxu0
    %630 = vmatprep.mubr.f32.mxu0 0.0
    %v631 = vand.u32 %v59, 4294901760
    %632 = vmatmul.mubr.f32.gmra.mrb[0].mxu0 %v631
    %v633 = vpop.f32.mrb[0].mxu0
    %v634 = vadd.f32 %v237, %v633
    %v635 = vpop.f32.mrb[0].mxu0
    %636 = vmatprep.mubr.f32.mxu0 0.0
    %v637 = vand.u32 %v62, 4294901760
    %638 = vmatmul.mubr.f32.gmra.mrb[0].mxu0 %v637
    %v639 = vpop.f32.mrb[0].mxu0
    %v640 = vadd.f32 %v247, %v639
    %v641 = vpop.f32.mrb[0].mxu0
    %642 = vmatprep.mubr.f32.mxu0 0.0
    %v643 = vand.u32 %v65, 4294901760
    %644 = vmatmul.mubr.f32.gmra.mrb[0].mxu0 %v643
    %v645 = vpop.f32.mrb[0].mxu0
    %v646 = vadd.f32 %v257, %v645
    %v647 = vpop.f32.mrb[0].mxu0
    %648 = vmatprep.mubr.f32.mxu0 0.0
    %v649 = vand.u32 %v68, 4294901760
    %650 = vmatmul.mubr.f32.gmra.mrb[0].mxu0 %v649
    %v651 = vpop.f32.mrb[0].mxu0
    %v652 = vadd.f32 %v267, %v651
    %v653 = vpop.f32.mrb[0].mxu0
    %654 = vmatprep.mubr.f32.mxu0 0.0
    %v655 = vand.u32 %v71, 4294901760
    %656 = vmatmul.mubr.f32.gmra.mrb[0].mxu0 %v655
    %v657 = vpop.f32.mrb[0].mxu0
    %v658 = vadd.f32 %v277, %v657
    %v659 = vpop.f32.mrb[0].mxu0
    %660 = vmatprep.mubr.f32.mxu0 0.0
    %v661 = vand.u32 %v74, 4294901760
    %662 = vmatmul.mubr.f32.gmra.mrb[0].mxu0 %v661
    %v663 = vpop.f32.mrb[0].mxu0
    %v664 = vadd.f32 %v287, %v663
    %v665 = vpop.f32.mrb[0].mxu0
    %666 = vmatprep.mubr.f32.mxu0 0.0
    %v667 = vand.u32 %v77, 4294901760
    %668 = vmatmul.mubr.f32.gmra.mrb[0].mxu0 %v667
    %v669 = vpop.f32.mrb[0].mxu0
    %v670 = vadd.f32 %v297, %v669
    %v671 = vpop.f32.mrb[0].mxu0
    %672 = vmatprep.mubr.f32.mxu0 0.0
    %v673 = vand.u32 %v80, 4294901760
    %674 = vmatmul.mubr.f32.gmra.mrb[0].mxu0 %v673
    %v675 = vpop.f32.mrb[0].mxu0
    %v676 = vadd.f32 %v307, %v675
    %v677 = vpop.f32.mrb[0].mxu0
    %678 = vmatprep.mubr.f32.mxu0 0.0
    %v679 = vand.u32 %v83, 4294901760
    %680 = vmatmul.mubr.f32.gmra.mrb[0].mxu0 %v679
    %v681 = vpop.f32.mrb[0].mxu0
    %v682 = vadd.f32 %v317, %v681
    %v683 = vpop.f32.mrb[0].mxu0
    %684 = vmatprep.mubr.f32.mxu0 0.0
    %v685 = vand.u32 %v86, 4294901760
    %686 = vmatmul.mubr.f32.gmra.mrb[0].mxu0 %v685
    %v687 = vpop.f32.mrb[0].mxu0
    %v688 = vadd.f32 %v327, %v687
    %v689 = vpop.f32.mrb[0].mxu0
    %690 = vmatprep.mubr.f32.mxu0 0.0
    %v691 = vand.u32 %v89, 4294901760
    %692 = vmatmul.mubr.f32.gmra.mrb[0].mxu0 %v691
    %v693 = vpop.f32.mrb[0].mxu0
    %v694 = vadd.f32 %v337, %v693
    %v695 = vpop.f32.mrb[0].mxu0
    %696 = vmatprep.mubr.f32.mxu0 0.0
    %v697 = vand.u32 %v92, 4294901760
    %698 = vmatmul.mubr.f32.gmra.mrb[0].mxu0 %v697
    %v699 = vpop.f32.mrb[0].mxu0
    %v700 = vadd.f32 %v347, %v699
    %v701 = vpop.f32.mrb[0].mxu0
    %702 = vmatprep.mubr.f32.mxu0 0.0
    %v703 = vand.u32 %v95, 4294901760
    %704 = vmatmul.mubr.f32.gmra.mrb[0].mxu0 %v703
    %v705 = vpop.f32.mrb[0].mxu0
    %v706 = vadd.f32 %v357, %v705
    %v707 = vpop.f32.mrb[0].mxu0
    %708 = vmatprep.mubr.f32.mxu0 0.0
    %v709 = vand.u32 %v98, 4294901760
    %710 = vmatmul.mubr.f32.gmra.mrb[0].mxu0 %v709
    %v711 = vpop.f32.mrb[0].mxu0
    %v712 = vadd.f32 %v367, %v711
    %v713 = vpop.f32.mrb[0].mxu0
    %714 = vmatprep.mubr.f32.mxu0 0.0
    %v715 = vand.u32 %v101, 4294901760
    %716 = vmatmul.mubr.f32.gmra.mrb[0].mxu0 %v715
    %v717 = vpop.f32.mrb[0].mxu0
    %v718 = vadd.f32 %v377, %v717
    %v719 = vpop.f32.mrb[0].mxu0
    %720 = vmatprep.mubr.f32.mxu0 0.0
    %v721 = vand.u32 %v104, 4294901760
    %722 = vmatmul.mubr.f32.gmra.mrb[0].mxu0 %v721
    %v723 = vpop.f32.mrb[0].mxu0
    %v724 = vadd.f32 %v387, %v723
    %v725 = vpop.f32.mrb[0].mxu0
    %726 = vmatprep.mubr.f32.mxu0 0.0
    %v727 = vand.u32 %v107, 4294901760
    %728 = vmatmul.mubr.f32.gmra.mrb[0].mxu0 %v727
    %v729 = vpop.f32.mrb[0].mxu0
    %v730 = vadd.f32 %v397, %v729
    %v731 = vpop.f32.mrb[0].mxu0
    %732 = vmatprep.mubr.f32.mxu0 0.0
    %v733 = vand.u32 %v110, 4294901760
    %734 = vmatmul.mubr.f32.gmra.mrb[0].mxu0 %v733
    %v735 = vpop.f32.mrb[0].mxu0
    %v736 = vadd.f32 %v407, %v735
    %v737 = vpop.f32.mrb[0].mxu0
    %738 = vmatprep.mubr.f32.mxu0 0.0
    %v739 = vand.u32 %v113, 4294901760
    %740 = vmatmul.mubr.f32.gmra.mrb[0].mxu0 %v739
    %v741 = vpop.f32.mrb[0].mxu0
    %v742 = vadd.f32 %v417, %v741
    %v743 = vpop.f32.mrb[0].mxu0
    %744 = vmatprep.mubr.f32.mxu0 0.0
    %v745 = vand.u32 %v116, 4294901760
    %746 = vmatmul.mubr.f32.gmra.mrb[0].mxu0 %v745
    %v747 = vpop.f32.mrb[0].mxu0
    %v748 = vadd.f32 %v427, %v747
    %v749 = vpop.f32.mrb[0].mxu0
    %750 = vmatprep.mubr.f32.mxu0 0.0
    %v751 = vand.u32 %v119, 4294901760
    %752 = vmatmul.mubr.f32.gmra.mrb[0].mxu0 %v751
    %v753 = vpop.f32.mrb[0].mxu0
    %v754 = vadd.f32 %v437, %v753
    %v755 = vpop.f32.mrb[0].mxu0
    %756 = vmatprep.mubr.f32.mxu0 0.0
    %v757 = vand.u32 %v122, 4294901760
    %758 = vmatmul.mubr.f32.gmra.mrb[0].mxu0 %v757
    %v759 = vpop.f32.mrb[0].mxu0
    %v760 = vadd.f32 %v447, %v759
    %v761 = vpop.f32.mrb[0].mxu0
    %762 = vmatprep.mubr.f32.mxu0 0.0
    %v763 = vand.u32 %v125, 4294901760
    %764 = vmatmul.mubr.f32.gmra.mrb[0].mxu0 %v763
    %v765 = vpop.f32.mrb[0].mxu0
    %v766 = vadd.f32 %v457, %v765
    %v767 = vpop.f32.mrb[0].mxu0
    %768 = vmatprep.mubr.f32.mxu0 0.0
    %v769 = vand.u32 %v128, 4294901760
    %770 = vmatmul.mubr.f32.gmra.mrb[0].mxu0 %v769
    %v771 = vpop.f32.mrb[0].mxu0
    %v772 = vadd.f32 %v467, %v771
    %v773 = vpop.f32.mrb[0].mxu0
    %774 = vmatprep.mubr.f32.mxu0 0.0
    %v775 = vand.u32 %v131, 4294901760
    %776 = vmatmul.mubr.f32.gmra.mrb[0].mxu0 %v775
    %v777 = vpop.f32.mrb[0].mxu0
    %v778 = vadd.f32 %v477, %v777
    %v779 = vpop.f32.mrb[0].mxu0
    %780 = vmatprep.mubr.f32.mxu0 0.0
    %v781 = vand.u32 %v134, 4294901760
    %782 = vmatmul.mubr.f32.gmra.mrb[0].mxu0 %v781
    %v783 = vpop.f32.mrb[0].mxu0
    %v784 = vadd.f32 %v487, %v783
    %v785 = vpop.f32.mrb[0].mxu0
    %786 = vmatprep.mubr.f32.mxu0 0.0
    %v787 = vand.u32 %v137, 4294901760
    %788 = vmatmul.mubr.f32.gmra.mrb[0].mxu0 %v787
    %v789 = vpop.f32.mrb[0].mxu0
    %v790 = vadd.f32 %v497, %v789
    %v791 = vpop.f32.mrb[0].mxu0
    %792 = vmatprep.mubr.f32.mxu0 0.0
    %v793 = vand.u32 %v140, 4294901760
    %794 = vmatmul.mubr.f32.gmra.mrb[0].mxu0 %v793
    %v795 = vpop.f32.mrb[0].mxu0
    %v796 = vadd.f32 %v507, %v795
    %v797 = vpop.f32.mrb[0].mxu0
    %798 = vmatprep.mubr.f32.mxu0 0.0
    %v799 = vand.u32 %v143, 4294901760
    %800 = vmatmul.mubr.f32.gmra.mrb[0].mxu0 %v799
    %v801 = vpop.f32.mrb[0].mxu0
    %v802 = vadd.f32 %v517, %v801
    %v803 = vpop.f32.mrb[0].mxu0
    %804 = vmatprep.mubr.f32.mxu0 0.0
    %v805 = vand.u32 %v146, 4294901760
    %806 = vmatmul.mubr.f32.gmra.mrb[0].mxu0 %v805
    %v807 = vpop.f32.mrb[0].mxu0
    %v808 = vadd.f32 %v527, %v807
    %v809 = vpop.f32.mrb[0].mxu0
    %810 = vmatprep.mubr.f32.mxu0 0.0
    %v811 = vand.u32 %v149, 4294901760
    %812 = vmatmul.mubr.f32.gmra.mrb[0].mxu0 %v811
    %v813 = vpop.f32.mrb[0].mxu0
    %v814 = vadd.f32 %v537, %v813
    %v815 = vpop.f32.mrb[0].mxu0
    %816 = vdwg.mxu0
    %817 = vmatprep.subr.mxu0 0.0
    %v818 = vand.u32 %v50, 4294901760
    %v819 = vsub.f32 %v50, %v818
    %820 = vmatpush1.msra.mxu0 %v819
    %821 = vmatprep.subr.mxu0 0.0
    %v822 = vand.u32 %v51, 4294901760
    %v823 = vsub.f32 %v51, %v822
    %824 = vmatpush1.msra.mxu0 %v823
    %825 = vmatprep.subr.mxu0 0.0
    %v826 = vand.u32 %v52, 4294901760
    %v827 = vsub.f32 %v52, %v826
    %828 = vmatpush1.msra.mxu0 %v827
    %829 = vmatprep.subr.mxu0 0.0
    %v830 = vand.u32 %v53, 4294901760
    %v831 = vsub.f32 %v53, %v830
    %832 = vmatpush1.msra.mxu0 %v831
    %833 = vmatprep.subr.mxu0 0.0
    %834 = vmatpush1.msra.mxu0 0.0
    %835 = vmatprep.subr.mxu0 0.0
    %836 = vmatpush1.msra.mxu0 0.0
    %837 = vmatprep.subr.mxu0 0.0
    %838 = vmatpush1.msra.mxu0 0.0
    %839 = vmatprep.subr.mxu0 0.0
    %840 = vmatpush1.msra.mxu0 0.0
    %841 = vmatprep.subr.mxu0 0.0
    %842 = vmatpush1.msra.mxu0 0.0
    %843 = vmatprep.subr.mxu0 0.0
    %844 = vmatpush1.msra.mxu0 0.0
    %845 = vmatprep.subr.mxu0 0.0
    %846 = vmatpush1.msra.mxu0 0.0
    %847 = vmatprep.subr.mxu0 0.0
    %848 = vmatpush1.msra.mxu0 0.0
    %849 = vmatprep.subr.mxu0 0.0
    %850 = vmatpush1.msra.mxu0 0.0
    %851 = vmatprep.subr.mxu0 0.0
    %852 = vmatpush1.msra.mxu0 0.0
    %853 = vmatprep.subr.mxu0 0.0
    %854 = vmatpush1.msra.mxu0 0.0
    %855 = vmatprep.subr.mxu0 0.0
    %856 = vmatpush1.msra.mxu0 0.0
    %857 = vmatprep.subr.mxu0 0.0
    %858 = vmatpush1.msra.mxu0 0.0
    %859 = vmatprep.subr.mxu0 0.0
    %860 = vmatpush1.msra.mxu0 0.0
    %861 = vmatprep.subr.mxu0 0.0
    %862 = vmatpush1.msra.mxu0 0.0
    %863 = vmatprep.subr.mxu0 0.0
    %864 = vmatpush1.msra.mxu0 0.0
    %865 = vmatprep.subr.mxu0 0.0
    %866 = vmatpush1.msra.mxu0 0.0
    %867 = vmatprep.subr.mxu0 0.0
    %868 = vmatpush1.msra.mxu0 0.0
    %869 = vmatprep.subr.mxu0 0.0
    %870 = vmatpush1.msra.mxu0 0.0
    %871 = vmatprep.subr.mxu0 0.0
    %872 = vmatpush1.msra.mxu0 0.0
    %873 = vmatprep.subr.mxu0 0.0
    %874 = vmatpush1.msra.mxu0 0.0
    %875 = vmatprep.subr.mxu0 0.0
    %876 = vmatpush1.msra.mxu0 0.0
    %877 = vmatprep.subr.mxu0 0.0
    %878 = vmatpush1.msra.mxu0 0.0
    %879 = vmatprep.subr.mxu0 0.0
    %880 = vmatpush1.msra.mxu0 0.0
    %881 = vmatprep.subr.mxu0 0.0
    %882 = vmatpush1.msra.mxu0 0.0
    %883 = vmatprep.subr.mxu0 0.0
    %884 = vmatpush1.msra.mxu0 0.0
    %885 = vmatprep.subr.mxu0 0.0
    %886 = vmatpush1.msra.mxu0 0.0
    %887 = vmatprep.subr.mxu0 0.0
    %888 = vmatpush1.msra.mxu0 0.0
    %889 = vmatprep.mubr.f32.mxu0 0.0
    %v890 = vand.u32 %v56, 4294901760
    %v891 = vsub.f32 %v56, %v890
    %892 = vmatmul.mubr.f32.gmra.mrb[0].mxu0 %v891
    %v893 = vpop.f32.mrb[0].mxu0
    %v894 = vadd.f32 %v628, %v893
    %v895 = vpop.f32.mrb[0].mxu0
    %896 = vmatprep.mubr.f32.mxu0 0.0
    %v897 = vand.u32 %v59, 4294901760
    %v898 = vsub.f32 %v59, %v897
    %899 = vmatmul.mubr.f32.gmra.mrb[0].mxu0 %v898
    %v900 = vpop.f32.mrb[0].mxu0
    %v901 = vadd.f32 %v634, %v900
    %v902 = vpop.f32.mrb[0].mxu0
    %903 = vmatprep.mubr.f32.mxu0 0.0
    %v904 = vand.u32 %v62, 4294901760
    %v905 = vsub.f32 %v62, %v904
    %906 = vmatmul.mubr.f32.gmra.mrb[0].mxu0 %v905
    %v907 = vpop.f32.mrb[0].mxu0
    %v908 = vadd.f32 %v640, %v907
    %v909 = vpop.f32.mrb[0].mxu0
    %910 = vmatprep.mubr.f32.mxu0 0.0
    %v911 = vand.u32 %v65, 4294901760
    %v912 = vsub.f32 %v65, %v911
    %913 = vmatmul.mubr.f32.gmra.mrb[0].mxu0 %v912
    %v914 = vpop.f32.mrb[0].mxu0
    %v915 = vadd.f32 %v646, %v914
    %v916 = vpop.f32.mrb[0].mxu0
    %917 = vmatprep.mubr.f32.mxu0 0.0
    %v918 = vand.u32 %v68, 4294901760
    %v919 = vsub.f32 %v68, %v918
    %920 = vmatmul.mubr.f32.gmra.mrb[0].mxu0 %v919
    %v921 = vpop.f32.mrb[0].mxu0
    %v922 = vadd.f32 %v652, %v921
    %v923 = vpop.f32.mrb[0].mxu0
    %924 = vmatprep.mubr.f32.mxu0 0.0
    %v925 = vand.u32 %v71, 4294901760
    %v926 = vsub.f32 %v71, %v925
    %927 = vmatmul.mubr.f32.gmra.mrb[0].mxu0 %v926
    %v928 = vpop.f32.mrb[0].mxu0
    %v929 = vadd.f32 %v658, %v928
    %v930 = vpop.f32.mrb[0].mxu0
    %931 = vmatprep.mubr.f32.mxu0 0.0
    %v932 = vand.u32 %v74, 4294901760
    %v933 = vsub.f32 %v74, %v932
    %934 = vmatmul.mubr.f32.gmra.mrb[0].mxu0 %v933
    %v935 = vpop.f32.mrb[0].mxu0
    %v936 = vadd.f32 %v664, %v935
    %v937 = vpop.f32.mrb[0].mxu0
    %938 = vmatprep.mubr.f32.mxu0 0.0
    %v939 = vand.u32 %v77, 4294901760
    %v940 = vsub.f32 %v77, %v939
    %941 = vmatmul.mubr.f32.gmra.mrb[0].mxu0 %v940
    %v942 = vpop.f32.mrb[0].mxu0
    %v943 = vadd.f32 %v670, %v942
    %v944 = vpop.f32.mrb[0].mxu0
    %945 = vmatprep.mubr.f32.mxu0 0.0
    %v946 = vand.u32 %v80, 4294901760
    %v947 = vsub.f32 %v80, %v946
    %948 = vmatmul.mubr.f32.gmra.mrb[0].mxu0 %v947
    %v949 = vpop.f32.mrb[0].mxu0
    %v950 = vadd.f32 %v676, %v949
    %v951 = vpop.f32.mrb[0].mxu0
    %952 = vmatprep.mubr.f32.mxu0 0.0
    %v953 = vand.u32 %v83, 4294901760
    %v954 = vsub.f32 %v83, %v953
    %955 = vmatmul.mubr.f32.gmra.mrb[0].mxu0 %v954
    %v956 = vpop.f32.mrb[0].mxu0
    %v957 = vadd.f32 %v682, %v956
    %v958 = vpop.f32.mrb[0].mxu0
    %959 = vmatprep.mubr.f32.mxu0 0.0
    %v960 = vand.u32 %v86, 4294901760
    %v961 = vsub.f32 %v86, %v960
    %962 = vmatmul.mubr.f32.gmra.mrb[0].mxu0 %v961
    %v963 = vpop.f32.mrb[0].mxu0
    %v964 = vadd.f32 %v688, %v963
    %v965 = vpop.f32.mrb[0].mxu0
    %966 = vmatprep.mubr.f32.mxu0 0.0
    %v967 = vand.u32 %v89, 4294901760
    %v968 = vsub.f32 %v89, %v967
    %969 = vmatmul.mubr.f32.gmra.mrb[0].mxu0 %v968
    %v970 = vpop.f32.mrb[0].mxu0
    %v971 = vadd.f32 %v694, %v970
    %v972 = vpop.f32.mrb[0].mxu0
    %973 = vmatprep.mubr.f32.mxu0 0.0
    %v974 = vand.u32 %v92, 4294901760
    %v975 = vsub.f32 %v92, %v974
    %976 = vmatmul.mubr.f32.gmra.mrb[0].mxu0 %v975
    %v977 = vpop.f32.mrb[0].mxu0
    %v978 = vadd.f32 %v700, %v977
    %v979 = vpop.f32.mrb[0].mxu0
    %980 = vmatprep.mubr.f32.mxu0 0.0
    %v981 = vand.u32 %v95, 4294901760
    %v982 = vsub.f32 %v95, %v981
    %983 = vmatmul.mubr.f32.gmra.mrb[0].mxu0 %v982
    %v984 = vpop.f32.mrb[0].mxu0
    %v985 = vadd.f32 %v706, %v984
    %v986 = vpop.f32.mrb[0].mxu0
    %987 = vmatprep.mubr.f32.mxu0 0.0
    %v988 = vand.u32 %v98, 4294901760
    %v989 = vsub.f32 %v98, %v988
    %990 = vmatmul.mubr.f32.gmra.mrb[0].mxu0 %v989
    %v991 = vpop.f32.mrb[0].mxu0
    %v992 = vadd.f32 %v712, %v991
    %v993 = vpop.f32.mrb[0].mxu0
    %994 = vmatprep.mubr.f32.mxu0 0.0
    %v995 = vand.u32 %v101, 4294901760
    %v996 = vsub.f32 %v101, %v995
    %997 = vmatmul.mubr.f32.gmra.mrb[0].mxu0 %v996
    %v998 = vpop.f32.mrb[0].mxu0
    %v999 = vadd.f32 %v718, %v998
    %v1000 = vpop.f32.mrb[0].mxu0
    %1001 = vmatprep.mubr.f32.mxu0 0.0
    %v1002 = vand.u32 %v104, 4294901760
    %v1003 = vsub.f32 %v104, %v1002
    %1004 = vmatmul.mubr.f32.gmra.mrb[0].mxu0 %v1003
    %v1005 = vpop.f32.mrb[0].mxu0
    %v1006 = vadd.f32 %v724, %v1005
    %v1007 = vpop.f32.mrb[0].mxu0
    %1008 = vmatprep.mubr.f32.mxu0 0.0
    %v1009 = vand.u32 %v107, 4294901760
    %v1010 = vsub.f32 %v107, %v1009
    %1011 = vmatmul.mubr.f32.gmra.mrb[0].mxu0 %v1010
    %v1012 = vpop.f32.mrb[0].mxu0
    %v1013 = vadd.f32 %v730, %v1012
    %v1014 = vpop.f32.mrb[0].mxu0
    %1015 = vmatprep.mubr.f32.mxu0 0.0
    %v1016 = vand.u32 %v110, 4294901760
    %v1017 = vsub.f32 %v110, %v1016
    %1018 = vmatmul.mubr.f32.gmra.mrb[0].mxu0 %v1017
    %v1019 = vpop.f32.mrb[0].mxu0
    %v1020 = vadd.f32 %v736, %v1019
    %v1021 = vpop.f32.mrb[0].mxu0
    %1022 = vmatprep.mubr.f32.mxu0 0.0
    %v1023 = vand.u32 %v113, 4294901760
    %v1024 = vsub.f32 %v113, %v1023
    %1025 = vmatmul.mubr.f32.gmra.mrb[0].mxu0 %v1024
    %v1026 = vpop.f32.mrb[0].mxu0
    %v1027 = vadd.f32 %v742, %v1026
    %v1028 = vpop.f32.mrb[0].mxu0
    %1029 = vmatprep.mubr.f32.mxu0 0.0
    %v1030 = vand.u32 %v116, 4294901760
    %v1031 = vsub.f32 %v116, %v1030
    %1032 = vmatmul.mubr.f32.gmra.mrb[0].mxu0 %v1031
    %v1033 = vpop.f32.mrb[0].mxu0
    %v1034 = vadd.f32 %v748, %v1033
    %v1035 = vpop.f32.mrb[0].mxu0
    %1036 = vmatprep.mubr.f32.mxu0 0.0
    %v1037 = vand.u32 %v119, 4294901760
    %v1038 = vsub.f32 %v119, %v1037
    %1039 = vmatmul.mubr.f32.gmra.mrb[0].mxu0 %v1038
    %v1040 = vpop.f32.mrb[0].mxu0
    %v1041 = vadd.f32 %v754, %v1040
    %v1042 = vpop.f32.mrb[0].mxu0
    %1043 = vmatprep.mubr.f32.mxu0 0.0
    %v1044 = vand.u32 %v122, 4294901760
    %v1045 = vsub.f32 %v122, %v1044
    %1046 = vmatmul.mubr.f32.gmra.mrb[0].mxu0 %v1045
    %v1047 = vpop.f32.mrb[0].mxu0
    %v1048 = vadd.f32 %v760, %v1047
    %v1049 = vpop.f32.mrb[0].mxu0
    %1050 = vmatprep.mubr.f32.mxu0 0.0
    %v1051 = vand.u32 %v125, 4294901760
    %v1052 = vsub.f32 %v125, %v1051
    %1053 = vmatmul.mubr.f32.gmra.mrb[0].mxu0 %v1052
    %v1054 = vpop.f32.mrb[0].mxu0
    %v1055 = vadd.f32 %v766, %v1054
    %v1056 = vpop.f32.mrb[0].mxu0
    %1057 = vmatprep.mubr.f32.mxu0 0.0
    %v1058 = vand.u32 %v128, 4294901760
    %v1059 = vsub.f32 %v128, %v1058
    %1060 = vmatmul.mubr.f32.gmra.mrb[0].mxu0 %v1059
    %v1061 = vpop.f32.mrb[0].mxu0
    %v1062 = vadd.f32 %v772, %v1061
    %v1063 = vpop.f32.mrb[0].mxu0
    %1064 = vmatprep.mubr.f32.mxu0 0.0
    %v1065 = vand.u32 %v131, 4294901760
    %v1066 = vsub.f32 %v131, %v1065
    %1067 = vmatmul.mubr.f32.gmra.mrb[0].mxu0 %v1066
    %v1068 = vpop.f32.mrb[0].mxu0
    %v1069 = vadd.f32 %v778, %v1068
    %v1070 = vpop.f32.mrb[0].mxu0
    %1071 = vmatprep.mubr.f32.mxu0 0.0
    %v1072 = vand.u32 %v134, 4294901760
    %v1073 = vsub.f32 %v134, %v1072
    %1074 = vmatmul.mubr.f32.gmra.mrb[0].mxu0 %v1073
    %v1075 = vpop.f32.mrb[0].mxu0
    %v1076 = vadd.f32 %v784, %v1075
    %v1077 = vpop.f32.mrb[0].mxu0
    %1078 = vmatprep.mubr.f32.mxu0 0.0
    %v1079 = vand.u32 %v137, 4294901760
    %v1080 = vsub.f32 %v137, %v1079
    %1081 = vmatmul.mubr.f32.gmra.mrb[0].mxu0 %v1080
    %v1082 = vpop.f32.mrb[0].mxu0
    %v1083 = vadd.f32 %v790, %v1082
    %v1084 = vpop.f32.mrb[0].mxu0
    %1085 = vmatprep.mubr.f32.mxu0 0.0
    %v1086 = vand.u32 %v140, 4294901760
    %v1087 = vsub.f32 %v140, %v1086
    %1088 = vmatmul.mubr.f32.gmra.mrb[0].mxu0 %v1087
    %v1089 = vpop.f32.mrb[0].mxu0
    %v1090 = vadd.f32 %v796, %v1089
    %v1091 = vpop.f32.mrb[0].mxu0
    %1092 = vmatprep.mubr.f32.mxu0 0.0
    %v1093 = vand.u32 %v143, 4294901760
    %v1094 = vsub.f32 %v143, %v1093
    %1095 = vmatmul.mubr.f32.gmra.mrb[0].mxu0 %v1094
    %v1096 = vpop.f32.mrb[0].mxu0
    %v1097 = vadd.f32 %v802, %v1096
    %v1098 = vpop.f32.mrb[0].mxu0
    %1099 = vmatprep.mubr.f32.mxu0 0.0
    %v1100 = vand.u32 %v146, 4294901760
    %v1101 = vsub.f32 %v146, %v1100
    %1102 = vmatmul.mubr.f32.gmra.mrb[0].mxu0 %v1101
    %v1103 = vpop.f32.mrb[0].mxu0
    %v1104 = vadd.f32 %v808, %v1103
    %v1105 = vpop.f32.mrb[0].mxu0
    %1106 = vmatprep.mubr.f32.mxu0 0.0
    %v1107 = vand.u32 %v149, 4294901760
    %v1108 = vsub.f32 %v149, %v1107
    %1109 = vmatmul.mubr.f32.gmra.mrb[0].mxu0 %v1108
    %v1110 = vpop.f32.mrb[0].mxu0
    %v1111 = vadd.f32 %v814, %v1110
    %v1112 = vpop.f32.mrb[0].mxu0
    %1113 = vdwg.mxu0
    %1114 = vmatprep.subr.mxu0 0.0
    %v1115 = vand.u32 %v50, 4294901760
    %1116 = vmatpush1.msra.mxu0 %v1115
    %1117 = vmatprep.subr.mxu0 0.0
    %v1118 = vand.u32 %v51, 4294901760
    %1119 = vmatpush1.msra.mxu0 %v1118
    %1120 = vmatprep.subr.mxu0 0.0
    %v1121 = vand.u32 %v52, 4294901760
    %1122 = vmatpush1.msra.mxu0 %v1121
    %1123 = vmatprep.subr.mxu0 0.0
    %v1124 = vand.u32 %v53, 4294901760
    %1125 = vmatpush1.msra.mxu0 %v1124
    %1126 = vmatprep.subr.mxu0 0.0
    %1127 = vmatpush1.msra.mxu0 0.0
    %1128 = vmatprep.subr.mxu0 0.0
    %1129 = vmatpush1.msra.mxu0 0.0
    %1130 = vmatprep.subr.mxu0 0.0
    %1131 = vmatpush1.msra.mxu0 0.0
    %1132 = vmatprep.subr.mxu0 0.0
    %1133 = vmatpush1.msra.mxu0 0.0
    %1134 = vmatprep.subr.mxu0 0.0
    %1135 = vmatpush1.msra.mxu0 0.0
    %1136 = vmatprep.subr.mxu0 0.0
    %1137 = vmatpush1.msra.mxu0 0.0
    %1138 = vmatprep.subr.mxu0 0.0
    %1139 = vmatpush1.msra.mxu0 0.0
    %1140 = vmatprep.subr.mxu0 0.0
    %1141 = vmatpush1.msra.mxu0 0.0
    %1142 = vmatprep.subr.mxu0 0.0
    %1143 = vmatpush1.msra.mxu0 0.0
    %1144 = vmatprep.subr.mxu0 0.0
    %1145 = vmatpush1.msra.mxu0 0.0
    %1146 = vmatprep.subr.mxu0 0.0
    %1147 = vmatpush1.msra.mxu0 0.0
    %1148 = vmatprep.subr.mxu0 0.0
    %1149 = vmatpush1.msra.mxu0 0.0
    %1150 = vmatprep.subr.mxu0 0.0
    %1151 = vmatpush1.msra.mxu0 0.0
    %1152 = vmatprep.subr.mxu0 0.0
    %1153 = vmatpush1.msra.mxu0 0.0
    %1154 = vmatprep.subr.mxu0 0.0
    %1155 = vmatpush1.msra.mxu0 0.0
    %1156 = vmatprep.subr.mxu0 0.0
    %1157 = vmatpush1.msra.mxu0 0.0
    %1158 = vmatprep.subr.mxu0 0.0
    %1159 = vmatpush1.msra.mxu0 0.0
    %1160 = vmatprep.subr.mxu0 0.0
    %1161 = vmatpush1.msra.mxu0 0.0
    %1162 = vmatprep.subr.mxu0 0.0
    %1163 = vmatpush1.msra.mxu0 0.0
    %1164 = vmatprep.subr.mxu0 0.0
    %1165 = vmatpush1.msra.mxu0 0.0
    %1166 = vmatprep.subr.mxu0 0.0
    %1167 = vmatpush1.msra.mxu0 0.0
    %1168 = vmatprep.subr.mxu0 0.0
    %1169 = vmatpush1.msra.mxu0 0.0
    %1170 = vmatprep.subr.mxu0 0.0
    %1171 = vmatpush1.msra.mxu0 0.0
    %1172 = vmatprep.subr.mxu0 0.0
    %1173 = vmatpush1.msra.mxu0 0.0
    %1174 = vmatprep.subr.mxu0 0.0
    %1175 = vmatpush1.msra.mxu0 0.0
    %1176 = vmatprep.subr.mxu0 0.0
    %1177 = vmatpush1.msra.mxu0 0.0
    %1178 = vmatprep.subr.mxu0 0.0
    %1179 = vmatpush1.msra.mxu0 0.0
    %1180 = vmatprep.subr.mxu0 0.0
    %1181 = vmatpush1.msra.mxu0 0.0
    %1182 = vmatprep.mubr.f32.mxu0 0.0
    %v1183 = vand.u32 %v56, 4294901760
    %v1184 = vsub.f32 %v56, %v1183
    %v1185 = vand.u32 %v1184, 4294901760
    %1186 = vmatmul.mubr.f32.gmra.mrb[0].mxu0 %v1185
    %v1187 = vpop.f32.mrb[0].mxu0
    %v1188 = vadd.f32 %v894, %v1187
    %v1189 = vpop.f32.mrb[0].mxu0
    %1190 = vmatprep.mubr.f32.mxu0 0.0
    %v1191 = vand.u32 %v59, 4294901760
    %v1192 = vsub.f32 %v59, %v1191
    %v1193 = vand.u32 %v1192, 4294901760
    %1194 = vmatmul.mubr.f32.gmra.mrb[0].mxu0 %v1193
    %v1195 = vpop.f32.mrb[0].mxu0
    %v1196 = vadd.f32 %v901, %v1195
    %v1197 = vpop.f32.mrb[0].mxu0
    %1198 = vmatprep.mubr.f32.mxu0 0.0
    %v1199 = vand.u32 %v62, 4294901760
    %v1200 = vsub.f32 %v62, %v1199
    %v1201 = vand.u32 %v1200, 4294901760
    %1202 = vmatmul.mubr.f32.gmra.mrb[0].mxu0 %v1201
    %v1203 = vpop.f32.mrb[0].mxu0
    %v1204 = vadd.f32 %v908, %v1203
    %v1205 = vpop.f32.mrb[0].mxu0
    %1206 = vmatprep.mubr.f32.mxu0 0.0
    %v1207 = vand.u32 %v65, 4294901760
    %v1208 = vsub.f32 %v65, %v1207
    %v1209 = vand.u32 %v1208, 4294901760
    %1210 = vmatmul.mubr.f32.gmra.mrb[0].mxu0 %v1209
    %v1211 = vpop.f32.mrb[0].mxu0
    %v1212 = vadd.f32 %v915, %v1211
    %v1213 = vpop.f32.mrb[0].mxu0
    %1214 = vmatprep.mubr.f32.mxu0 0.0
    %v1215 = vand.u32 %v68, 4294901760
    %v1216 = vsub.f32 %v68, %v1215
    %v1217 = vand.u32 %v1216, 4294901760
    %1218 = vmatmul.mubr.f32.gmra.mrb[0].mxu0 %v1217
    %v1219 = vpop.f32.mrb[0].mxu0
    %v1220 = vadd.f32 %v922, %v1219
    %v1221 = vpop.f32.mrb[0].mxu0
    %1222 = vmatprep.mubr.f32.mxu0 0.0
    %v1223 = vand.u32 %v71, 4294901760
    %v1224 = vsub.f32 %v71, %v1223
    %v1225 = vand.u32 %v1224, 4294901760
    %1226 = vmatmul.mubr.f32.gmra.mrb[0].mxu0 %v1225
    %v1227 = vpop.f32.mrb[0].mxu0
    %v1228 = vadd.f32 %v929, %v1227
    %v1229 = vpop.f32.mrb[0].mxu0
    %1230 = vmatprep.mubr.f32.mxu0 0.0
    %v1231 = vand.u32 %v74, 4294901760
    %v1232 = vsub.f32 %v74, %v1231
    %v1233 = vand.u32 %v1232, 4294901760
    %1234 = vmatmul.mubr.f32.gmra.mrb[0].mxu0 %v1233
    %v1235 = vpop.f32.mrb[0].mxu0
    %v1236 = vadd.f32 %v936, %v1235
    %v1237 = vpop.f32.mrb[0].mxu0
    %1238 = vmatprep.mubr.f32.mxu0 0.0
    %v1239 = vand.u32 %v77, 4294901760
    %v1240 = vsub.f32 %v77, %v1239
    %v1241 = vand.u32 %v1240, 4294901760
    %1242 = vmatmul.mubr.f32.gmra.mrb[0].mxu0 %v1241
    %v1243 = vpop.f32.mrb[0].mxu0
    %v1244 = vadd.f32 %v943, %v1243
    %v1245 = vpop.f32.mrb[0].mxu0
    %1246 = vmatprep.mubr.f32.mxu0 0.0
    %v1247 = vand.u32 %v80, 4294901760
    %v1248 = vsub.f32 %v80, %v1247
    %v1249 = vand.u32 %v1248, 4294901760
    %1250 = vmatmul.mubr.f32.gmra.mrb[0].mxu0 %v1249
    %v1251 = vpop.f32.mrb[0].mxu0
    %v1252 = vadd.f32 %v950, %v1251
    %v1253 = vpop.f32.mrb[0].mxu0
    %1254 = vmatprep.mubr.f32.mxu0 0.0
    %v1255 = vand.u32 %v83, 4294901760
    %v1256 = vsub.f32 %v83, %v1255
    %v1257 = vand.u32 %v1256, 4294901760
    %1258 = vmatmul.mubr.f32.gmra.mrb[0].mxu0 %v1257
    %v1259 = vpop.f32.mrb[0].mxu0
    %v1260 = vadd.f32 %v957, %v1259
    %v1261 = vpop.f32.mrb[0].mxu0
    %1262 = vmatprep.mubr.f32.mxu0 0.0
    %v1263 = vand.u32 %v86, 4294901760
    %v1264 = vsub.f32 %v86, %v1263
    %v1265 = vand.u32 %v1264, 4294901760
    %1266 = vmatmul.mubr.f32.gmra.mrb[0].mxu0 %v1265
    %v1267 = vpop.f32.mrb[0].mxu0
    %v1268 = vadd.f32 %v964, %v1267
    %v1269 = vpop.f32.mrb[0].mxu0
    %1270 = vmatprep.mubr.f32.mxu0 0.0
    %v1271 = vand.u32 %v89, 4294901760
    %v1272 = vsub.f32 %v89, %v1271
    %v1273 = vand.u32 %v1272, 4294901760
    %1274 = vmatmul.mubr.f32.gmra.mrb[0].mxu0 %v1273
    %v1275 = vpop.f32.mrb[0].mxu0
    %v1276 = vadd.f32 %v971, %v1275
    %v1277 = vpop.f32.mrb[0].mxu0
    %1278 = vmatprep.mubr.f32.mxu0 0.0
    %v1279 = vand.u32 %v92, 4294901760
    %v1280 = vsub.f32 %v92, %v1279
    %v1281 = vand.u32 %v1280, 4294901760
    %1282 = vmatmul.mubr.f32.gmra.mrb[0].mxu0 %v1281
    %v1283 = vpop.f32.mrb[0].mxu0
    %v1284 = vadd.f32 %v978, %v1283
    %v1285 = vpop.f32.mrb[0].mxu0
    %1286 = vmatprep.mubr.f32.mxu0 0.0
    %v1287 = vand.u32 %v95, 4294901760
    %v1288 = vsub.f32 %v95, %v1287
    %v1289 = vand.u32 %v1288, 4294901760
    %1290 = vmatmul.mubr.f32.gmra.mrb[0].mxu0 %v1289
    %v1291 = vpop.f32.mrb[0].mxu0
    %v1292 = vadd.f32 %v985, %v1291
    %v1293 = vpop.f32.mrb[0].mxu0
    %1294 = vmatprep.mubr.f32.mxu0 0.0
    %v1295 = vand.u32 %v98, 4294901760
    %v1296 = vsub.f32 %v98, %v1295
    %v1297 = vand.u32 %v1296, 4294901760
    %1298 = vmatmul.mubr.f32.gmra.mrb[0].mxu0 %v1297
    %v1299 = vpop.f32.mrb[0].mxu0
    %v1300 = vadd.f32 %v992, %v1299
    %v1301 = vpop.f32.mrb[0].mxu0
    %1302 = vmatprep.mubr.f32.mxu0 0.0
    %v1303 = vand.u32 %v101, 4294901760
    %v1304 = vsub.f32 %v101, %v1303
    %v1305 = vand.u32 %v1304, 4294901760
    %1306 = vmatmul.mubr.f32.gmra.mrb[0].mxu0 %v1305
    %v1307 = vpop.f32.mrb[0].mxu0
    %v1308 = vadd.f32 %v999, %v1307
    %v1309 = vpop.f32.mrb[0].mxu0
    %1310 = vmatprep.mubr.f32.mxu0 0.0
    %v1311 = vand.u32 %v104, 4294901760
    %v1312 = vsub.f32 %v104, %v1311
    %v1313 = vand.u32 %v1312, 4294901760
    %1314 = vmatmul.mubr.f32.gmra.mrb[0].mxu0 %v1313
    %v1315 = vpop.f32.mrb[0].mxu0
    %v1316 = vadd.f32 %v1006, %v1315
    %v1317 = vpop.f32.mrb[0].mxu0
    %1318 = vmatprep.mubr.f32.mxu0 0.0
    %v1319 = vand.u32 %v107, 4294901760
    %v1320 = vsub.f32 %v107, %v1319
    %v1321 = vand.u32 %v1320, 4294901760
    %1322 = vmatmul.mubr.f32.gmra.mrb[0].mxu0 %v1321
    %v1323 = vpop.f32.mrb[0].mxu0
    %v1324 = vadd.f32 %v1013, %v1323
    %v1325 = vpop.f32.mrb[0].mxu0
    %1326 = vmatprep.mubr.f32.mxu0 0.0
    %v1327 = vand.u32 %v110, 4294901760
    %v1328 = vsub.f32 %v110, %v1327
    %v1329 = vand.u32 %v1328, 4294901760
    %1330 = vmatmul.mubr.f32.gmra.mrb[0].mxu0 %v1329
    %v1331 = vpop.f32.mrb[0].mxu0
    %v1332 = vadd.f32 %v1020, %v1331
    %v1333 = vpop.f32.mrb[0].mxu0
    %1334 = vmatprep.mubr.f32.mxu0 0.0
    %v1335 = vand.u32 %v113, 4294901760
    %v1336 = vsub.f32 %v113, %v1335
    %v1337 = vand.u32 %v1336, 4294901760
    %1338 = vmatmul.mubr.f32.gmra.mrb[0].mxu0 %v1337
    %v1339 = vpop.f32.mrb[0].mxu0
    %v1340 = vadd.f32 %v1027, %v1339
    %v1341 = vpop.f32.mrb[0].mxu0
    %1342 = vmatprep.mubr.f32.mxu0 0.0
    %v1343 = vand.u32 %v116, 4294901760
    %v1344 = vsub.f32 %v116, %v1343
    %v1345 = vand.u32 %v1344, 4294901760
    %1346 = vmatmul.mubr.f32.gmra.mrb[0].mxu0 %v1345
    %v1347 = vpop.f32.mrb[0].mxu0
    %v1348 = vadd.f32 %v1034, %v1347
    %v1349 = vpop.f32.mrb[0].mxu0
    %1350 = vmatprep.mubr.f32.mxu0 0.0
    %v1351 = vand.u32 %v119, 4294901760
    %v1352 = vsub.f32 %v119, %v1351
    %v1353 = vand.u32 %v1352, 4294901760
    %1354 = vmatmul.mubr.f32.gmra.mrb[0].mxu0 %v1353
    %v1355 = vpop.f32.mrb[0].mxu0
    %v1356 = vadd.f32 %v1041, %v1355
    %v1357 = vpop.f32.mrb[0].mxu0
    %1358 = vmatprep.mubr.f32.mxu0 0.0
    %v1359 = vand.u32 %v122, 4294901760
    %v1360 = vsub.f32 %v122, %v1359
    %v1361 = vand.u32 %v1360, 4294901760
    %1362 = vmatmul.mubr.f32.gmra.mrb[0].mxu0 %v1361
    %v1363 = vpop.f32.mrb[0].mxu0
    %v1364 = vadd.f32 %v1048, %v1363
    %v1365 = vpop.f32.mrb[0].mxu0
    %1366 = vmatprep.mubr.f32.mxu0 0.0
    %v1367 = vand.u32 %v125, 4294901760
    %v1368 = vsub.f32 %v125, %v1367
    %v1369 = vand.u32 %v1368, 4294901760
    %1370 = vmatmul.mubr.f32.gmra.mrb[0].mxu0 %v1369
    %v1371 = vpop.f32.mrb[0].mxu0
    %v1372 = vadd.f32 %v1055, %v1371
    %v1373 = vpop.f32.mrb[0].mxu0
    %1374 = vmatprep.mubr.f32.mxu0 0.0
    %v1375 = vand.u32 %v128, 4294901760
    %v1376 = vsub.f32 %v128, %v1375
    %v1377 = vand.u32 %v1376, 4294901760
    %1378 = vmatmul.mubr.f32.gmra.mrb[0].mxu0 %v1377
    %v1379 = vpop.f32.mrb[0].mxu0
    %v1380 = vadd.f32 %v1062, %v1379
    %v1381 = vpop.f32.mrb[0].mxu0
    %1382 = vmatprep.mubr.f32.mxu0 0.0
    %v1383 = vand.u32 %v131, 4294901760
    %v1384 = vsub.f32 %v131, %v1383
    %v1385 = vand.u32 %v1384, 4294901760
    %1386 = vmatmul.mubr.f32.gmra.mrb[0].mxu0 %v1385
    %v1387 = vpop.f32.mrb[0].mxu0
    %v1388 = vadd.f32 %v1069, %v1387
    %v1389 = vpop.f32.mrb[0].mxu0
    %1390 = vmatprep.mubr.f32.mxu0 0.0
    %v1391 = vand.u32 %v134, 4294901760
    %v1392 = vsub.f32 %v134, %v1391
    %v1393 = vand.u32 %v1392, 4294901760
    %1394 = vmatmul.mubr.f32.gmra.mrb[0].mxu0 %v1393
    %v1395 = vpop.f32.mrb[0].mxu0
    %v1396 = vadd.f32 %v1076, %v1395
    %v1397 = vpop.f32.mrb[0].mxu0
    %1398 = vmatprep.mubr.f32.mxu0 0.0
    %v1399 = vand.u32 %v137, 4294901760
    %v1400 = vsub.f32 %v137, %v1399
    %v1401 = vand.u32 %v1400, 4294901760
    %1402 = vmatmul.mubr.f32.gmra.mrb[0].mxu0 %v1401
    %v1403 = vpop.f32.mrb[0].mxu0
    %v1404 = vadd.f32 %v1083, %v1403
    %v1405 = vpop.f32.mrb[0].mxu0
    %1406 = vmatprep.mubr.f32.mxu0 0.0
    %v1407 = vand.u32 %v140, 4294901760
    %v1408 = vsub.f32 %v140, %v1407
    %v1409 = vand.u32 %v1408, 4294901760
    %1410 = vmatmul.mubr.f32.gmra.mrb[0].mxu0 %v1409
    %v1411 = vpop.f32.mrb[0].mxu0
    %v1412 = vadd.f32 %v1090, %v1411
    %v1413 = vpop.f32.mrb[0].mxu0
    %1414 = vmatprep.mubr.f32.mxu0 0.0
    %v1415 = vand.u32 %v143, 4294901760
    %v1416 = vsub.f32 %v143, %v1415
    %v1417 = vand.u32 %v1416, 4294901760
    %1418 = vmatmul.mubr.f32.gmra.mrb[0].mxu0 %v1417
    %v1419 = vpop.f32.mrb[0].mxu0
    %v1420 = vadd.f32 %v1097, %v1419
    %v1421 = vpop.f32.mrb[0].mxu0
    %1422 = vmatprep.mubr.f32.mxu0 0.0
    %v1423 = vand.u32 %v146, 4294901760
    %v1424 = vsub.f32 %v146, %v1423
    %v1425 = vand.u32 %v1424, 4294901760
    %1426 = vmatmul.mubr.f32.gmra.mrb[0].mxu0 %v1425
    %v1427 = vpop.f32.mrb[0].mxu0
    %v1428 = vadd.f32 %v1104, %v1427
    %v1429 = vpop.f32.mrb[0].mxu0
    %1430 = vmatprep.mubr.f32.mxu0 0.0
    %v1431 = vand.u32 %v149, 4294901760
    %v1432 = vsub.f32 %v149, %v1431
    %v1433 = vand.u32 %v1432, 4294901760
    %1434 = vmatmul.mubr.f32.gmra.mrb[0].mxu0 %v1433
    %v1435 = vpop.f32.mrb[0].mxu0
    %v1436 = vadd.f32 %v1111, %v1435
    %v1437 = vpop.f32.mrb[0].mxu0
    %1438 = vdwg.mxu0
    %1439 = vmatprep.subr.mxu0 0.0
    %v1440 = vand.u32 %v50, 4294901760
    %v1441 = vsub.f32 %v50, %v1440
    %v1442 = vand.u32 %v1441, 4294901760
    %1443 = vmatpush1.msra.mxu0 %v1442
    %1444 = vmatprep.subr.mxu0 0.0
    %v1445 = vand.u32 %v51, 4294901760
    %v1446 = vsub.f32 %v51, %v1445
    %v1447 = vand.u32 %v1446, 4294901760
    %1448 = vmatpush1.msra.mxu0 %v1447
    %1449 = vmatprep.subr.mxu0 0.0
    %v1450 = vand.u32 %v52, 4294901760
    %v1451 = vsub.f32 %v52, %v1450
    %v1452 = vand.u32 %v1451, 4294901760
    %1453 = vmatpush1.msra.mxu0 %v1452
    %1454 = vmatprep.subr.mxu0 0.0
    %v1455 = vand.u32 %v53, 4294901760
    %v1456 = vsub.f32 %v53, %v1455
    %v1457 = vand.u32 %v1456, 4294901760
    %1458 = vmatpush1.msra.mxu0 %v1457
    %1459 = vmatprep.subr.mxu0 0.0
    %1460 = vmatpush1.msra.mxu0 0.0
    %1461 = vmatprep.subr.mxu0 0.0
    %1462 = vmatpush1.msra.mxu0 0.0
    %1463 = vmatprep.subr.mxu0 0.0
    %1464 = vmatpush1.msra.mxu0 0.0
    %1465 = vmatprep.subr.mxu0 0.0
    %1466 = vmatpush1.msra.mxu0 0.0
    %1467 = vmatprep.subr.mxu0 0.0
    %1468 = vmatpush1.msra.mxu0 0.0
    %1469 = vmatprep.subr.mxu0 0.0
    %1470 = vmatpush1.msra.mxu0 0.0
    %1471 = vmatprep.subr.mxu0 0.0
    %1472 = vmatpush1.msra.mxu0 0.0
    %1473 = vmatprep.subr.mxu0 0.0
    %1474 = vmatpush1.msra.mxu0 0.0
    %1475 = vmatprep.subr.mxu0 0.0
    %1476 = vmatpush1.msra.mxu0 0.0
    %1477 = vmatprep.subr.mxu0 0.0
    %1478 = vmatpush1.msra.mxu0 0.0
    %1479 = vmatprep.subr.mxu0 0.0
    %1480 = vmatpush1.msra.mxu0 0.0
    %1481 = vmatprep.subr.mxu0 0.0
    %1482 = vmatpush1.msra.mxu0 0.0
    %1483 = vmatprep.subr.mxu0 0.0
    %1484 = vmatpush1.msra.mxu0 0.0
    %1485 = vmatprep.subr.mxu0 0.0
    %1486 = vmatpush1.msra.mxu0 0.0
    %1487 = vmatprep.subr.mxu0 0.0
    %1488 = vmatpush1.msra.mxu0 0.0
    %1489 = vmatprep.subr.mxu0 0.0
    %1490 = vmatpush1.msra.mxu0 0.0
    %1491 = vmatprep.subr.mxu0 0.0
    %1492 = vmatpush1.msra.mxu0 0.0
    %1493 = vmatprep.subr.mxu0 0.0
    %1494 = vmatpush1.msra.mxu0 0.0
    %1495 = vmatprep.subr.mxu0 0.0
    %1496 = vmatpush1.msra.mxu0 0.0
    %1497 = vmatprep.subr.mxu0 0.0
    %1498 = vmatpush1.msra.mxu0 0.0
    %1499 = vmatprep.subr.mxu0 0.0
    %1500 = vmatpush1.msra.mxu0 0.0
    %1501 = vmatprep.subr.mxu0 0.0
    %1502 = vmatpush1.msra.mxu0 0.0
    %1503 = vmatprep.subr.mxu0 0.0
    %1504 = vmatpush1.msra.mxu0 0.0
    %1505 = vmatprep.subr.mxu0 0.0
    %1506 = vmatpush1.msra.mxu0 0.0
    %1507 = vmatprep.subr.mxu0 0.0
    %1508 = vmatpush1.msra.mxu0 0.0
    %1509 = vmatprep.subr.mxu0 0.0
    %1510 = vmatpush1.msra.mxu0 0.0
    %1511 = vmatprep.subr.mxu0 0.0
    %1512 = vmatpush1.msra.mxu0 0.0
    %1513 = vmatprep.subr.mxu0 0.0
    %1514 = vmatpush1.msra.mxu0 0.0
    %1515 = vmatprep.mubr.f32.mxu0 0.0
    %v1516 = vand.u32 %v56, 4294901760
    %1517 = vmatmul.mubr.f32.gmra.mrb[0].mxu0 %v1516
    %v1518 = vpop.f32.mrb[0].mxu0
    %v1519 = vadd.f32 %v1188, %v1518
    %v1520 = vpop.f32.mrb[0].mxu0
    %1521 = vmatprep.mubr.f32.mxu0 0.0
    %v1522 = vand.u32 %v59, 4294901760
    %1523 = vmatmul.mubr.f32.gmra.mrb[0].mxu0 %v1522
    %v1524 = vpop.f32.mrb[0].mxu0
    %v1525 = vadd.f32 %v1196, %v1524
    %v1526 = vpop.f32.mrb[0].mxu0
    %1527 = vmatprep.mubr.f32.mxu0 0.0
    %v1528 = vand.u32 %v62, 4294901760
    %1529 = vmatmul.mubr.f32.gmra.mrb[0].mxu0 %v1528
    %v1530 = vpop.f32.mrb[0].mxu0
    %v1531 = vadd.f32 %v1204, %v1530
    %v1532 = vpop.f32.mrb[0].mxu0
    %1533 = vmatprep.mubr.f32.mxu0 0.0
    %v1534 = vand.u32 %v65, 4294901760
    %1535 = vmatmul.mubr.f32.gmra.mrb[0].mxu0 %v1534
    %v1536 = vpop.f32.mrb[0].mxu0
    %v1537 = vadd.f32 %v1212, %v1536
    %v1538 = vpop.f32.mrb[0].mxu0
    %1539 = vmatprep.mubr.f32.mxu0 0.0
    %v1540 = vand.u32 %v68, 4294901760
    %1541 = vmatmul.mubr.f32.gmra.mrb[0].mxu0 %v1540
    %v1542 = vpop.f32.mrb[0].mxu0
    %v1543 = vadd.f32 %v1220, %v1542
    %v1544 = vpop.f32.mrb[0].mxu0
    %1545 = vmatprep.mubr.f32.mxu0 0.0
    %v1546 = vand.u32 %v71, 4294901760
    %1547 = vmatmul.mubr.f32.gmra.mrb[0].mxu0 %v1546
    %v1548 = vpop.f32.mrb[0].mxu0
    %v1549 = vadd.f32 %v1228, %v1548
    %v1550 = vpop.f32.mrb[0].mxu0
    %1551 = vmatprep.mubr.f32.mxu0 0.0
    %v1552 = vand.u32 %v74, 4294901760
    %1553 = vmatmul.mubr.f32.gmra.mrb[0].mxu0 %v1552
    %v1554 = vpop.f32.mrb[0].mxu0
    %v1555 = vadd.f32 %v1236, %v1554
    %v1556 = vpop.f32.mrb[0].mxu0
    %1557 = vmatprep.mubr.f32.mxu0 0.0
    %v1558 = vand.u32 %v77, 4294901760
    %1559 = vmatmul.mubr.f32.gmra.mrb[0].mxu0 %v1558
    %v1560 = vpop.f32.mrb[0].mxu0
    %v1561 = vadd.f32 %v1244, %v1560
    %v1562 = vpop.f32.mrb[0].mxu0
    %1563 = vmatprep.mubr.f32.mxu0 0.0
    %v1564 = vand.u32 %v80, 4294901760
    %1565 = vmatmul.mubr.f32.gmra.mrb[0].mxu0 %v1564
    %v1566 = vpop.f32.mrb[0].mxu0
    %v1567 = vadd.f32 %v1252, %v1566
    %v1568 = vpop.f32.mrb[0].mxu0
    %1569 = vmatprep.mubr.f32.mxu0 0.0
    %v1570 = vand.u32 %v83, 4294901760
    %1571 = vmatmul.mubr.f32.gmra.mrb[0].mxu0 %v1570
    %v1572 = vpop.f32.mrb[0].mxu0
    %v1573 = vadd.f32 %v1260, %v1572
    %v1574 = vpop.f32.mrb[0].mxu0
    %1575 = vmatprep.mubr.f32.mxu0 0.0
    %v1576 = vand.u32 %v86, 4294901760
    %1577 = vmatmul.mubr.f32.gmra.mrb[0].mxu0 %v1576
    %v1578 = vpop.f32.mrb[0].mxu0
    %v1579 = vadd.f32 %v1268, %v1578
    %v1580 = vpop.f32.mrb[0].mxu0
    %1581 = vmatprep.mubr.f32.mxu0 0.0
    %v1582 = vand.u32 %v89, 4294901760
    %1583 = vmatmul.mubr.f32.gmra.mrb[0].mxu0 %v1582
    %v1584 = vpop.f32.mrb[0].mxu0
    %v1585 = vadd.f32 %v1276, %v1584
    %v1586 = vpop.f32.mrb[0].mxu0
    %1587 = vmatprep.mubr.f32.mxu0 0.0
    %v1588 = vand.u32 %v92, 4294901760
    %1589 = vmatmul.mubr.f32.gmra.mrb[0].mxu0 %v1588
    %v1590 = vpop.f32.mrb[0].mxu0
    %v1591 = vadd.f32 %v1284, %v1590
    %v1592 = vpop.f32.mrb[0].mxu0
    %1593 = vmatprep.mubr.f32.mxu0 0.0
    %v1594 = vand.u32 %v95, 4294901760
    %1595 = vmatmul.mubr.f32.gmra.mrb[0].mxu0 %v1594
    %v1596 = vpop.f32.mrb[0].mxu0
    %v1597 = vadd.f32 %v1292, %v1596
    %v1598 = vpop.f32.mrb[0].mxu0
    %1599 = vmatprep.mubr.f32.mxu0 0.0
    %v1600 = vand.u32 %v98, 4294901760
    %1601 = vmatmul.mubr.f32.gmra.mrb[0].mxu0 %v1600
    %v1602 = vpop.f32.mrb[0].mxu0
    %v1603 = vadd.f32 %v1300, %v1602
    %v1604 = vpop.f32.mrb[0].mxu0
    %1605 = vmatprep.mubr.f32.mxu0 0.0
    %v1606 = vand.u32 %v101, 4294901760
    %1607 = vmatmul.mubr.f32.gmra.mrb[0].mxu0 %v1606
    %v1608 = vpop.f32.mrb[0].mxu0
    %v1609 = vadd.f32 %v1308, %v1608
    %v1610 = vpop.f32.mrb[0].mxu0
    %1611 = vmatprep.mubr.f32.mxu0 0.0
    %v1612 = vand.u32 %v104, 4294901760
    %1613 = vmatmul.mubr.f32.gmra.mrb[0].mxu0 %v1612
    %v1614 = vpop.f32.mrb[0].mxu0
    %v1615 = vadd.f32 %v1316, %v1614
    %v1616 = vpop.f32.mrb[0].mxu0
    %1617 = vmatprep.mubr.f32.mxu0 0.0
    %v1618 = vand.u32 %v107, 4294901760
    %1619 = vmatmul.mubr.f32.gmra.mrb[0].mxu0 %v1618
    %v1620 = vpop.f32.mrb[0].mxu0
    %v1621 = vadd.f32 %v1324, %v1620
    %v1622 = vpop.f32.mrb[0].mxu0
    %1623 = vmatprep.mubr.f32.mxu0 0.0
    %v1624 = vand.u32 %v110, 4294901760
    %1625 = vmatmul.mubr.f32.gmra.mrb[0].mxu0 %v1624
    %v1626 = vpop.f32.mrb[0].mxu0
    %v1627 = vadd.f32 %v1332, %v1626
    %v1628 = vpop.f32.mrb[0].mxu0
    %1629 = vmatprep.mubr.f32.mxu0 0.0
    %v1630 = vand.u32 %v113, 4294901760
    %1631 = vmatmul.mubr.f32.gmra.mrb[0].mxu0 %v1630
    %v1632 = vpop.f32.mrb[0].mxu0
    %v1633 = vadd.f32 %v1340, %v1632
    %v1634 = vpop.f32.mrb[0].mxu0
    %1635 = vmatprep.mubr.f32.mxu0 0.0
    %v1636 = vand.u32 %v116, 4294901760
    %1637 = vmatmul.mubr.f32.gmra.mrb[0].mxu0 %v1636
    %v1638 = vpop.f32.mrb[0].mxu0
    %v1639 = vadd.f32 %v1348, %v1638
    %v1640 = vpop.f32.mrb[0].mxu0
    %1641 = vmatprep.mubr.f32.mxu0 0.0
    %v1642 = vand.u32 %v119, 4294901760
    %1643 = vmatmul.mubr.f32.gmra.mrb[0].mxu0 %v1642
    %v1644 = vpop.f32.mrb[0].mxu0
    %v1645 = vadd.f32 %v1356, %v1644
    %v1646 = vpop.f32.mrb[0].mxu0
    %1647 = vmatprep.mubr.f32.mxu0 0.0
    %v1648 = vand.u32 %v122, 4294901760
    %1649 = vmatmul.mubr.f32.gmra.mrb[0].mxu0 %v1648
    %v1650 = vpop.f32.mrb[0].mxu0
    %v1651 = vadd.f32 %v1364, %v1650
    %v1652 = vpop.f32.mrb[0].mxu0
    %1653 = vmatprep.mubr.f32.mxu0 0.0
    %v1654 = vand.u32 %v125, 4294901760
    %1655 = vmatmul.mubr.f32.gmra.mrb[0].mxu0 %v1654
    %v1656 = vpop.f32.mrb[0].mxu0
    %v1657 = vadd.f32 %v1372, %v1656
    %v1658 = vpop.f32.mrb[0].mxu0
    %1659 = vmatprep.mubr.f32.mxu0 0.0
    %v1660 = vand.u32 %v128, 4294901760
    %1661 = vmatmul.mubr.f32.gmra.mrb[0].mxu0 %v1660
    %v1662 = vpop.f32.mrb[0].mxu0
    %v1663 = vadd.f32 %v1380, %v1662
    %v1664 = vpop.f32.mrb[0].mxu0
    %1665 = vmatprep.mubr.f32.mxu0 0.0
    %v1666 = vand.u32 %v131, 4294901760
    %1667 = vmatmul.mubr.f32.gmra.mrb[0].mxu0 %v1666
    %v1668 = vpop.f32.mrb[0].mxu0
    %v1669 = vadd.f32 %v1388, %v1668
    %v1670 = vpop.f32.mrb[0].mxu0
    %1671 = vmatprep.mubr.f32.mxu0 0.0
    %v1672 = vand.u32 %v134, 4294901760
    %1673 = vmatmul.mubr.f32.gmra.mrb[0].mxu0 %v1672
    %v1674 = vpop.f32.mrb[0].mxu0
    %v1675 = vadd.f32 %v1396, %v1674
    %v1676 = vpop.f32.mrb[0].mxu0
    %1677 = vmatprep.mubr.f32.mxu0 0.0
    %v1678 = vand.u32 %v137, 4294901760
    %1679 = vmatmul.mubr.f32.gmra.mrb[0].mxu0 %v1678
    %v1680 = vpop.f32.mrb[0].mxu0
    %v1681 = vadd.f32 %v1404, %v1680
    %v1682 = vpop.f32.mrb[0].mxu0
    %1683 = vmatprep.mubr.f32.mxu0 0.0
    %v1684 = vand.u32 %v140, 4294901760
    %1685 = vmatmul.mubr.f32.gmra.mrb[0].mxu0 %v1684
    %v1686 = vpop.f32.mrb[0].mxu0
    %v1687 = vadd.f32 %v1412, %v1686
    %v1688 = vpop.f32.mrb[0].mxu0
    %1689 = vmatprep.mubr.f32.mxu0 0.0
    %v1690 = vand.u32 %v143, 4294901760
    %1691 = vmatmul.mubr.f32.gmra.mrb[0].mxu0 %v1690
    %v1692 = vpop.f32.mrb[0].mxu0
    %v1693 = vadd.f32 %v1420, %v1692
    %v1694 = vpop.f32.mrb[0].mxu0
    %1695 = vmatprep.mubr.f32.mxu0 0.0
    %v1696 = vand.u32 %v146, 4294901760
    %1697 = vmatmul.mubr.f32.gmra.mrb[0].mxu0 %v1696
    %v1698 = vpop.f32.mrb[0].mxu0
    %v1699 = vadd.f32 %v1428, %v1698
    %v1700 = vpop.f32.mrb[0].mxu0
    %1701 = vmatprep.mubr.f32.mxu0 0.0
    %v1702 = vand.u32 %v149, 4294901760
    %1703 = vmatmul.mubr.f32.gmra.mrb[0].mxu0 %v1702
    %v1704 = vpop.f32.mrb[0].mxu0
    %v1705 = vadd.f32 %v1436, %v1704
    %v1706 = vpop.f32.mrb[0].mxu0
    %1707 = vdwg.mxu0
    %1708 = vmatprep.subr.mxu0 0.0
    %v1709 = vand.u32 %v50, 4294901760
    %1710 = vmatpush1.msra.mxu0 %v1709
    %1711 = vmatprep.subr.mxu0 0.0
    %v1712 = vand.u32 %v51, 4294901760
    %1713 = vmatpush1.msra.mxu0 %v1712
    %1714 = vmatprep.subr.mxu0 0.0
    %v1715 = vand.u32 %v52, 4294901760
    %1716 = vmatpush1.msra.mxu0 %v1715
    %1717 = vmatprep.subr.mxu0 0.0
    %v1718 = vand.u32 %v53, 4294901760
    %1719 = vmatpush1.msra.mxu0 %v1718
    %1720 = vmatprep.subr.mxu0 0.0
    %1721 = vmatpush1.msra.mxu0 0.0
    %1722 = vmatprep.subr.mxu0 0.0
    %1723 = vmatpush1.msra.mxu0 0.0
    %1724 = vmatprep.subr.mxu0 0.0
    %1725 = vmatpush1.msra.mxu0 0.0
    %1726 = vmatprep.subr.mxu0 0.0
    %1727 = vmatpush1.msra.mxu0 0.0
    %1728 = vmatprep.subr.mxu0 0.0
    %1729 = vmatpush1.msra.mxu0 0.0
    %1730 = vmatprep.subr.mxu0 0.0
    %1731 = vmatpush1.msra.mxu0 0.0
    %1732 = vmatprep.subr.mxu0 0.0
    %1733 = vmatpush1.msra.mxu0 0.0
    %1734 = vmatprep.subr.mxu0 0.0
    %1735 = vmatpush1.msra.mxu0 0.0
    %1736 = vmatprep.subr.mxu0 0.0
    %1737 = vmatpush1.msra.mxu0 0.0
    %1738 = vmatprep.subr.mxu0 0.0
    %1739 = vmatpush1.msra.mxu0 0.0
    %1740 = vmatprep.subr.mxu0 0.0
    %1741 = vmatpush1.msra.mxu0 0.0
    %1742 = vmatprep.subr.mxu0 0.0
    %1743 = vmatpush1.msra.mxu0 0.0
    %1744 = vmatprep.subr.mxu0 0.0
    %1745 = vmatpush1.msra.mxu0 0.0
    %1746 = vmatprep.subr.mxu0 0.0
    %1747 = vmatpush1.msra.mxu0 0.0
    %1748 = vmatprep.subr.mxu0 0.0
    %1749 = vmatpush1.msra.mxu0 0.0
    %1750 = vmatprep.subr.mxu0 0.0
    %1751 = vmatpush1.msra.mxu0 0.0
    %1752 = vmatprep.subr.mxu0 0.0
    %1753 = vmatpush1.msra.mxu0 0.0
    %1754 = vmatprep.subr.mxu0 0.0
    %1755 = vmatpush1.msra.mxu0 0.0
    %1756 = vmatprep.subr.mxu0 0.0
    %1757 = vmatpush1.msra.mxu0 0.0
    %1758 = vmatprep.subr.mxu0 0.0
    %1759 = vmatpush1.msra.mxu0 0.0
    %1760 = vmatprep.subr.mxu0 0.0
    %1761 = vmatpush1.msra.mxu0 0.0
    %1762 = vmatprep.subr.mxu0 0.0
    %1763 = vmatpush1.msra.mxu0 0.0
    %1764 = vmatprep.subr.mxu0 0.0
    %1765 = vmatpush1.msra.mxu0 0.0
    %1766 = vmatprep.subr.mxu0 0.0
    %1767 = vmatpush1.msra.mxu0 0.0
    %1768 = vmatprep.subr.mxu0 0.0
    %1769 = vmatpush1.msra.mxu0 0.0
    %1770 = vmatprep.subr.mxu0 0.0
    %1771 = vmatpush1.msra.mxu0 0.0
    %1772 = vmatprep.subr.mxu0 0.0
    %1773 = vmatpush1.msra.mxu0 0.0
    %1774 = vmatprep.subr.mxu0 0.0
    %1775 = vmatpush1.msra.mxu0 0.0
    %1776 = vmatprep.mubr.f32.mxu0 0.0
    %v1777 = vand.u32 %v56, 4294901760
    %1778 = vmatmul.mubr.f32.gmra.mrb[0].mxu0 %v1777
    %v1779 = vpop.f32.mrb[0].mxu0
    %v1780 = vadd.f32 %v1519, %v1779
    %v1781 = vpop.f32.mrb[0].mxu0
    %1782 = vmatprep.mubr.f32.mxu0 0.0
    %v1783 = vand.u32 %v59, 4294901760
    %1784 = vmatmul.mubr.f32.gmra.mrb[0].mxu0 %v1783
    %v1785 = vpop.f32.mrb[0].mxu0
    %v1786 = vadd.f32 %v1525, %v1785
    %v1787 = vpop.f32.mrb[0].mxu0
    %1788 = vmatprep.mubr.f32.mxu0 0.0
    %v1789 = vand.u32 %v62, 4294901760
    %1790 = vmatmul.mubr.f32.gmra.mrb[0].mxu0 %v1789
    %v1791 = vpop.f32.mrb[0].mxu0
    %v1792 = vadd.f32 %v1531, %v1791
    %v1793 = vpop.f32.mrb[0].mxu0
    %1794 = vmatprep.mubr.f32.mxu0 0.0
    %v1795 = vand.u32 %v65, 4294901760
    %1796 = vmatmul.mubr.f32.gmra.mrb[0].mxu0 %v1795
    %v1797 = vpop.f32.mrb[0].mxu0
    %v1798 = vadd.f32 %v1537, %v1797
    %v1799 = vpop.f32.mrb[0].mxu0
    %1800 = vmatprep.mubr.f32.mxu0 0.0
    %v1801 = vand.u32 %v68, 4294901760
    %1802 = vmatmul.mubr.f32.gmra.mrb[0].mxu0 %v1801
    %v1803 = vpop.f32.mrb[0].mxu0
    %v1804 = vadd.f32 %v1543, %v1803
    %v1805 = vpop.f32.mrb[0].mxu0
    %1806 = vmatprep.mubr.f32.mxu0 0.0
    %v1807 = vand.u32 %v71, 4294901760
    %1808 = vmatmul.mubr.f32.gmra.mrb[0].mxu0 %v1807
    %v1809 = vpop.f32.mrb[0].mxu0
    %v1810 = vadd.f32 %v1549, %v1809
    %v1811 = vpop.f32.mrb[0].mxu0
    %1812 = vmatprep.mubr.f32.mxu0 0.0
    %v1813 = vand.u32 %v74, 4294901760
    %1814 = vmatmul.mubr.f32.gmra.mrb[0].mxu0 %v1813
    %v1815 = vpop.f32.mrb[0].mxu0
    %v1816 = vadd.f32 %v1555, %v1815
    %v1817 = vpop.f32.mrb[0].mxu0
    %1818 = vmatprep.mubr.f32.mxu0 0.0
    %v1819 = vand.u32 %v77, 4294901760
    %1820 = vmatmul.mubr.f32.gmra.mrb[0].mxu0 %v1819
    %v1821 = vpop.f32.mrb[0].mxu0
    %v1822 = vadd.f32 %v1561, %v1821
    %v1823 = vpop.f32.mrb[0].mxu0
    %1824 = vmatprep.mubr.f32.mxu0 0.0
    %v1825 = vand.u32 %v80, 4294901760
    %1826 = vmatmul.mubr.f32.gmra.mrb[0].mxu0 %v1825
    %v1827 = vpop.f32.mrb[0].mxu0
    %v1828 = vadd.f32 %v1567, %v1827
    %v1829 = vpop.f32.mrb[0].mxu0
    %1830 = vmatprep.mubr.f32.mxu0 0.0
    %v1831 = vand.u32 %v83, 4294901760
    %1832 = vmatmul.mubr.f32.gmra.mrb[0].mxu0 %v1831
    %v1833 = vpop.f32.mrb[0].mxu0
    %v1834 = vadd.f32 %v1573, %v1833
    %v1835 = vpop.f32.mrb[0].mxu0
    %1836 = vmatprep.mubr.f32.mxu0 0.0
    %v1837 = vand.u32 %v86, 4294901760
    %1838 = vmatmul.mubr.f32.gmra.mrb[0].mxu0 %v1837
    %v1839 = vpop.f32.mrb[0].mxu0
    %v1840 = vadd.f32 %v1579, %v1839
    %v1841 = vpop.f32.mrb[0].mxu0
    %1842 = vmatprep.mubr.f32.mxu0 0.0
    %v1843 = vand.u32 %v89, 4294901760
    %1844 = vmatmul.mubr.f32.gmra.mrb[0].mxu0 %v1843
    %v1845 = vpop.f32.mrb[0].mxu0
    %v1846 = vadd.f32 %v1585, %v1845
    %v1847 = vpop.f32.mrb[0].mxu0
    %1848 = vmatprep.mubr.f32.mxu0 0.0
    %v1849 = vand.u32 %v92, 4294901760
    %1850 = vmatmul.mubr.f32.gmra.mrb[0].mxu0 %v1849
    %v1851 = vpop.f32.mrb[0].mxu0
    %v1852 = vadd.f32 %v1591, %v1851
    %v1853 = vpop.f32.mrb[0].mxu0
    %1854 = vmatprep.mubr.f32.mxu0 0.0
    %v1855 = vand.u32 %v95, 4294901760
    %1856 = vmatmul.mubr.f32.gmra.mrb[0].mxu0 %v1855
    %v1857 = vpop.f32.mrb[0].mxu0
    %v1858 = vadd.f32 %v1597, %v1857
    %v1859 = vpop.f32.mrb[0].mxu0
    %1860 = vmatprep.mubr.f32.mxu0 0.0
    %v1861 = vand.u32 %v98, 4294901760
    %1862 = vmatmul.mubr.f32.gmra.mrb[0].mxu0 %v1861
    %v1863 = vpop.f32.mrb[0].mxu0
    %v1864 = vadd.f32 %v1603, %v1863
    %v1865 = vpop.f32.mrb[0].mxu0
    %1866 = vmatprep.mubr.f32.mxu0 0.0
    %v1867 = vand.u32 %v101, 4294901760
    %1868 = vmatmul.mubr.f32.gmra.mrb[0].mxu0 %v1867
    %v1869 = vpop.f32.mrb[0].mxu0
    %v1870 = vadd.f32 %v1609, %v1869
    %v1871 = vpop.f32.mrb[0].mxu0
    %1872 = vmatprep.mubr.f32.mxu0 0.0
    %v1873 = vand.u32 %v104, 4294901760
    %1874 = vmatmul.mubr.f32.gmra.mrb[0].mxu0 %v1873
    %v1875 = vpop.f32.mrb[0].mxu0
    %v1876 = vadd.f32 %v1615, %v1875
    %v1877 = vpop.f32.mrb[0].mxu0
    %1878 = vmatprep.mubr.f32.mxu0 0.0
    %v1879 = vand.u32 %v107, 4294901760
    %1880 = vmatmul.mubr.f32.gmra.mrb[0].mxu0 %v1879
    %v1881 = vpop.f32.mrb[0].mxu0
    %v1882 = vadd.f32 %v1621, %v1881
    %v1883 = vpop.f32.mrb[0].mxu0
    %1884 = vmatprep.mubr.f32.mxu0 0.0
    %v1885 = vand.u32 %v110, 4294901760
    %1886 = vmatmul.mubr.f32.gmra.mrb[0].mxu0 %v1885
    %v1887 = vpop.f32.mrb[0].mxu0
    %v1888 = vadd.f32 %v1627, %v1887
    %v1889 = vpop.f32.mrb[0].mxu0
    %1890 = vmatprep.mubr.f32.mxu0 0.0
    %v1891 = vand.u32 %v113, 4294901760
    %1892 = vmatmul.mubr.f32.gmra.mrb[0].mxu0 %v1891
    %v1893 = vpop.f32.mrb[0].mxu0
    %v1894 = vadd.f32 %v1633, %v1893
    %v1895 = vpop.f32.mrb[0].mxu0
    %1896 = vmatprep.mubr.f32.mxu0 0.0
    %v1897 = vand.u32 %v116, 4294901760
    %1898 = vmatmul.mubr.f32.gmra.mrb[0].mxu0 %v1897
    %v1899 = vpop.f32.mrb[0].mxu0
    %v1900 = vadd.f32 %v1639, %v1899
    %v1901 = vpop.f32.mrb[0].mxu0
    %1902 = vmatprep.mubr.f32.mxu0 0.0
    %v1903 = vand.u32 %v119, 4294901760
    %1904 = vmatmul.mubr.f32.gmra.mrb[0].mxu0 %v1903
    %v1905 = vpop.f32.mrb[0].mxu0
    %v1906 = vadd.f32 %v1645, %v1905
    %v1907 = vpop.f32.mrb[0].mxu0
    %1908 = vmatprep.mubr.f32.mxu0 0.0
    %v1909 = vand.u32 %v122, 4294901760
    %1910 = vmatmul.mubr.f32.gmra.mrb[0].mxu0 %v1909
    %v1911 = vpop.f32.mrb[0].mxu0
    %v1912 = vadd.f32 %v1651, %v1911
    %v1913 = vpop.f32.mrb[0].mxu0
    %1914 = vmatprep.mubr.f32.mxu0 0.0
    %v1915 = vand.u32 %v125, 4294901760
    %1916 = vmatmul.mubr.f32.gmra.mrb[0].mxu0 %v1915
    %v1917 = vpop.f32.mrb[0].mxu0
    %v1918 = vadd.f32 %v1657, %v1917
    %v1919 = vpop.f32.mrb[0].mxu0
    %1920 = vmatprep.mubr.f32.mxu0 0.0
    %v1921 = vand.u32 %v128, 4294901760
    %1922 = vmatmul.mubr.f32.gmra.mrb[0].mxu0 %v1921
    %v1923 = vpop.f32.mrb[0].mxu0
    %v1924 = vadd.f32 %v1663, %v1923
    %v1925 = vpop.f32.mrb[0].mxu0
    %1926 = vmatprep.mubr.f32.mxu0 0.0
    %v1927 = vand.u32 %v131, 4294901760
    %1928 = vmatmul.mubr.f32.gmra.mrb[0].mxu0 %v1927
    %v1929 = vpop.f32.mrb[0].mxu0
    %v1930 = vadd.f32 %v1669, %v1929
    %v1931 = vpop.f32.mrb[0].mxu0
    %1932 = vmatprep.mubr.f32.mxu0 0.0
    %v1933 = vand.u32 %v134, 4294901760
    %1934 = vmatmul.mubr.f32.gmra.mrb[0].mxu0 %v1933
    %v1935 = vpop.f32.mrb[0].mxu0
    %v1936 = vadd.f32 %v1675, %v1935
    %v1937 = vpop.f32.mrb[0].mxu0
    %1938 = vmatprep.mubr.f32.mxu0 0.0
    %v1939 = vand.u32 %v137, 4294901760
    %1940 = vmatmul.mubr.f32.gmra.mrb[0].mxu0 %v1939
    %v1941 = vpop.f32.mrb[0].mxu0
    %v1942 = vadd.f32 %v1681, %v1941
    %v1943 = vpop.f32.mrb[0].mxu0
    %1944 = vmatprep.mubr.f32.mxu0 0.0
    %v1945 = vand.u32 %v140, 4294901760
    %1946 = vmatmul.mubr.f32.gmra.mrb[0].mxu0 %v1945
    %v1947 = vpop.f32.mrb[0].mxu0
    %v1948 = vadd.f32 %v1687, %v1947
    %v1949 = vpop.f32.mrb[0].mxu0
    %1950 = vmatprep.mubr.f32.mxu0 0.0
    %v1951 = vand.u32 %v143, 4294901760
    %1952 = vmatmul.mubr.f32.gmra.mrb[0].mxu0 %v1951
    %v1953 = vpop.f32.mrb[0].mxu0
    %v1954 = vadd.f32 %v1693, %v1953
    %v1955 = vpop.f32.mrb[0].mxu0
    %1956 = vmatprep.mubr.f32.mxu0 0.0
    %v1957 = vand.u32 %v146, 4294901760
    %1958 = vmatmul.mubr.f32.gmra.mrb[0].mxu0 %v1957
    %v1959 = vpop.f32.mrb[0].mxu0
    %v1960 = vadd.f32 %v1699, %v1959
    %v1961 = vpop.f32.mrb[0].mxu0
    %1962 = vmatprep.mubr.f32.mxu0 0.0
    %v1963 = vand.u32 %v149, 4294901760
    %1964 = vmatmul.mubr.f32.gmra.mrb[0].mxu0 %v1963
    %v1965 = vpop.f32.mrb[0].mxu0
    %v1966 = vadd.f32 %v1705, %v1965
    %v1967 = vpop.f32.mrb[0].mxu0
    %1968 = vdwg.mxu0
    %v1969 = vmax.f32 %v1780, 0.0
    %v1970 = vmax.f32 %v1786, 0.0
    %v1971 = vmax.f32 %v1792, 0.0
    %v1972 = vmax.f32 %v1798, 0.0
    %v1973 = vmax.f32 %v1804, 0.0
    %v1974 = vmax.f32 %v1810, 0.0
    %v1975 = vmax.f32 %v1816, 0.0
    %v1976 = vmax.f32 %v1822, 0.0
    %v1977 = vmax.f32 %v1828, 0.0
    %v1978 = vmax.f32 %v1834, 0.0
    %v1979 = vmax.f32 %v1840, 0.0
    %v1980 = vmax.f32 %v1846, 0.0
    %v1981 = vmax.f32 %v1852, 0.0
    %v1982 = vmax.f32 %v1858, 0.0
    %v1983 = vmax.f32 %v1864, 0.0
    %v1984 = vmax.f32 %v1870, 0.0
    %v1985 = vmax.f32 %v1876, 0.0
    %v1986 = vmax.f32 %v1882, 0.0
    %v1987 = vmax.f32 %v1888, 0.0
    %v1988 = vmax.f32 %v1894, 0.0
    %v1989 = vmax.f32 %v1900, 0.0
    %v1990 = vmax.f32 %v1906, 0.0
    %v1991 = vmax.f32 %v1912, 0.0
    %v1992 = vmax.f32 %v1918, 0.0
    %v1993 = vmax.f32 %v1924, 0.0
    %v1994 = vmax.f32 %v1930, 0.0
    %v1995 = vmax.f32 %v1936, 0.0
    %v1996 = vmax.f32 %v1942, 0.0
    %v1997 = vmax.f32 %v1948, 0.0
    %v1998 = vmax.f32 %v1954, 0.0
    %v1999 = vmax.f32 %v1960, 0.0
    %v2000 = vmax.f32 %v1966, 0.0
    %v2001 = vld [vmem:[%s2] sm:$0xff]
    %v2002 = vld [vmem:[%s2 + $0x8] sm:$0xff]
    %v2003 = vld [vmem:[%s2 + $0x10] sm:$0xff]
    %v2004 = vld [vmem:[%s2 + $0x18] sm:$0xff]
    %v2005 = vld [vmem:[%s2 + $0x20] sm:$0xff]
    %v2006 = vld [vmem:[%s2 + $0x28] sm:$0xff]
    %v2007 = vld [vmem:[%s2 + $0x30] sm:$0xff]
    %v2008 = vld [vmem:[%s2 + $0x38] sm:$0xff]
    %v2009 = vld [vmem:[%s2 + $0x40] sm:$0xff]
    %v2010 = vld [vmem:[%s2 + $0x48] sm:$0xff]
    %v2011 = vld [vmem:[%s2 + $0x50] sm:$0xff]
    %v2012 = vld [vmem:[%s2 + $0x58] sm:$0xff]
    %v2013 = vld [vmem:[%s2 + $0x60] sm:$0xff]
    %v2014 = vld [vmem:[%s2 + $0x68] sm:$0xff]
    %v2015 = vld [vmem:[%s2 + $0x70] sm:$0xff]
    %v2016 = vld [vmem:[%s2 + $0x78] sm:$0xff]
    %2017 = vmatprep.subr.mxu0 0.0
    %v2018 = vand.u32 %v2001, 4294901760
    %2019 = vmatpush1.msra.mxu0 %v2018
    %2020 = vmatprep.subr.mxu0 0.0
    %v2021 = vand.u32 %v2002, 4294901760
    %2022 = vmatpush1.msra.mxu0 %v2021
    %2023 = vmatprep.subr.mxu0 0.0
    %v2024 = vand.u32 %v2003, 4294901760
    %2025 = vmatpush1.msra.mxu0 %v2024
    %2026 = vmatprep.subr.mxu0 0.0
    %v2027 = vand.u32 %v2004, 4294901760
    %2028 = vmatpush1.msra.mxu0 %v2027
    %2029 = vmatprep.subr.mxu0 0.0
    %v2030 = vand.u32 %v2005, 4294901760
    %2031 = vmatpush1.msra.mxu0 %v2030
    %2032 = vmatprep.subr.mxu0 0.0
    %v2033 = vand.u32 %v2006, 4294901760
    %2034 = vmatpush1.msra.mxu0 %v2033
    %2035 = vmatprep.subr.mxu0 0.0
    %v2036 = vand.u32 %v2007, 4294901760
    %2037 = vmatpush1.msra.mxu0 %v2036
    %2038 = vmatprep.subr.mxu0 0.0
    %v2039 = vand.u32 %v2008, 4294901760
    %2040 = vmatpush1.msra.mxu0 %v2039
    %2041 = vmatprep.subr.mxu0 0.0
    %v2042 = vand.u32 %v2009, 4294901760
    %2043 = vmatpush1.msra.mxu0 %v2042
    %2044 = vmatprep.subr.mxu0 0.0
    %v2045 = vand.u32 %v2010, 4294901760
    %2046 = vmatpush1.msra.mxu0 %v2045
    %2047 = vmatprep.subr.mxu0 0.0
    %v2048 = vand.u32 %v2011, 4294901760
    %2049 = vmatpush1.msra.mxu0 %v2048
    %2050 = vmatprep.subr.mxu0 0.0
    %v2051 = vand.u32 %v2012, 4294901760
    %2052 = vmatpush1.msra.mxu0 %v2051
    %2053 = vmatprep.subr.mxu0 0.0
    %v2054 = vand.u32 %v2013, 4294901760
    %2055 = vmatpush1.msra.mxu0 %v2054
    %2056 = vmatprep.subr.mxu0 0.0
    %v2057 = vand.u32 %v2014, 4294901760
    %2058 = vmatpush1.msra.mxu0 %v2057
    %2059 = vmatprep.subr.mxu0 0.0
    %v2060 = vand.u32 %v2015, 4294901760
    %2061 = vmatpush1.msra.mxu0 %v2060
    %2062 = vmatprep.subr.mxu0 0.0
    %v2063 = vand.u32 %v2016, 4294901760
    %2064 = vmatpush1.msra.mxu0 %v2063
    %2065 = vmatprep.subr.mxu0 0.0
    %2066 = vmatpush1.msra.mxu0 0.0
    %2067 = vmatprep.subr.mxu0 0.0
    %2068 = vmatpush1.msra.mxu0 0.0
    %2069 = vmatprep.subr.mxu0 0.0
    %2070 = vmatpush1.msra.mxu0 0.0
    %2071 = vmatprep.subr.mxu0 0.0
    %2072 = vmatpush1.msra.mxu0 0.0
    %2073 = vmatprep.subr.mxu0 0.0
    %2074 = vmatpush1.msra.mxu0 0.0
    %2075 = vmatprep.subr.mxu0 0.0
    %2076 = vmatpush1.msra.mxu0 0.0
    %2077 = vmatprep.subr.mxu0 0.0
    %2078 = vmatpush1.msra.mxu0 0.0
    %2079 = vmatprep.subr.mxu0 0.0
    %2080 = vmatpush1.msra.mxu0 0.0
    %2081 = vmatprep.subr.mxu0 0.0
    %2082 = vmatpush1.msra.mxu0 0.0
    %2083 = vmatprep.subr.mxu0 0.0
    %2084 = vmatpush1.msra.mxu0 0.0
    %2085 = vmatprep.subr.mxu0 0.0
    %2086 = vmatpush1.msra.mxu0 0.0
    %2087 = vmatprep.subr.mxu0 0.0
    %2088 = vmatpush1.msra.mxu0 0.0
    %2089 = vmatprep.subr.mxu0 0.0
    %2090 = vmatpush1.msra.mxu0 0.0
    %2091 = vmatprep.subr.mxu0 0.0
    %2092 = vmatpush1.msra.mxu0 0.0
    %2093 = vmatprep.subr.mxu0 0.0
    %2094 = vmatpush1.msra.mxu0 0.0
    %2095 = vmatprep.subr.mxu0 0.0
    %2096 = vmatpush1.msra.mxu0 0.0
    %2097 = vmatprep.mubr.f32.mxu0 0.0
    %v2098 = vand.u32 %v1969, 4294901760
    %v2099 = vsub.f32 %v1969, %v2098
    %v2100 = vand.u32 %v2099, 4294901760
    %v2101 = vsub.f32 %v2099, %v2100
    %v2102 = vand.u32 %v2101, 4294901760
    %2103 = vmatmul.mubr.f32.gmra.mrb[0].mxu0 %v2102
    %v2104 = vpop.f32.mrb[0].mxu0
    %v2105 = vadd.f32 0.0, %v2104
    %v2106 = vpop.f32.mrb[0].mxu0
    %2107 = vmatprep.mubr.f32.mxu0 0.0
    %v2108 = vand.u32 %v1970, 4294901760
    %v2109 = vsub.f32 %v1970, %v2108
    %v2110 = vand.u32 %v2109, 4294901760
    %v2111 = vsub.f32 %v2109, %v2110
    %v2112 = vand.u32 %v2111, 4294901760
    %2113 = vmatmul.mubr.f32.gmra.mrb[0].mxu0 %v2112
    %v2114 = vpop.f32.mrb[0].mxu0
    %v2115 = vadd.f32 0.0, %v2114
    %v2116 = vpop.f32.mrb[0].mxu0
    %2117 = vmatprep.mubr.f32.mxu0 0.0
    %v2118 = vand.u32 %v1971, 4294901760
    %v2119 = vsub.f32 %v1971, %v2118
    %v2120 = vand.u32 %v2119, 4294901760
    %v2121 = vsub.f32 %v2119, %v2120
    %v2122 = vand.u32 %v2121, 4294901760
    %2123 = vmatmul.mubr.f32.gmra.mrb[0].mxu0 %v2122
    %v2124 = vpop.f32.mrb[0].mxu0
    %v2125 = vadd.f32 0.0, %v2124
    %v2126 = vpop.f32.mrb[0].mxu0
    %2127 = vmatprep.mubr.f32.mxu0 0.0
    %v2128 = vand.u32 %v1972, 4294901760
    %v2129 = vsub.f32 %v1972, %v2128
    %v2130 = vand.u32 %v2129, 4294901760
    %v2131 = vsub.f32 %v2129, %v2130
    %v2132 = vand.u32 %v2131, 4294901760
    %2133 = vmatmul.mubr.f32.gmra.mrb[0].mxu0 %v2132
    %v2134 = vpop.f32.mrb[0].mxu0
    %v2135 = vadd.f32 0.0, %v2134
    %v2136 = vpop.f32.mrb[0].mxu0
    %2137 = vmatprep.mubr.f32.mxu0 0.0
    %v2138 = vand.u32 %v1973, 4294901760
    %v2139 = vsub.f32 %v1973, %v2138
    %v2140 = vand.u32 %v2139, 4294901760
    %v2141 = vsub.f32 %v2139, %v2140
    %v2142 = vand.u32 %v2141, 4294901760
    %2143 = vmatmul.mubr.f32.gmra.mrb[0].mxu0 %v2142
    %v2144 = vpop.f32.mrb[0].mxu0
    %v2145 = vadd.f32 0.0, %v2144
    %v2146 = vpop.f32.mrb[0].mxu0
    %2147 = vmatprep.mubr.f32.mxu0 0.0
    %v2148 = vand.u32 %v1974, 4294901760
    %v2149 = vsub.f32 %v1974, %v2148
    %v2150 = vand.u32 %v2149, 4294901760
    %v2151 = vsub.f32 %v2149, %v2150
    %v2152 = vand.u32 %v2151, 4294901760
    %2153 = vmatmul.mubr.f32.gmra.mrb[0].mxu0 %v2152
    %v2154 = vpop.f32.mrb[0].mxu0
    %v2155 = vadd.f32 0.0, %v2154
    %v2156 = vpop.f32.mrb[0].mxu0
    %2157 = vmatprep.mubr.f32.mxu0 0.0
    %v2158 = vand.u32 %v1975, 4294901760
    %v2159 = vsub.f32 %v1975, %v2158
    %v2160 = vand.u32 %v2159, 4294901760
    %v2161 = vsub.f32 %v2159, %v2160
    %v2162 = vand.u32 %v2161, 4294901760
    %2163 = vmatmul.mubr.f32.gmra.mrb[0].mxu0 %v2162
    %v2164 = vpop.f32.mrb[0].mxu0
    %v2165 = vadd.f32 0.0, %v2164
    %v2166 = vpop.f32.mrb[0].mxu0
    %2167 = vmatprep.mubr.f32.mxu0 0.0
    %v2168 = vand.u32 %v1976, 4294901760
    %v2169 = vsub.f32 %v1976, %v2168
    %v2170 = vand.u32 %v2169, 4294901760
    %v2171 = vsub.f32 %v2169, %v2170
    %v2172 = vand.u32 %v2171, 4294901760
    %2173 = vmatmul.mubr.f32.gmra.mrb[0].mxu0 %v2172
    %v2174 = vpop.f32.mrb[0].mxu0
    %v2175 = vadd.f32 0.0, %v2174
    %v2176 = vpop.f32.mrb[0].mxu0
    %2177 = vmatprep.mubr.f32.mxu0 0.0
    %v2178 = vand.u32 %v1977, 4294901760
    %v2179 = vsub.f32 %v1977, %v2178
    %v2180 = vand.u32 %v2179, 4294901760
    %v2181 = vsub.f32 %v2179, %v2180
    %v2182 = vand.u32 %v2181, 4294901760
    %2183 = vmatmul.mubr.f32.gmra.mrb[0].mxu0 %v2182
    %v2184 = vpop.f32.mrb[0].mxu0
    %v2185 = vadd.f32 0.0, %v2184
    %v2186 = vpop.f32.mrb[0].mxu0
    %2187 = vmatprep.mubr.f32.mxu0 0.0
    %v2188 = vand.u32 %v1978, 4294901760
    %v2189 = vsub.f32 %v1978, %v2188
    %v2190 = vand.u32 %v2189, 4294901760
    %v2191 = vsub.f32 %v2189, %v2190
    %v2192 = vand.u32 %v2191, 4294901760
    %2193 = vmatmul.mubr.f32.gmra.mrb[0].mxu0 %v2192
    %v2194 = vpop.f32.mrb[0].mxu0
    %v2195 = vadd.f32 0.0, %v2194
    %v2196 = vpop.f32.mrb[0].mxu0
    %2197 = vmatprep.mubr.f32.mxu0 0.0
    %v2198 = vand.u32 %v1979, 4294901760
    %v2199 = vsub.f32 %v1979, %v2198
    %v2200 = vand.u32 %v2199, 4294901760
    %v2201 = vsub.f32 %v2199, %v2200
    %v2202 = vand.u32 %v2201, 4294901760
    %2203 = vmatmul.mubr.f32.gmra.mrb[0].mxu0 %v2202
    %v2204 = vpop.f32.mrb[0].mxu0
    %v2205 = vadd.f32 0.0, %v2204
    %v2206 = vpop.f32.mrb[0].mxu0
    %2207 = vmatprep.mubr.f32.mxu0 0.0
    %v2208 = vand.u32 %v1980, 4294901760
    %v2209 = vsub.f32 %v1980, %v2208
    %v2210 = vand.u32 %v2209, 4294901760
    %v2211 = vsub.f32 %v2209, %v2210
    %v2212 = vand.u32 %v2211, 4294901760
    %2213 = vmatmul.mubr.f32.gmra.mrb[0].mxu0 %v2212
    %v2214 = vpop.f32.mrb[0].mxu0
    %v2215 = vadd.f32 0.0, %v2214
    %v2216 = vpop.f32.mrb[0].mxu0
    %2217 = vmatprep.mubr.f32.mxu0 0.0
    %v2218 = vand.u32 %v1981, 4294901760
    %v2219 = vsub.f32 %v1981, %v2218
    %v2220 = vand.u32 %v2219, 4294901760
    %v2221 = vsub.f32 %v2219, %v2220
    %v2222 = vand.u32 %v2221, 4294901760
    %2223 = vmatmul.mubr.f32.gmra.mrb[0].mxu0 %v2222
    %v2224 = vpop.f32.mrb[0].mxu0
    %v2225 = vadd.f32 0.0, %v2224
    %v2226 = vpop.f32.mrb[0].mxu0
    %2227 = vmatprep.mubr.f32.mxu0 0.0
    %v2228 = vand.u32 %v1982, 4294901760
    %v2229 = vsub.f32 %v1982, %v2228
    %v2230 = vand.u32 %v2229, 4294901760
    %v2231 = vsub.f32 %v2229, %v2230
    %v2232 = vand.u32 %v2231, 4294901760
    %2233 = vmatmul.mubr.f32.gmra.mrb[0].mxu0 %v2232
    %v2234 = vpop.f32.mrb[0].mxu0
    %v2235 = vadd.f32 0.0, %v2234
    %v2236 = vpop.f32.mrb[0].mxu0
    %2237 = vmatprep.mubr.f32.mxu0 0.0
    %v2238 = vand.u32 %v1983, 4294901760
    %v2239 = vsub.f32 %v1983, %v2238
    %v2240 = vand.u32 %v2239, 4294901760
    %v2241 = vsub.f32 %v2239, %v2240
    %v2242 = vand.u32 %v2241, 4294901760
    %2243 = vmatmul.mubr.f32.gmra.mrb[0].mxu0 %v2242
    %v2244 = vpop.f32.mrb[0].mxu0
    %v2245 = vadd.f32 0.0, %v2244
    %v2246 = vpop.f32.mrb[0].mxu0
    %2247 = vmatprep.mubr.f32.mxu0 0.0
    %v2248 = vand.u32 %v1984, 4294901760
    %v2249 = vsub.f32 %v1984, %v2248
    %v2250 = vand.u32 %v2249, 4294901760
    %v2251 = vsub.f32 %v2249, %v2250
    %v2252 = vand.u32 %v2251, 4294901760
    %2253 = vmatmul.mubr.f32.gmra.mrb[0].mxu0 %v2252
    %v2254 = vpop.f32.mrb[0].mxu0
    %v2255 = vadd.f32 0.0, %v2254
    %v2256 = vpop.f32.mrb[0].mxu0
    %2257 = vmatprep.mubr.f32.mxu0 0.0
    %v2258 = vand.u32 %v1985, 4294901760
    %v2259 = vsub.f32 %v1985, %v2258
    %v2260 = vand.u32 %v2259, 4294901760
    %v2261 = vsub.f32 %v2259, %v2260
    %v2262 = vand.u32 %v2261, 4294901760
    %2263 = vmatmul.mubr.f32.gmra.mrb[0].mxu0 %v2262
    %v2264 = vpop.f32.mrb[0].mxu0
    %v2265 = vadd.f32 0.0, %v2264
    %v2266 = vpop.f32.mrb[0].mxu0
    %2267 = vmatprep.mubr.f32.mxu0 0.0
    %v2268 = vand.u32 %v1986, 4294901760
    %v2269 = vsub.f32 %v1986, %v2268
    %v2270 = vand.u32 %v2269, 4294901760
    %v2271 = vsub.f32 %v2269, %v2270
    %v2272 = vand.u32 %v2271, 4294901760
    %2273 = vmatmul.mubr.f32.gmra.mrb[0].mxu0 %v2272
    %v2274 = vpop.f32.mrb[0].mxu0
    %v2275 = vadd.f32 0.0, %v2274
    %v2276 = vpop.f32.mrb[0].mxu0
    %2277 = vmatprep.mubr.f32.mxu0 0.0
    %v2278 = vand.u32 %v1987, 4294901760
    %v2279 = vsub.f32 %v1987, %v2278
    %v2280 = vand.u32 %v2279, 4294901760
    %v2281 = vsub.f32 %v2279, %v2280
    %v2282 = vand.u32 %v2281, 4294901760
    %2283 = vmatmul.mubr.f32.gmra.mrb[0].mxu0 %v2282
    %v2284 = vpop.f32.mrb[0].mxu0
    %v2285 = vadd.f32 0.0, %v2284
    %v2286 = vpop.f32.mrb[0].mxu0
    %2287 = vmatprep.mubr.f32.mxu0 0.0
    %v2288 = vand.u32 %v1988, 4294901760
    %v2289 = vsub.f32 %v1988, %v2288
    %v2290 = vand.u32 %v2289, 4294901760
    %v2291 = vsub.f32 %v2289, %v2290
    %v2292 = vand.u32 %v2291, 4294901760
    %2293 = vmatmul.mubr.f32.gmra.mrb[0].mxu0 %v2292
    %v2294 = vpop.f32.mrb[0].mxu0
    %v2295 = vadd.f32 0.0, %v2294
    %v2296 = vpop.f32.mrb[0].mxu0
    %2297 = vmatprep.mubr.f32.mxu0 0.0
    %v2298 = vand.u32 %v1989, 4294901760
    %v2299 = vsub.f32 %v1989, %v2298
    %v2300 = vand.u32 %v2299, 4294901760
    %v2301 = vsub.f32 %v2299, %v2300
    %v2302 = vand.u32 %v2301, 4294901760
    %2303 = vmatmul.mubr.f32.gmra.mrb[0].mxu0 %v2302
    %v2304 = vpop.f32.mrb[0].mxu0
    %v2305 = vadd.f32 0.0, %v2304
    %v2306 = vpop.f32.mrb[0].mxu0
    %2307 = vmatprep.mubr.f32.mxu0 0.0
    %v2308 = vand.u32 %v1990, 4294901760
    %v2309 = vsub.f32 %v1990, %v2308
    %v2310 = vand.u32 %v2309, 4294901760
    %v2311 = vsub.f32 %v2309, %v2310
    %v2312 = vand.u32 %v2311, 4294901760
    %2313 = vmatmul.mubr.f32.gmra.mrb[0].mxu0 %v2312
    %v2314 = vpop.f32.mrb[0].mxu0
    %v2315 = vadd.f32 0.0, %v2314
    %v2316 = vpop.f32.mrb[0].mxu0
    %2317 = vmatprep.mubr.f32.mxu0 0.0
    %v2318 = vand.u32 %v1991, 4294901760
    %v2319 = vsub.f32 %v1991, %v2318
    %v2320 = vand.u32 %v2319, 4294901760
    %v2321 = vsub.f32 %v2319, %v2320
    %v2322 = vand.u32 %v2321, 4294901760
    %2323 = vmatmul.mubr.f32.gmra.mrb[0].mxu0 %v2322
    %v2324 = vpop.f32.mrb[0].mxu0
    %v2325 = vadd.f32 0.0, %v2324
    %v2326 = vpop.f32.mrb[0].mxu0
    %2327 = vmatprep.mubr.f32.mxu0 0.0
    %v2328 = vand.u32 %v1992, 4294901760
    %v2329 = vsub.f32 %v1992, %v2328
    %v2330 = vand.u32 %v2329, 4294901760
    %v2331 = vsub.f32 %v2329, %v2330
    %v2332 = vand.u32 %v2331, 4294901760
    %2333 = vmatmul.mubr.f32.gmra.mrb[0].mxu0 %v2332
    %v2334 = vpop.f32.mrb[0].mxu0
    %v2335 = vadd.f32 0.0, %v2334
    %v2336 = vpop.f32.mrb[0].mxu0
    %2337 = vmatprep.mubr.f32.mxu0 0.0
    %v2338 = vand.u32 %v1993, 4294901760
    %v2339 = vsub.f32 %v1993, %v2338
    %v2340 = vand.u32 %v2339, 4294901760
    %v2341 = vsub.f32 %v2339, %v2340
    %v2342 = vand.u32 %v2341, 4294901760
    %2343 = vmatmul.mubr.f32.gmra.mrb[0].mxu0 %v2342
    %v2344 = vpop.f32.mrb[0].mxu0
    %v2345 = vadd.f32 0.0, %v2344
    %v2346 = vpop.f32.mrb[0].mxu0
    %2347 = vmatprep.mubr.f32.mxu0 0.0
    %v2348 = vand.u32 %v1994, 4294901760
    %v2349 = vsub.f32 %v1994, %v2348
    %v2350 = vand.u32 %v2349, 4294901760
    %v2351 = vsub.f32 %v2349, %v2350
    %v2352 = vand.u32 %v2351, 4294901760
    %2353 = vmatmul.mubr.f32.gmra.mrb[0].mxu0 %v2352
    %v2354 = vpop.f32.mrb[0].mxu0
    %v2355 = vadd.f32 0.0, %v2354
    %v2356 = vpop.f32.mrb[0].mxu0
    %2357 = vmatprep.mubr.f32.mxu0 0.0
    %v2358 = vand.u32 %v1995, 4294901760
    %v2359 = vsub.f32 %v1995, %v2358
    %v2360 = vand.u32 %v2359, 4294901760
    %v2361 = vsub.f32 %v2359, %v2360
    %v2362 = vand.u32 %v2361, 4294901760
    %2363 = vmatmul.mubr.f32.gmra.mrb[0].mxu0 %v2362
    %v2364 = vpop.f32.mrb[0].mxu0
    %v2365 = vadd.f32 0.0, %v2364
    %v2366 = vpop.f32.mrb[0].mxu0
    %2367 = vmatprep.mubr.f32.mxu0 0.0
    %v2368 = vand.u32 %v1996, 4294901760
    %v2369 = vsub.f32 %v1996, %v2368
    %v2370 = vand.u32 %v2369, 4294901760
    %v2371 = vsub.f32 %v2369, %v2370
    %v2372 = vand.u32 %v2371, 4294901760
    %2373 = vmatmul.mubr.f32.gmra.mrb[0].mxu0 %v2372
    %v2374 = vpop.f32.mrb[0].mxu0
    %v2375 = vadd.f32 0.0, %v2374
    %v2376 = vpop.f32.mrb[0].mxu0
    %2377 = vmatprep.mubr.f32.mxu0 0.0
    %v2378 = vand.u32 %v1997, 4294901760
    %v2379 = vsub.f32 %v1997, %v2378
    %v2380 = vand.u32 %v2379, 4294901760
    %v2381 = vsub.f32 %v2379, %v2380
    %v2382 = vand.u32 %v2381, 4294901760
    %2383 = vmatmul.mubr.f32.gmra.mrb[0].mxu0 %v2382
    %v2384 = vpop.f32.mrb[0].mxu0
    %v2385 = vadd.f32 0.0, %v2384
    %v2386 = vpop.f32.mrb[0].mxu0
    %2387 = vmatprep.mubr.f32.mxu0 0.0
    %v2388 = vand.u32 %v1998, 4294901760
    %v2389 = vsub.f32 %v1998, %v2388
    %v2390 = vand.u32 %v2389, 4294901760
    %v2391 = vsub.f32 %v2389, %v2390
    %v2392 = vand.u32 %v2391, 4294901760
    %2393 = vmatmul.mubr.f32.gmra.mrb[0].mxu0 %v2392
    %v2394 = vpop.f32.mrb[0].mxu0
    %v2395 = vadd.f32 0.0, %v2394
    %v2396 = vpop.f32.mrb[0].mxu0
    %2397 = vmatprep.mubr.f32.mxu0 0.0
    %v2398 = vand.u32 %v1999, 4294901760
    %v2399 = vsub.f32 %v1999, %v2398
    %v2400 = vand.u32 %v2399, 4294901760
    %v2401 = vsub.f32 %v2399, %v2400
    %v2402 = vand.u32 %v2401, 4294901760
    %2403 = vmatmul.mubr.f32.gmra.mrb[0].mxu0 %v2402
    %v2404 = vpop.f32.mrb[0].mxu0
    %v2405 = vadd.f32 0.0, %v2404
    %v2406 = vpop.f32.mrb[0].mxu0
    %2407 = vmatprep.mubr.f32.mxu0 0.0
    %v2408 = vand.u32 %v2000, 4294901760
    %v2409 = vsub.f32 %v2000, %v2408
    %v2410 = vand.u32 %v2409, 4294901760
    %v2411 = vsub.f32 %v2409, %v2410
    %v2412 = vand.u32 %v2411, 4294901760
    %2413 = vmatmul.mubr.f32.gmra.mrb[0].mxu0 %v2412
    %v2414 = vpop.f32.mrb[0].mxu0
    %v2415 = vadd.f32 0.0, %v2414
    %v2416 = vpop.f32.mrb[0].mxu0
    %2417 = vdwg.mxu0
    %2418 = vmatprep.subr.mxu0 0.0
    %v2419 = vand.u32 %v2001, 4294901760
    %v2420 = vsub.f32 %v2001, %v2419
    %v2421 = vand.u32 %v2420, 4294901760
    %v2422 = vsub.f32 %v2420, %v2421
    %v2423 = vand.u32 %v2422, 4294901760
    %2424 = vmatpush1.msra.mxu0 %v2423
    %2425 = vmatprep.subr.mxu0 0.0
    %v2426 = vand.u32 %v2002, 4294901760
    %v2427 = vsub.f32 %v2002, %v2426
    %v2428 = vand.u32 %v2427, 4294901760
    %v2429 = vsub.f32 %v2427, %v2428
    %v2430 = vand.u32 %v2429, 4294901760
    %2431 = vmatpush1.msra.mxu0 %v2430
    %2432 = vmatprep.subr.mxu0 0.0
    %v2433 = vand.u32 %v2003, 4294901760
    %v2434 = vsub.f32 %v2003, %v2433
    %v2435 = vand.u32 %v2434, 4294901760
    %v2436 = vsub.f32 %v2434, %v2435
    %v2437 = vand.u32 %v2436, 4294901760
    %2438 = vmatpush1.msra.mxu0 %v2437
    %2439 = vmatprep.subr.mxu0 0.0
    %v2440 = vand.u32 %v2004, 4294901760
    %v2441 = vsub.f32 %v2004, %v2440
    %v2442 = vand.u32 %v2441, 4294901760
    %v2443 = vsub.f32 %v2441, %v2442
    %v2444 = vand.u32 %v2443, 4294901760
    %2445 = vmatpush1.msra.mxu0 %v2444
    %2446 = vmatprep.subr.mxu0 0.0
    %v2447 = vand.u32 %v2005, 4294901760
    %v2448 = vsub.f32 %v2005, %v2447
    %v2449 = vand.u32 %v2448, 4294901760
    %v2450 = vsub.f32 %v2448, %v2449
    %v2451 = vand.u32 %v2450, 4294901760
    %2452 = vmatpush1.msra.mxu0 %v2451
    %2453 = vmatprep.subr.mxu0 0.0
    %v2454 = vand.u32 %v2006, 4294901760
    %v2455 = vsub.f32 %v2006, %v2454
    %v2456 = vand.u32 %v2455, 4294901760
    %v2457 = vsub.f32 %v2455, %v2456
    %v2458 = vand.u32 %v2457, 4294901760
    %2459 = vmatpush1.msra.mxu0 %v2458
    %2460 = vmatprep.subr.mxu0 0.0
    %v2461 = vand.u32 %v2007, 4294901760
    %v2462 = vsub.f32 %v2007, %v2461
    %v2463 = vand.u32 %v2462, 4294901760
    %v2464 = vsub.f32 %v2462, %v2463
    %v2465 = vand.u32 %v2464, 4294901760
    %2466 = vmatpush1.msra.mxu0 %v2465
    %2467 = vmatprep.subr.mxu0 0.0
    %v2468 = vand.u32 %v2008, 4294901760
    %v2469 = vsub.f32 %v2008, %v2468
    %v2470 = vand.u32 %v2469, 4294901760
    %v2471 = vsub.f32 %v2469, %v2470
    %v2472 = vand.u32 %v2471, 4294901760
    %2473 = vmatpush1.msra.mxu0 %v2472
    %2474 = vmatprep.subr.mxu0 0.0
    %v2475 = vand.u32 %v2009, 4294901760
    %v2476 = vsub.f32 %v2009, %v2475
    %v2477 = vand.u32 %v2476, 4294901760
    %v2478 = vsub.f32 %v2476, %v2477
    %v2479 = vand.u32 %v2478, 4294901760
    %2480 = vmatpush1.msra.mxu0 %v2479
    %2481 = vmatprep.subr.mxu0 0.0
    %v2482 = vand.u32 %v2010, 4294901760
    %v2483 = vsub.f32 %v2010, %v2482
    %v2484 = vand.u32 %v2483, 4294901760
    %v2485 = vsub.f32 %v2483, %v2484
    %v2486 = vand.u32 %v2485, 4294901760
    %2487 = vmatpush1.msra.mxu0 %v2486
    %2488 = vmatprep.subr.mxu0 0.0
    %v2489 = vand.u32 %v2011, 4294901760
    %v2490 = vsub.f32 %v2011, %v2489
    %v2491 = vand.u32 %v2490, 4294901760
    %v2492 = vsub.f32 %v2490, %v2491
    %v2493 = vand.u32 %v2492, 4294901760
    %2494 = vmatpush1.msra.mxu0 %v2493
    %2495 = vmatprep.subr.mxu0 0.0
    %v2496 = vand.u32 %v2012, 4294901760
    %v2497 = vsub.f32 %v2012, %v2496
    %v2498 = vand.u32 %v2497, 4294901760
    %v2499 = vsub.f32 %v2497, %v2498
    %v2500 = vand.u32 %v2499, 4294901760
    %2501 = vmatpush1.msra.mxu0 %v2500
    %2502 = vmatprep.subr.mxu0 0.0
    %v2503 = vand.u32 %v2013, 4294901760
    %v2504 = vsub.f32 %v2013, %v2503
    %v2505 = vand.u32 %v2504, 4294901760
    %v2506 = vsub.f32 %v2504, %v2505
    %v2507 = vand.u32 %v2506, 4294901760
    %2508 = vmatpush1.msra.mxu0 %v2507
    %2509 = vmatprep.subr.mxu0 0.0
    %v2510 = vand.u32 %v2014, 4294901760
    %v2511 = vsub.f32 %v2014, %v2510
    %v2512 = vand.u32 %v2511, 4294901760
    %v2513 = vsub.f32 %v2511, %v2512
    %v2514 = vand.u32 %v2513, 4294901760
    %2515 = vmatpush1.msra.mxu0 %v2514
    %2516 = vmatprep.subr.mxu0 0.0
    %v2517 = vand.u32 %v2015, 4294901760
    %v2518 = vsub.f32 %v2015, %v2517
    %v2519 = vand.u32 %v2518, 4294901760
    %v2520 = vsub.f32 %v2518, %v2519
    %v2521 = vand.u32 %v2520, 4294901760
    %2522 = vmatpush1.msra.mxu0 %v2521
    %2523 = vmatprep.subr.mxu0 0.0
    %v2524 = vand.u32 %v2016, 4294901760
    %v2525 = vsub.f32 %v2016, %v2524
    %v2526 = vand.u32 %v2525, 4294901760
    %v2527 = vsub.f32 %v2525, %v2526
    %v2528 = vand.u32 %v2527, 4294901760
    %2529 = vmatpush1.msra.mxu0 %v2528
    %2530 = vmatprep.subr.mxu0 0.0
    %2531 = vmatpush1.msra.mxu0 0.0
    %2532 = vmatprep.subr.mxu0 0.0
    %2533 = vmatpush1.msra.mxu0 0.0
    %2534 = vmatprep.subr.mxu0 0.0
    %2535 = vmatpush1.msra.mxu0 0.0
    %2536 = vmatprep.subr.mxu0 0.0
    %2537 = vmatpush1.msra.mxu0 0.0
    %2538 = vmatprep.subr.mxu0 0.0
    %2539 = vmatpush1.msra.mxu0 0.0
    %2540 = vmatprep.subr.mxu0 0.0
    %2541 = vmatpush1.msra.mxu0 0.0
    %2542 = vmatprep.subr.mxu0 0.0
    %2543 = vmatpush1.msra.mxu0 0.0
    %2544 = vmatprep.subr.mxu0 0.0
    %2545 = vmatpush1.msra.mxu0 0.0
    %2546 = vmatprep.subr.mxu0 0.0
    %2547 = vmatpush1.msra.mxu0 0.0
    %2548 = vmatprep.subr.mxu0 0.0
    %2549 = vmatpush1.msra.mxu0 0.0
    %2550 = vmatprep.subr.mxu0 0.0
    %2551 = vmatpush1.msra.mxu0 0.0
    %2552 = vmatprep.subr.mxu0 0.0
    %2553 = vmatpush1.msra.mxu0 0.0
    %2554 = vmatprep.subr.mxu0 0.0
    %2555 = vmatpush1.msra.mxu0 0.0
    %2556 = vmatprep.subr.mxu0 0.0
    %2557 = vmatpush1.msra.mxu0 0.0
    %2558 = vmatprep.subr.mxu0 0.0
    %2559 = vmatpush1.msra.mxu0 0.0
    %2560 = vmatprep.subr.mxu0 0.0
    %2561 = vmatpush1.msra.mxu0 0.0
    %2562 = vmatprep.mubr.f32.mxu0 0.0
    %v2563 = vand.u32 %v1969, 4294901760
    %2564 = vmatmul.mubr.f32.gmra.mrb[0].mxu0 %v2563
    %v2565 = vpop.f32.mrb[0].mxu0
    %v2566 = vadd.f32 %v2105, %v2565
    %v2567 = vpop.f32.mrb[0].mxu0
    %2568 = vmatprep.mubr.f32.mxu0 0.0
    %v2569 = vand.u32 %v1970, 4294901760
    %2570 = vmatmul.mubr.f32.gmra.mrb[0].mxu0 %v2569
    %v2571 = vpop.f32.mrb[0].mxu0
    %v2572 = vadd.f32 %v2115, %v2571
    %v2573 = vpop.f32.mrb[0].mxu0
    %2574 = vmatprep.mubr.f32.mxu0 0.0
    %v2575 = vand.u32 %v1971, 4294901760
    %2576 = vmatmul.mubr.f32.gmra.mrb[0].mxu0 %v2575
    %v2577 = vpop.f32.mrb[0].mxu0
    %v2578 = vadd.f32 %v2125, %v2577
    %v2579 = vpop.f32.mrb[0].mxu0
    %2580 = vmatprep.mubr.f32.mxu0 0.0
    %v2581 = vand.u32 %v1972, 4294901760
    %2582 = vmatmul.mubr.f32.gmra.mrb[0].mxu0 %v2581
    %v2583 = vpop.f32.mrb[0].mxu0
    %v2584 = vadd.f32 %v2135, %v2583
    %v2585 = vpop.f32.mrb[0].mxu0
    %2586 = vmatprep.mubr.f32.mxu0 0.0
    %v2587 = vand.u32 %v1973, 4294901760
    %2588 = vmatmul.mubr.f32.gmra.mrb[0].mxu0 %v2587
    %v2589 = vpop.f32.mrb[0].mxu0
    %v2590 = vadd.f32 %v2145, %v2589
    %v2591 = vpop.f32.mrb[0].mxu0
    %2592 = vmatprep.mubr.f32.mxu0 0.0
    %v2593 = vand.u32 %v1974, 4294901760
    %2594 = vmatmul.mubr.f32.gmra.mrb[0].mxu0 %v2593
    %v2595 = vpop.f32.mrb[0].mxu0
    %v2596 = vadd.f32 %v2155, %v2595
    %v2597 = vpop.f32.mrb[0].mxu0
    %2598 = vmatprep.mubr.f32.mxu0 0.0
    %v2599 = vand.u32 %v1975, 4294901760
    %2600 = vmatmul.mubr.f32.gmra.mrb[0].mxu0 %v2599
    %v2601 = vpop.f32.mrb[0].mxu0
    %v2602 = vadd.f32 %v2165, %v2601
    %v2603 = vpop.f32.mrb[0].mxu0
    %2604 = vmatprep.mubr.f32.mxu0 0.0
    %v2605 = vand.u32 %v1976, 4294901760
    %2606 = vmatmul.mubr.f32.gmra.mrb[0].mxu0 %v2605
    %v2607 = vpop.f32.mrb[0].mxu0
    %v2608 = vadd.f32 %v2175, %v2607
    %v2609 = vpop.f32.mrb[0].mxu0
    %2610 = vmatprep.mubr.f32.mxu0 0.0
    %v2611 = vand.u32 %v1977, 4294901760
    %2612 = vmatmul.mubr.f32.gmra.mrb[0].mxu0 %v2611
    %v2613 = vpop.f32.mrb[0].mxu0
    %v2614 = vadd.f32 %v2185, %v2613
    %v2615 = vpop.f32.mrb[0].mxu0
    %2616 = vmatprep.mubr.f32.mxu0 0.0
    %v2617 = vand.u32 %v1978, 4294901760
    %2618 = vmatmul.mubr.f32.gmra.mrb[0].mxu0 %v2617
    %v2619 = vpop.f32.mrb[0].mxu0
    %v2620 = vadd.f32 %v2195, %v2619
    %v2621 = vpop.f32.mrb[0].mxu0
    %2622 = vmatprep.mubr.f32.mxu0 0.0
    %v2623 = vand.u32 %v1979, 4294901760
    %2624 = vmatmul.mubr.f32.gmra.mrb[0].mxu0 %v2623
    %v2625 = vpop.f32.mrb[0].mxu0
    %v2626 = vadd.f32 %v2205, %v2625
    %v2627 = vpop.f32.mrb[0].mxu0
    %2628 = vmatprep.mubr.f32.mxu0 0.0
    %v2629 = vand.u32 %v1980, 4294901760
    %2630 = vmatmul.mubr.f32.gmra.mrb[0].mxu0 %v2629
    %v2631 = vpop.f32.mrb[0].mxu0
    %v2632 = vadd.f32 %v2215, %v2631
    %v2633 = vpop.f32.mrb[0].mxu0
    %2634 = vmatprep.mubr.f32.mxu0 0.0
    %v2635 = vand.u32 %v1981, 4294901760
    %2636 = vmatmul.mubr.f32.gmra.mrb[0].mxu0 %v2635
    %v2637 = vpop.f32.mrb[0].mxu0
    %v2638 = vadd.f32 %v2225, %v2637
    %v2639 = vpop.f32.mrb[0].mxu0
    %2640 = vmatprep.mubr.f32.mxu0 0.0
    %v2641 = vand.u32 %v1982, 4294901760
    %2642 = vmatmul.mubr.f32.gmra.mrb[0].mxu0 %v2641
    %v2643 = vpop.f32.mrb[0].mxu0
    %v2644 = vadd.f32 %v2235, %v2643
    %v2645 = vpop.f32.mrb[0].mxu0
    %2646 = vmatprep.mubr.f32.mxu0 0.0
    %v2647 = vand.u32 %v1983, 4294901760
    %2648 = vmatmul.mubr.f32.gmra.mrb[0].mxu0 %v2647
    %v2649 = vpop.f32.mrb[0].mxu0
    %v2650 = vadd.f32 %v2245, %v2649
    %v2651 = vpop.f32.mrb[0].mxu0
    %2652 = vmatprep.mubr.f32.mxu0 0.0
    %v2653 = vand.u32 %v1984, 4294901760
    %2654 = vmatmul.mubr.f32.gmra.mrb[0].mxu0 %v2653
    %v2655 = vpop.f32.mrb[0].mxu0
    %v2656 = vadd.f32 %v2255, %v2655
    %v2657 = vpop.f32.mrb[0].mxu0
    %2658 = vmatprep.mubr.f32.mxu0 0.0
    %v2659 = vand.u32 %v1985, 4294901760
    %2660 = vmatmul.mubr.f32.gmra.mrb[0].mxu0 %v2659
    %v2661 = vpop.f32.mrb[0].mxu0
    %v2662 = vadd.f32 %v2265, %v2661
    %v2663 = vpop.f32.mrb[0].mxu0
    %2664 = vmatprep.mubr.f32.mxu0 0.0
    %v2665 = vand.u32 %v1986, 4294901760
    %2666 = vmatmul.mubr.f32.gmra.mrb[0].mxu0 %v2665
    %v2667 = vpop.f32.mrb[0].mxu0
    %v2668 = vadd.f32 %v2275, %v2667
    %v2669 = vpop.f32.mrb[0].mxu0
    %2670 = vmatprep.mubr.f32.mxu0 0.0
    %v2671 = vand.u32 %v1987, 4294901760
    %2672 = vmatmul.mubr.f32.gmra.mrb[0].mxu0 %v2671
    %v2673 = vpop.f32.mrb[0].mxu0
    %v2674 = vadd.f32 %v2285, %v2673
    %v2675 = vpop.f32.mrb[0].mxu0
    %2676 = vmatprep.mubr.f32.mxu0 0.0
    %v2677 = vand.u32 %v1988, 4294901760
    %2678 = vmatmul.mubr.f32.gmra.mrb[0].mxu0 %v2677
    %v2679 = vpop.f32.mrb[0].mxu0
    %v2680 = vadd.f32 %v2295, %v2679
    %v2681 = vpop.f32.mrb[0].mxu0
    %2682 = vmatprep.mubr.f32.mxu0 0.0
    %v2683 = vand.u32 %v1989, 4294901760
    %2684 = vmatmul.mubr.f32.gmra.mrb[0].mxu0 %v2683
    %v2685 = vpop.f32.mrb[0].mxu0
    %v2686 = vadd.f32 %v2305, %v2685
    %v2687 = vpop.f32.mrb[0].mxu0
    %2688 = vmatprep.mubr.f32.mxu0 0.0
    %v2689 = vand.u32 %v1990, 4294901760
    %2690 = vmatmul.mubr.f32.gmra.mrb[0].mxu0 %v2689
    %v2691 = vpop.f32.mrb[0].mxu0
    %v2692 = vadd.f32 %v2315, %v2691
    %v2693 = vpop.f32.mrb[0].mxu0
    %2694 = vmatprep.mubr.f32.mxu0 0.0
    %v2695 = vand.u32 %v1991, 4294901760
    %2696 = vmatmul.mubr.f32.gmra.mrb[0].mxu0 %v2695
    %v2697 = vpop.f32.mrb[0].mxu0
    %v2698 = vadd.f32 %v2325, %v2697
    %v2699 = vpop.f32.mrb[0].mxu0
    %2700 = vmatprep.mubr.f32.mxu0 0.0
    %v2701 = vand.u32 %v1992, 4294901760
    %2702 = vmatmul.mubr.f32.gmra.mrb[0].mxu0 %v2701
    %v2703 = vpop.f32.mrb[0].mxu0
    %v2704 = vadd.f32 %v2335, %v2703
    %v2705 = vpop.f32.mrb[0].mxu0
    %2706 = vmatprep.mubr.f32.mxu0 0.0
    %v2707 = vand.u32 %v1993, 4294901760
    %2708 = vmatmul.mubr.f32.gmra.mrb[0].mxu0 %v2707
    %v2709 = vpop.f32.mrb[0].mxu0
    %v2710 = vadd.f32 %v2345, %v2709
    %v2711 = vpop.f32.mrb[0].mxu0
    %2712 = vmatprep.mubr.f32.mxu0 0.0
    %v2713 = vand.u32 %v1994, 4294901760
    %2714 = vmatmul.mubr.f32.gmra.mrb[0].mxu0 %v2713
    %v2715 = vpop.f32.mrb[0].mxu0
    %v2716 = vadd.f32 %v2355, %v2715
    %v2717 = vpop.f32.mrb[0].mxu0
    %2718 = vmatprep.mubr.f32.mxu0 0.0
    %v2719 = vand.u32 %v1995, 4294901760
    %2720 = vmatmul.mubr.f32.gmra.mrb[0].mxu0 %v2719
    %v2721 = vpop.f32.mrb[0].mxu0
    %v2722 = vadd.f32 %v2365, %v2721
    %v2723 = vpop.f32.mrb[0].mxu0
    %2724 = vmatprep.mubr.f32.mxu0 0.0
    %v2725 = vand.u32 %v1996, 4294901760
    %2726 = vmatmul.mubr.f32.gmra.mrb[0].mxu0 %v2725
    %v2727 = vpop.f32.mrb[0].mxu0
    %v2728 = vadd.f32 %v2375, %v2727
    %v2729 = vpop.f32.mrb[0].mxu0
    %2730 = vmatprep.mubr.f32.mxu0 0.0
    %v2731 = vand.u32 %v1997, 4294901760
    %2732 = vmatmul.mubr.f32.gmra.mrb[0].mxu0 %v2731
    %v2733 = vpop.f32.mrb[0].mxu0
    %v2734 = vadd.f32 %v2385, %v2733
    %v2735 = vpop.f32.mrb[0].mxu0
    %2736 = vmatprep.mubr.f32.mxu0 0.0
    %v2737 = vand.u32 %v1998, 4294901760
    %2738 = vmatmul.mubr.f32.gmra.mrb[0].mxu0 %v2737
    %v2739 = vpop.f32.mrb[0].mxu0
    %v2740 = vadd.f32 %v2395, %v2739
    %v2741 = vpop.f32.mrb[0].mxu0
    %2742 = vmatprep.mubr.f32.mxu0 0.0
    %v2743 = vand.u32 %v1999, 4294901760
    %2744 = vmatmul.mubr.f32.gmra.mrb[0].mxu0 %v2743
    %v2745 = vpop.f32.mrb[0].mxu0
    %v2746 = vadd.f32 %v2405, %v2745
    %v2747 = vpop.f32.mrb[0].mxu0
    %2748 = vmatprep.mubr.f32.mxu0 0.0
    %v2749 = vand.u32 %v2000, 4294901760
    %2750 = vmatmul.mubr.f32.gmra.mrb[0].mxu0 %v2749
    %v2751 = vpop.f32.mrb[0].mxu0
    %v2752 = vadd.f32 %v2415, %v2751
    %v2753 = vpop.f32.mrb[0].mxu0
    %2754 = vdwg.mxu0
    %2755 = vmatprep.subr.mxu0 0.0
    %v2756 = vand.u32 %v2001, 4294901760
    %v2757 = vsub.f32 %v2001, %v2756
    %2758 = vmatpush1.msra.mxu0 %v2757
    %2759 = vmatprep.subr.mxu0 0.0
    %v2760 = vand.u32 %v2002, 4294901760
    %v2761 = vsub.f32 %v2002, %v2760
    %2762 = vmatpush1.msra.mxu0 %v2761
    %2763 = vmatprep.subr.mxu0 0.0
    %v2764 = vand.u32 %v2003, 4294901760
    %v2765 = vsub.f32 %v2003, %v2764
    %2766 = vmatpush1.msra.mxu0 %v2765
    %2767 = vmatprep.subr.mxu0 0.0
    %v2768 = vand.u32 %v2004, 4294901760
    %v2769 = vsub.f32 %v2004, %v2768
    %2770 = vmatpush1.msra.mxu0 %v2769
    %2771 = vmatprep.subr.mxu0 0.0
    %v2772 = vand.u32 %v2005, 4294901760
    %v2773 = vsub.f32 %v2005, %v2772
    %2774 = vmatpush1.msra.mxu0 %v2773
    %2775 = vmatprep.subr.mxu0 0.0
    %v2776 = vand.u32 %v2006, 4294901760
    %v2777 = vsub.f32 %v2006, %v2776
    %2778 = vmatpush1.msra.mxu0 %v2777
    %2779 = vmatprep.subr.mxu0 0.0
    %v2780 = vand.u32 %v2007, 4294901760
    %v2781 = vsub.f32 %v2007, %v2780
    %2782 = vmatpush1.msra.mxu0 %v2781
    %2783 = vmatprep.subr.mxu0 0.0
    %v2784 = vand.u32 %v2008, 4294901760
    %v2785 = vsub.f32 %v2008, %v2784
    %2786 = vmatpush1.msra.mxu0 %v2785
    %2787 = vmatprep.subr.mxu0 0.0
    %v2788 = vand.u32 %v2009, 4294901760
    %v2789 = vsub.f32 %v2009, %v2788
    %2790 = vmatpush1.msra.mxu0 %v2789
    %2791 = vmatprep.subr.mxu0 0.0
    %v2792 = vand.u32 %v2010, 4294901760
    %v2793 = vsub.f32 %v2010, %v2792
    %2794 = vmatpush1.msra.mxu0 %v2793
    %2795 = vmatprep.subr.mxu0 0.0
    %v2796 = vand.u32 %v2011, 4294901760
    %v2797 = vsub.f32 %v2011, %v2796
    %2798 = vmatpush1.msra.mxu0 %v2797
    %2799 = vmatprep.subr.mxu0 0.0
    %v2800 = vand.u32 %v2012, 4294901760
    %v2801 = vsub.f32 %v2012, %v2800
    %2802 = vmatpush1.msra.mxu0 %v2801
    %2803 = vmatprep.subr.mxu0 0.0
    %v2804 = vand.u32 %v2013, 4294901760
    %v2805 = vsub.f32 %v2013, %v2804
    %2806 = vmatpush1.msra.mxu0 %v2805
    %2807 = vmatprep.subr.mxu0 0.0
    %v2808 = vand.u32 %v2014, 4294901760
    %v2809 = vsub.f32 %v2014, %v2808
    %2810 = vmatpush1.msra.mxu0 %v2809
    %2811 = vmatprep.subr.mxu0 0.0
    %v2812 = vand.u32 %v2015, 4294901760
    %v2813 = vsub.f32 %v2015, %v2812
    %2814 = vmatpush1.msra.mxu0 %v2813
    %2815 = vmatprep.subr.mxu0 0.0
    %v2816 = vand.u32 %v2016, 4294901760
    %v2817 = vsub.f32 %v2016, %v2816
    %2818 = vmatpush1.msra.mxu0 %v2817
    %2819 = vmatprep.subr.mxu0 0.0
    %2820 = vmatpush1.msra.mxu0 0.0
    %2821 = vmatprep.subr.mxu0 0.0
    %2822 = vmatpush1.msra.mxu0 0.0
    %2823 = vmatprep.subr.mxu0 0.0
    %2824 = vmatpush1.msra.mxu0 0.0
    %2825 = vmatprep.subr.mxu0 0.0
    %2826 = vmatpush1.msra.mxu0 0.0
    %2827 = vmatprep.subr.mxu0 0.0
    %2828 = vmatpush1.msra.mxu0 0.0
    %2829 = vmatprep.subr.mxu0 0.0
    %2830 = vmatpush1.msra.mxu0 0.0
    %2831 = vmatprep.subr.mxu0 0.0
    %2832 = vmatpush1.msra.mxu0 0.0
    %2833 = vmatprep.subr.mxu0 0.0
    %2834 = vmatpush1.msra.mxu0 0.0
    %2835 = vmatprep.subr.mxu0 0.0
    %2836 = vmatpush1.msra.mxu0 0.0
    %2837 = vmatprep.subr.mxu0 0.0
    %2838 = vmatpush1.msra.mxu0 0.0
    %2839 = vmatprep.subr.mxu0 0.0
    %2840 = vmatpush1.msra.mxu0 0.0
    %2841 = vmatprep.subr.mxu0 0.0
    %2842 = vmatpush1.msra.mxu0 0.0
    %2843 = vmatprep.subr.mxu0 0.0
    %2844 = vmatpush1.msra.mxu0 0.0
    %2845 = vmatprep.subr.mxu0 0.0
    %2846 = vmatpush1.msra.mxu0 0.0
    %2847 = vmatprep.subr.mxu0 0.0
    %2848 = vmatpush1.msra.mxu0 0.0
    %2849 = vmatprep.subr.mxu0 0.0
    %2850 = vmatpush1.msra.mxu0 0.0
    %2851 = vmatprep.mubr.f32.mxu0 0.0
    %v2852 = vand.u32 %v1969, 4294901760
    %v2853 = vsub.f32 %v1969, %v2852
    %2854 = vmatmul.mubr.f32.gmra.mrb[0].mxu0 %v2853
    %v2855 = vpop.f32.mrb[0].mxu0
    %v2856 = vadd.f32 %v2566, %v2855
    %v2857 = vpop.f32.mrb[0].mxu0
    %2858 = vmatprep.mubr.f32.mxu0 0.0
    %v2859 = vand.u32 %v1970, 4294901760
    %v2860 = vsub.f32 %v1970, %v2859
    %2861 = vmatmul.mubr.f32.gmra.mrb[0].mxu0 %v2860
    %v2862 = vpop.f32.mrb[0].mxu0
    %v2863 = vadd.f32 %v2572, %v2862
    %v2864 = vpop.f32.mrb[0].mxu0
    %2865 = vmatprep.mubr.f32.mxu0 0.0
    %v2866 = vand.u32 %v1971, 4294901760
    %v2867 = vsub.f32 %v1971, %v2866
    %2868 = vmatmul.mubr.f32.gmra.mrb[0].mxu0 %v2867
    %v2869 = vpop.f32.mrb[0].mxu0
    %v2870 = vadd.f32 %v2578, %v2869
    %v2871 = vpop.f32.mrb[0].mxu0
    %2872 = vmatprep.mubr.f32.mxu0 0.0
    %v2873 = vand.u32 %v1972, 4294901760
    %v2874 = vsub.f32 %v1972, %v2873
    %2875 = vmatmul.mubr.f32.gmra.mrb[0].mxu0 %v2874
    %v2876 = vpop.f32.mrb[0].mxu0
    %v2877 = vadd.f32 %v2584, %v2876
    %v2878 = vpop.f32.mrb[0].mxu0
    %2879 = vmatprep.mubr.f32.mxu0 0.0
    %v2880 = vand.u32 %v1973, 4294901760
    %v2881 = vsub.f32 %v1973, %v2880
    %2882 = vmatmul.mubr.f32.gmra.mrb[0].mxu0 %v2881
    %v2883 = vpop.f32.mrb[0].mxu0
    %v2884 = vadd.f32 %v2590, %v2883
    %v2885 = vpop.f32.mrb[0].mxu0
    %2886 = vmatprep.mubr.f32.mxu0 0.0
    %v2887 = vand.u32 %v1974, 4294901760
    %v2888 = vsub.f32 %v1974, %v2887
    %2889 = vmatmul.mubr.f32.gmra.mrb[0].mxu0 %v2888
    %v2890 = vpop.f32.mrb[0].mxu0
    %v2891 = vadd.f32 %v2596, %v2890
    %v2892 = vpop.f32.mrb[0].mxu0
    %2893 = vmatprep.mubr.f32.mxu0 0.0
    %v2894 = vand.u32 %v1975, 4294901760
    %v2895 = vsub.f32 %v1975, %v2894
    %2896 = vmatmul.mubr.f32.gmra.mrb[0].mxu0 %v2895
    %v2897 = vpop.f32.mrb[0].mxu0
    %v2898 = vadd.f32 %v2602, %v2897
    %v2899 = vpop.f32.mrb[0].mxu0
    %2900 = vmatprep.mubr.f32.mxu0 0.0
    %v2901 = vand.u32 %v1976, 4294901760
    %v2902 = vsub.f32 %v1976, %v2901
    %2903 = vmatmul.mubr.f32.gmra.mrb[0].mxu0 %v2902
    %v2904 = vpop.f32.mrb[0].mxu0
    %v2905 = vadd.f32 %v2608, %v2904
    %v2906 = vpop.f32.mrb[0].mxu0
    %2907 = vmatprep.mubr.f32.mxu0 0.0
    %v2908 = vand.u32 %v1977, 4294901760
    %v2909 = vsub.f32 %v1977, %v2908
    %2910 = vmatmul.mubr.f32.gmra.mrb[0].mxu0 %v2909
    %v2911 = vpop.f32.mrb[0].mxu0
    %v2912 = vadd.f32 %v2614, %v2911
    %v2913 = vpop.f32.mrb[0].mxu0
    %2914 = vmatprep.mubr.f32.mxu0 0.0
    %v2915 = vand.u32 %v1978, 4294901760
    %v2916 = vsub.f32 %v1978, %v2915
    %2917 = vmatmul.mubr.f32.gmra.mrb[0].mxu0 %v2916
    %v2918 = vpop.f32.mrb[0].mxu0
    %v2919 = vadd.f32 %v2620, %v2918
    %v2920 = vpop.f32.mrb[0].mxu0
    %2921 = vmatprep.mubr.f32.mxu0 0.0
    %v2922 = vand.u32 %v1979, 4294901760
    %v2923 = vsub.f32 %v1979, %v2922
    %2924 = vmatmul.mubr.f32.gmra.mrb[0].mxu0 %v2923
    %v2925 = vpop.f32.mrb[0].mxu0
    %v2926 = vadd.f32 %v2626, %v2925
    %v2927 = vpop.f32.mrb[0].mxu0
    %2928 = vmatprep.mubr.f32.mxu0 0.0
    %v2929 = vand.u32 %v1980, 4294901760
    %v2930 = vsub.f32 %v1980, %v2929
    %2931 = vmatmul.mubr.f32.gmra.mrb[0].mxu0 %v2930
    %v2932 = vpop.f32.mrb[0].mxu0
    %v2933 = vadd.f32 %v2632, %v2932
    %v2934 = vpop.f32.mrb[0].mxu0
    %2935 = vmatprep.mubr.f32.mxu0 0.0
    %v2936 = vand.u32 %v1981, 4294901760
    %v2937 = vsub.f32 %v1981, %v2936
    %2938 = vmatmul.mubr.f32.gmra.mrb[0].mxu0 %v2937
    %v2939 = vpop.f32.mrb[0].mxu0
    %v2940 = vadd.f32 %v2638, %v2939
    %v2941 = vpop.f32.mrb[0].mxu0
    %2942 = vmatprep.mubr.f32.mxu0 0.0
    %v2943 = vand.u32 %v1982, 4294901760
    %v2944 = vsub.f32 %v1982, %v2943
    %2945 = vmatmul.mubr.f32.gmra.mrb[0].mxu0 %v2944
    %v2946 = vpop.f32.mrb[0].mxu0
    %v2947 = vadd.f32 %v2644, %v2946
    %v2948 = vpop.f32.mrb[0].mxu0
    %2949 = vmatprep.mubr.f32.mxu0 0.0
    %v2950 = vand.u32 %v1983, 4294901760
    %v2951 = vsub.f32 %v1983, %v2950
    %2952 = vmatmul.mubr.f32.gmra.mrb[0].mxu0 %v2951
    %v2953 = vpop.f32.mrb[0].mxu0
    %v2954 = vadd.f32 %v2650, %v2953
    %v2955 = vpop.f32.mrb[0].mxu0
    %2956 = vmatprep.mubr.f32.mxu0 0.0
    %v2957 = vand.u32 %v1984, 4294901760
    %v2958 = vsub.f32 %v1984, %v2957
    %2959 = vmatmul.mubr.f32.gmra.mrb[0].mxu0 %v2958
    %v2960 = vpop.f32.mrb[0].mxu0
    %v2961 = vadd.f32 %v2656, %v2960
    %v2962 = vpop.f32.mrb[0].mxu0
    %2963 = vmatprep.mubr.f32.mxu0 0.0
    %v2964 = vand.u32 %v1985, 4294901760
    %v2965 = vsub.f32 %v1985, %v2964
    %2966 = vmatmul.mubr.f32.gmra.mrb[0].mxu0 %v2965
    %v2967 = vpop.f32.mrb[0].mxu0
    %v2968 = vadd.f32 %v2662, %v2967
    %v2969 = vpop.f32.mrb[0].mxu0
    %2970 = vmatprep.mubr.f32.mxu0 0.0
    %v2971 = vand.u32 %v1986, 4294901760
    %v2972 = vsub.f32 %v1986, %v2971
    %2973 = vmatmul.mubr.f32.gmra.mrb[0].mxu0 %v2972
    %v2974 = vpop.f32.mrb[0].mxu0
    %v2975 = vadd.f32 %v2668, %v2974
    %v2976 = vpop.f32.mrb[0].mxu0
    %2977 = vmatprep.mubr.f32.mxu0 0.0
    %v2978 = vand.u32 %v1987, 4294901760
    %v2979 = vsub.f32 %v1987, %v2978
    %2980 = vmatmul.mubr.f32.gmra.mrb[0].mxu0 %v2979
    %v2981 = vpop.f32.mrb[0].mxu0
    %v2982 = vadd.f32 %v2674, %v2981
    %v2983 = vpop.f32.mrb[0].mxu0
    %2984 = vmatprep.mubr.f32.mxu0 0.0
    %v2985 = vand.u32 %v1988, 4294901760
    %v2986 = vsub.f32 %v1988, %v2985
    %2987 = vmatmul.mubr.f32.gmra.mrb[0].mxu0 %v2986
    %v2988 = vpop.f32.mrb[0].mxu0
    %v2989 = vadd.f32 %v2680, %v2988
    %v2990 = vpop.f32.mrb[0].mxu0
    %2991 = vmatprep.mubr.f32.mxu0 0.0
    %v2992 = vand.u32 %v1989, 4294901760
    %v2993 = vsub.f32 %v1989, %v2992
    %2994 = vmatmul.mubr.f32.gmra.mrb[0].mxu0 %v2993
    %v2995 = vpop.f32.mrb[0].mxu0
    %v2996 = vadd.f32 %v2686, %v2995
    %v2997 = vpop.f32.mrb[0].mxu0
    %2998 = vmatprep.mubr.f32.mxu0 0.0
    %v2999 = vand.u32 %v1990, 4294901760
    %v3000 = vsub.f32 %v1990, %v2999
    %3001 = vmatmul.mubr.f32.gmra.mrb[0].mxu0 %v3000
    %v3002 = vpop.f32.mrb[0].mxu0
    %v3003 = vadd.f32 %v2692, %v3002
    %v3004 = vpop.f32.mrb[0].mxu0
    %3005 = vmatprep.mubr.f32.mxu0 0.0
    %v3006 = vand.u32 %v1991, 4294901760
    %v3007 = vsub.f32 %v1991, %v3006
    %3008 = vmatmul.mubr.f32.gmra.mrb[0].mxu0 %v3007
    %v3009 = vpop.f32.mrb[0].mxu0
    %v3010 = vadd.f32 %v2698, %v3009
    %v3011 = vpop.f32.mrb[0].mxu0
    %3012 = vmatprep.mubr.f32.mxu0 0.0
    %v3013 = vand.u32 %v1992, 4294901760
    %v3014 = vsub.f32 %v1992, %v3013
    %3015 = vmatmul.mubr.f32.gmra.mrb[0].mxu0 %v3014
    %v3016 = vpop.f32.mrb[0].mxu0
    %v3017 = vadd.f32 %v2704, %v3016
    %v3018 = vpop.f32.mrb[0].mxu0
    %3019 = vmatprep.mubr.f32.mxu0 0.0
    %v3020 = vand.u32 %v1993, 4294901760
    %v3021 = vsub.f32 %v1993, %v3020
    %3022 = vmatmul.mubr.f32.gmra.mrb[0].mxu0 %v3021
    %v3023 = vpop.f32.mrb[0].mxu0
    %v3024 = vadd.f32 %v2710, %v3023
    %v3025 = vpop.f32.mrb[0].mxu0
    %3026 = vmatprep.mubr.f32.mxu0 0.0
    %v3027 = vand.u32 %v1994, 4294901760
    %v3028 = vsub.f32 %v1994, %v3027
    %3029 = vmatmul.mubr.f32.gmra.mrb[0].mxu0 %v3028
    %v3030 = vpop.f32.mrb[0].mxu0
    %v3031 = vadd.f32 %v2716, %v3030
    %v3032 = vpop.f32.mrb[0].mxu0
    %3033 = vmatprep.mubr.f32.mxu0 0.0
    %v3034 = vand.u32 %v1995, 4294901760
    %v3035 = vsub.f32 %v1995, %v3034
    %3036 = vmatmul.mubr.f32.gmra.mrb[0].mxu0 %v3035
    %v3037 = vpop.f32.mrb[0].mxu0
    %v3038 = vadd.f32 %v2722, %v3037
    %v3039 = vpop.f32.mrb[0].mxu0
    %3040 = vmatprep.mubr.f32.mxu0 0.0
    %v3041 = vand.u32 %v1996, 4294901760
    %v3042 = vsub.f32 %v1996, %v3041
    %3043 = vmatmul.mubr.f32.gmra.mrb[0].mxu0 %v3042
    %v3044 = vpop.f32.mrb[0].mxu0
    %v3045 = vadd.f32 %v2728, %v3044
    %v3046 = vpop.f32.mrb[0].mxu0
    %3047 = vmatprep.mubr.f32.mxu0 0.0
    %v3048 = vand.u32 %v1997, 4294901760
    %v3049 = vsub.f32 %v1997, %v3048
    %3050 = vmatmul.mubr.f32.gmra.mrb[0].mxu0 %v3049
    %v3051 = vpop.f32.mrb[0].mxu0
    %v3052 = vadd.f32 %v2734, %v3051
    %v3053 = vpop.f32.mrb[0].mxu0
    %3054 = vmatprep.mubr.f32.mxu0 0.0
    %v3055 = vand.u32 %v1998, 4294901760
    %v3056 = vsub.f32 %v1998, %v3055
    %3057 = vmatmul.mubr.f32.gmra.mrb[0].mxu0 %v3056
    %v3058 = vpop.f32.mrb[0].mxu0
    %v3059 = vadd.f32 %v2740, %v3058
    %v3060 = vpop.f32.mrb[0].mxu0
    %3061 = vmatprep.mubr.f32.mxu0 0.0
    %v3062 = vand.u32 %v1999, 4294901760
    %v3063 = vsub.f32 %v1999, %v3062
    %3064 = vmatmul.mubr.f32.gmra.mrb[0].mxu0 %v3063
    %v3065 = vpop.f32.mrb[0].mxu0
    %v3066 = vadd.f32 %v2746, %v3065
    %v3067 = vpop.f32.mrb[0].mxu0
    %3068 = vmatprep.mubr.f32.mxu0 0.0
    %v3069 = vand.u32 %v2000, 4294901760
    %v3070 = vsub.f32 %v2000, %v3069
    %3071 = vmatmul.mubr.f32.gmra.mrb[0].mxu0 %v3070
    %v3072 = vpop.f32.mrb[0].mxu0
    %v3073 = vadd.f32 %v2752, %v3072
    %v3074 = vpop.f32.mrb[0].mxu0
    %3075 = vdwg.mxu0
    %3076 = vmatprep.subr.mxu0 0.0
    %v3077 = vand.u32 %v2001, 4294901760
    %3078 = vmatpush1.msra.mxu0 %v3077
    %3079 = vmatprep.subr.mxu0 0.0
    %v3080 = vand.u32 %v2002, 4294901760
    %3081 = vmatpush1.msra.mxu0 %v3080
    %3082 = vmatprep.subr.mxu0 0.0
    %v3083 = vand.u32 %v2003, 4294901760
    %3084 = vmatpush1.msra.mxu0 %v3083
    %3085 = vmatprep.subr.mxu0 0.0
    %v3086 = vand.u32 %v2004, 4294901760
    %3087 = vmatpush1.msra.mxu0 %v3086
    %3088 = vmatprep.subr.mxu0 0.0
    %v3089 = vand.u32 %v2005, 4294901760
    %3090 = vmatpush1.msra.mxu0 %v3089
    %3091 = vmatprep.subr.mxu0 0.0
    %v3092 = vand.u32 %v2006, 4294901760
    %3093 = vmatpush1.msra.mxu0 %v3092
    %3094 = vmatprep.subr.mxu0 0.0
    %v3095 = vand.u32 %v2007, 4294901760
    %3096 = vmatpush1.msra.mxu0 %v3095
    %3097 = vmatprep.subr.mxu0 0.0
    %v3098 = vand.u32 %v2008, 4294901760
    %3099 = vmatpush1.msra.mxu0 %v3098
    %3100 = vmatprep.subr.mxu0 0.0
    %v3101 = vand.u32 %v2009, 4294901760
    %3102 = vmatpush1.msra.mxu0 %v3101
    %3103 = vmatprep.subr.mxu0 0.0
    %v3104 = vand.u32 %v2010, 4294901760
    %3105 = vmatpush1.msra.mxu0 %v3104
    %3106 = vmatprep.subr.mxu0 0.0
    %v3107 = vand.u32 %v2011, 4294901760
    %3108 = vmatpush1.msra.mxu0 %v3107
    %3109 = vmatprep.subr.mxu0 0.0
    %v3110 = vand.u32 %v2012, 4294901760
    %3111 = vmatpush1.msra.mxu0 %v3110
    %3112 = vmatprep.subr.mxu0 0.0
    %v3113 = vand.u32 %v2013, 4294901760
    %3114 = vmatpush1.msra.mxu0 %v3113
    %3115 = vmatprep.subr.mxu0 0.0
    %v3116 = vand.u32 %v2014, 4294901760
    %3117 = vmatpush1.msra.mxu0 %v3116
    %3118 = vmatprep.subr.mxu0 0.0
    %v3119 = vand.u32 %v2015, 4294901760
    %3120 = vmatpush1.msra.mxu0 %v3119
    %3121 = vmatprep.subr.mxu0 0.0
    %v3122 = vand.u32 %v2016, 4294901760
    %3123 = vmatpush1.msra.mxu0 %v3122
    %3124 = vmatprep.subr.mxu0 0.0
    %3125 = vmatpush1.msra.mxu0 0.0
    %3126 = vmatprep.subr.mxu0 0.0
    %3127 = vmatpush1.msra.mxu0 0.0
    %3128 = vmatprep.subr.mxu0 0.0
    %3129 = vmatpush1.msra.mxu0 0.0
    %3130 = vmatprep.subr.mxu0 0.0
    %3131 = vmatpush1.msra.mxu0 0.0
    %3132 = vmatprep.subr.mxu0 0.0
    %3133 = vmatpush1.msra.mxu0 0.0
    %3134 = vmatprep.subr.mxu0 0.0
    %3135 = vmatpush1.msra.mxu0 0.0
    %3136 = vmatprep.subr.mxu0 0.0
    %3137 = vmatpush1.msra.mxu0 0.0
    %3138 = vmatprep.subr.mxu0 0.0
    %3139 = vmatpush1.msra.mxu0 0.0
    %3140 = vmatprep.subr.mxu0 0.0
    %3141 = vmatpush1.msra.mxu0 0.0
    %3142 = vmatprep.subr.mxu0 0.0
    %3143 = vmatpush1.msra.mxu0 0.0
    %3144 = vmatprep.subr.mxu0 0.0
    %3145 = vmatpush1.msra.mxu0 0.0
    %3146 = vmatprep.subr.mxu0 0.0
    %3147 = vmatpush1.msra.mxu0 0.0
    %3148 = vmatprep.subr.mxu0 0.0
    %3149 = vmatpush1.msra.mxu0 0.0
    %3150 = vmatprep.subr.mxu0 0.0
    %3151 = vmatpush1.msra.mxu0 0.0
    %3152 = vmatprep.subr.mxu0 0.0
    %3153 = vmatpush1.msra.mxu0 0.0
    %3154 = vmatprep.subr.mxu0 0.0
    %3155 = vmatpush1.msra.mxu0 0.0
    %3156 = vmatprep.mubr.f32.mxu0 0.0
    %v3157 = vand.u32 %v1969, 4294901760
    %v3158 = vsub.f32 %v1969, %v3157
    %v3159 = vand.u32 %v3158, 4294901760
    %3160 = vmatmul.mubr.f32.gmra.mrb[0].mxu0 %v3159
    %v3161 = vpop.f32.mrb[0].mxu0
    %v3162 = vadd.f32 %v2856, %v3161
    %v3163 = vpop.f32.mrb[0].mxu0
    %3164 = vmatprep.mubr.f32.mxu0 0.0
    %v3165 = vand.u32 %v1970, 4294901760
    %v3166 = vsub.f32 %v1970, %v3165
    %v3167 = vand.u32 %v3166, 4294901760
    %3168 = vmatmul.mubr.f32.gmra.mrb[0].mxu0 %v3167
    %v3169 = vpop.f32.mrb[0].mxu0
    %v3170 = vadd.f32 %v2863, %v3169
    %v3171 = vpop.f32.mrb[0].mxu0
    %3172 = vmatprep.mubr.f32.mxu0 0.0
    %v3173 = vand.u32 %v1971, 4294901760
    %v3174 = vsub.f32 %v1971, %v3173
    %v3175 = vand.u32 %v3174, 4294901760
    %3176 = vmatmul.mubr.f32.gmra.mrb[0].mxu0 %v3175
    %v3177 = vpop.f32.mrb[0].mxu0
    %v3178 = vadd.f32 %v2870, %v3177
    %v3179 = vpop.f32.mrb[0].mxu0
    %3180 = vmatprep.mubr.f32.mxu0 0.0
    %v3181 = vand.u32 %v1972, 4294901760
    %v3182 = vsub.f32 %v1972, %v3181
    %v3183 = vand.u32 %v3182, 4294901760
    %3184 = vmatmul.mubr.f32.gmra.mrb[0].mxu0 %v3183
    %v3185 = vpop.f32.mrb[0].mxu0
    %v3186 = vadd.f32 %v2877, %v3185
    %v3187 = vpop.f32.mrb[0].mxu0
    %3188 = vmatprep.mubr.f32.mxu0 0.0
    %v3189 = vand.u32 %v1973, 4294901760
    %v3190 = vsub.f32 %v1973, %v3189
    %v3191 = vand.u32 %v3190, 4294901760
    %3192 = vmatmul.mubr.f32.gmra.mrb[0].mxu0 %v3191
    %v3193 = vpop.f32.mrb[0].mxu0
    %v3194 = vadd.f32 %v2884, %v3193
    %v3195 = vpop.f32.mrb[0].mxu0
    %3196 = vmatprep.mubr.f32.mxu0 0.0
    %v3197 = vand.u32 %v1974, 4294901760
    %v3198 = vsub.f32 %v1974, %v3197
    %v3199 = vand.u32 %v3198, 4294901760
    %3200 = vmatmul.mubr.f32.gmra.mrb[0].mxu0 %v3199
    %v3201 = vpop.f32.mrb[0].mxu0
    %v3202 = vadd.f32 %v2891, %v3201
    %v3203 = vpop.f32.mrb[0].mxu0
    %3204 = vmatprep.mubr.f32.mxu0 0.0
    %v3205 = vand.u32 %v1975, 4294901760
    %v3206 = vsub.f32 %v1975, %v3205
    %v3207 = vand.u32 %v3206, 4294901760
    %3208 = vmatmul.mubr.f32.gmra.mrb[0].mxu0 %v3207
    %v3209 = vpop.f32.mrb[0].mxu0
    %v3210 = vadd.f32 %v2898, %v3209
    %v3211 = vpop.f32.mrb[0].mxu0
    %3212 = vmatprep.mubr.f32.mxu0 0.0
    %v3213 = vand.u32 %v1976, 4294901760
    %v3214 = vsub.f32 %v1976, %v3213
    %v3215 = vand.u32 %v3214, 4294901760
    %3216 = vmatmul.mubr.f32.gmra.mrb[0].mxu0 %v3215
    %v3217 = vpop.f32.mrb[0].mxu0
    %v3218 = vadd.f32 %v2905, %v3217
    %v3219 = vpop.f32.mrb[0].mxu0
    %3220 = vmatprep.mubr.f32.mxu0 0.0
    %v3221 = vand.u32 %v1977, 4294901760
    %v3222 = vsub.f32 %v1977, %v3221
    %v3223 = vand.u32 %v3222, 4294901760
    %3224 = vmatmul.mubr.f32.gmra.mrb[0].mxu0 %v3223
    %v3225 = vpop.f32.mrb[0].mxu0
    %v3226 = vadd.f32 %v2912, %v3225
    %v3227 = vpop.f32.mrb[0].mxu0
    %3228 = vmatprep.mubr.f32.mxu0 0.0
    %v3229 = vand.u32 %v1978, 4294901760
    %v3230 = vsub.f32 %v1978, %v3229
    %v3231 = vand.u32 %v3230, 4294901760
    %3232 = vmatmul.mubr.f32.gmra.mrb[0].mxu0 %v3231
    %v3233 = vpop.f32.mrb[0].mxu0
    %v3234 = vadd.f32 %v2919, %v3233
    %v3235 = vpop.f32.mrb[0].mxu0
    %3236 = vmatprep.mubr.f32.mxu0 0.0
    %v3237 = vand.u32 %v1979, 4294901760
    %v3238 = vsub.f32 %v1979, %v3237
    %v3239 = vand.u32 %v3238, 4294901760
    %3240 = vmatmul.mubr.f32.gmra.mrb[0].mxu0 %v3239
    %v3241 = vpop.f32.mrb[0].mxu0
    %v3242 = vadd.f32 %v2926, %v3241
    %v3243 = vpop.f32.mrb[0].mxu0
    %3244 = vmatprep.mubr.f32.mxu0 0.0
    %v3245 = vand.u32 %v1980, 4294901760
    %v3246 = vsub.f32 %v1980, %v3245
    %v3247 = vand.u32 %v3246, 4294901760
    %3248 = vmatmul.mubr.f32.gmra.mrb[0].mxu0 %v3247
    %v3249 = vpop.f32.mrb[0].mxu0
    %v3250 = vadd.f32 %v2933, %v3249
    %v3251 = vpop.f32.mrb[0].mxu0
    %3252 = vmatprep.mubr.f32.mxu0 0.0
    %v3253 = vand.u32 %v1981, 4294901760
    %v3254 = vsub.f32 %v1981, %v3253
    %v3255 = vand.u32 %v3254, 4294901760
    %3256 = vmatmul.mubr.f32.gmra.mrb[0].mxu0 %v3255
    %v3257 = vpop.f32.mrb[0].mxu0
    %v3258 = vadd.f32 %v2940, %v3257
    %v3259 = vpop.f32.mrb[0].mxu0
    %3260 = vmatprep.mubr.f32.mxu0 0.0
    %v3261 = vand.u32 %v1982, 4294901760
    %v3262 = vsub.f32 %v1982, %v3261
    %v3263 = vand.u32 %v3262, 4294901760
    %3264 = vmatmul.mubr.f32.gmra.mrb[0].mxu0 %v3263
    %v3265 = vpop.f32.mrb[0].mxu0
    %v3266 = vadd.f32 %v2947, %v3265
    %v3267 = vpop.f32.mrb[0].mxu0
    %3268 = vmatprep.mubr.f32.mxu0 0.0
    %v3269 = vand.u32 %v1983, 4294901760
    %v3270 = vsub.f32 %v1983, %v3269
    %v3271 = vand.u32 %v3270, 4294901760
    %3272 = vmatmul.mubr.f32.gmra.mrb[0].mxu0 %v3271
    %v3273 = vpop.f32.mrb[0].mxu0
    %v3274 = vadd.f32 %v2954, %v3273
    %v3275 = vpop.f32.mrb[0].mxu0
    %3276 = vmatprep.mubr.f32.mxu0 0.0
    %v3277 = vand.u32 %v1984, 4294901760
    %v3278 = vsub.f32 %v1984, %v3277
    %v3279 = vand.u32 %v3278, 4294901760
    %3280 = vmatmul.mubr.f32.gmra.mrb[0].mxu0 %v3279
    %v3281 = vpop.f32.mrb[0].mxu0
    %v3282 = vadd.f32 %v2961, %v3281
    %v3283 = vpop.f32.mrb[0].mxu0
    %3284 = vmatprep.mubr.f32.mxu0 0.0
    %v3285 = vand.u32 %v1985, 4294901760
    %v3286 = vsub.f32 %v1985, %v3285
    %v3287 = vand.u32 %v3286, 4294901760
    %3288 = vmatmul.mubr.f32.gmra.mrb[0].mxu0 %v3287
    %v3289 = vpop.f32.mrb[0].mxu0
    %v3290 = vadd.f32 %v2968, %v3289
    %v3291 = vpop.f32.mrb[0].mxu0
    %3292 = vmatprep.mubr.f32.mxu0 0.0
    %v3293 = vand.u32 %v1986, 4294901760
    %v3294 = vsub.f32 %v1986, %v3293
    %v3295 = vand.u32 %v3294, 4294901760
    %3296 = vmatmul.mubr.f32.gmra.mrb[0].mxu0 %v3295
    %v3297 = vpop.f32.mrb[0].mxu0
    %v3298 = vadd.f32 %v2975, %v3297
    %v3299 = vpop.f32.mrb[0].mxu0
    %3300 = vmatprep.mubr.f32.mxu0 0.0
    %v3301 = vand.u32 %v1987, 4294901760
    %v3302 = vsub.f32 %v1987, %v3301
    %v3303 = vand.u32 %v3302, 4294901760
    %3304 = vmatmul.mubr.f32.gmra.mrb[0].mxu0 %v3303
    %v3305 = vpop.f32.mrb[0].mxu0
    %v3306 = vadd.f32 %v2982, %v3305
    %v3307 = vpop.f32.mrb[0].mxu0
    %3308 = vmatprep.mubr.f32.mxu0 0.0
    %v3309 = vand.u32 %v1988, 4294901760
    %v3310 = vsub.f32 %v1988, %v3309
    %v3311 = vand.u32 %v3310, 4294901760
    %3312 = vmatmul.mubr.f32.gmra.mrb[0].mxu0 %v3311
    %v3313 = vpop.f32.mrb[0].mxu0
    %v3314 = vadd.f32 %v2989, %v3313
    %v3315 = vpop.f32.mrb[0].mxu0
    %3316 = vmatprep.mubr.f32.mxu0 0.0
    %v3317 = vand.u32 %v1989, 4294901760
    %v3318 = vsub.f32 %v1989, %v3317
    %v3319 = vand.u32 %v3318, 4294901760
    %3320 = vmatmul.mubr.f32.gmra.mrb[0].mxu0 %v3319
    %v3321 = vpop.f32.mrb[0].mxu0
    %v3322 = vadd.f32 %v2996, %v3321
    %v3323 = vpop.f32.mrb[0].mxu0
    %3324 = vmatprep.mubr.f32.mxu0 0.0
    %v3325 = vand.u32 %v1990, 4294901760
    %v3326 = vsub.f32 %v1990, %v3325
    %v3327 = vand.u32 %v3326, 4294901760
    %3328 = vmatmul.mubr.f32.gmra.mrb[0].mxu0 %v3327
    %v3329 = vpop.f32.mrb[0].mxu0
    %v3330 = vadd.f32 %v3003, %v3329
    %v3331 = vpop.f32.mrb[0].mxu0
    %3332 = vmatprep.mubr.f32.mxu0 0.0
    %v3333 = vand.u32 %v1991, 4294901760
    %v3334 = vsub.f32 %v1991, %v3333
    %v3335 = vand.u32 %v3334, 4294901760
    %3336 = vmatmul.mubr.f32.gmra.mrb[0].mxu0 %v3335
    %v3337 = vpop.f32.mrb[0].mxu0
    %v3338 = vadd.f32 %v3010, %v3337
    %v3339 = vpop.f32.mrb[0].mxu0
    %3340 = vmatprep.mubr.f32.mxu0 0.0
    %v3341 = vand.u32 %v1992, 4294901760
    %v3342 = vsub.f32 %v1992, %v3341
    %v3343 = vand.u32 %v3342, 4294901760
    %3344 = vmatmul.mubr.f32.gmra.mrb[0].mxu0 %v3343
    %v3345 = vpop.f32.mrb[0].mxu0
    %v3346 = vadd.f32 %v3017, %v3345
    %v3347 = vpop.f32.mrb[0].mxu0
    %3348 = vmatprep.mubr.f32.mxu0 0.0
    %v3349 = vand.u32 %v1993, 4294901760
    %v3350 = vsub.f32 %v1993, %v3349
    %v3351 = vand.u32 %v3350, 4294901760
    %3352 = vmatmul.mubr.f32.gmra.mrb[0].mxu0 %v3351
    %v3353 = vpop.f32.mrb[0].mxu0
    %v3354 = vadd.f32 %v3024, %v3353
    %v3355 = vpop.f32.mrb[0].mxu0
    %3356 = vmatprep.mubr.f32.mxu0 0.0
    %v3357 = vand.u32 %v1994, 4294901760
    %v3358 = vsub.f32 %v1994, %v3357
    %v3359 = vand.u32 %v3358, 4294901760
    %3360 = vmatmul.mubr.f32.gmra.mrb[0].mxu0 %v3359
    %v3361 = vpop.f32.mrb[0].mxu0
    %v3362 = vadd.f32 %v3031, %v3361
    %v3363 = vpop.f32.mrb[0].mxu0
    %3364 = vmatprep.mubr.f32.mxu0 0.0
    %v3365 = vand.u32 %v1995, 4294901760
    %v3366 = vsub.f32 %v1995, %v3365
    %v3367 = vand.u32 %v3366, 4294901760
    %3368 = vmatmul.mubr.f32.gmra.mrb[0].mxu0 %v3367
    %v3369 = vpop.f32.mrb[0].mxu0
    %v3370 = vadd.f32 %v3038, %v3369
    %v3371 = vpop.f32.mrb[0].mxu0
    %3372 = vmatprep.mubr.f32.mxu0 0.0
    %v3373 = vand.u32 %v1996, 4294901760
    %v3374 = vsub.f32 %v1996, %v3373
    %v3375 = vand.u32 %v3374, 4294901760
    %3376 = vmatmul.mubr.f32.gmra.mrb[0].mxu0 %v3375
    %v3377 = vpop.f32.mrb[0].mxu0
    %v3378 = vadd.f32 %v3045, %v3377
    %v3379 = vpop.f32.mrb[0].mxu0
    %3380 = vmatprep.mubr.f32.mxu0 0.0
    %v3381 = vand.u32 %v1997, 4294901760
    %v3382 = vsub.f32 %v1997, %v3381
    %v3383 = vand.u32 %v3382, 4294901760
    %3384 = vmatmul.mubr.f32.gmra.mrb[0].mxu0 %v3383
    %v3385 = vpop.f32.mrb[0].mxu0
    %v3386 = vadd.f32 %v3052, %v3385
    %v3387 = vpop.f32.mrb[0].mxu0
    %3388 = vmatprep.mubr.f32.mxu0 0.0
    %v3389 = vand.u32 %v1998, 4294901760
    %v3390 = vsub.f32 %v1998, %v3389
    %v3391 = vand.u32 %v3390, 4294901760
    %3392 = vmatmul.mubr.f32.gmra.mrb[0].mxu0 %v3391
    %v3393 = vpop.f32.mrb[0].mxu0
    %v3394 = vadd.f32 %v3059, %v3393
    %v3395 = vpop.f32.mrb[0].mxu0
    %3396 = vmatprep.mubr.f32.mxu0 0.0
    %v3397 = vand.u32 %v1999, 4294901760
    %v3398 = vsub.f32 %v1999, %v3397
    %v3399 = vand.u32 %v3398, 4294901760
    %3400 = vmatmul.mubr.f32.gmra.mrb[0].mxu0 %v3399
    %v3401 = vpop.f32.mrb[0].mxu0
    %v3402 = vadd.f32 %v3066, %v3401
    %v3403 = vpop.f32.mrb[0].mxu0
    %3404 = vmatprep.mubr.f32.mxu0 0.0
    %v3405 = vand.u32 %v2000, 4294901760
    %v3406 = vsub.f32 %v2000, %v3405
    %v3407 = vand.u32 %v3406, 4294901760
    %3408 = vmatmul.mubr.f32.gmra.mrb[0].mxu0 %v3407
    %v3409 = vpop.f32.mrb[0].mxu0
    %v3410 = vadd.f32 %v3073, %v3409
    %v3411 = vpop.f32.mrb[0].mxu0
    %3412 = vdwg.mxu0
    %3413 = vmatprep.subr.mxu0 0.0
    %v3414 = vand.u32 %v2001, 4294901760
    %v3415 = vsub.f32 %v2001, %v3414
    %v3416 = vand.u32 %v3415, 4294901760
    %3417 = vmatpush1.msra.mxu0 %v3416
    %3418 = vmatprep.subr.mxu0 0.0
    %v3419 = vand.u32 %v2002, 4294901760
    %v3420 = vsub.f32 %v2002, %v3419
    %v3421 = vand.u32 %v3420, 4294901760
    %3422 = vmatpush1.msra.mxu0 %v3421
    %3423 = vmatprep.subr.mxu0 0.0
    %v3424 = vand.u32 %v2003, 4294901760
    %v3425 = vsub.f32 %v2003, %v3424
    %v3426 = vand.u32 %v3425, 4294901760
    %3427 = vmatpush1.msra.mxu0 %v3426
    %3428 = vmatprep.subr.mxu0 0.0
    %v3429 = vand.u32 %v2004, 4294901760
    %v3430 = vsub.f32 %v2004, %v3429
    %v3431 = vand.u32 %v3430, 4294901760
    %3432 = vmatpush1.msra.mxu0 %v3431
    %3433 = vmatprep.subr.mxu0 0.0
    %v3434 = vand.u32 %v2005, 4294901760
    %v3435 = vsub.f32 %v2005, %v3434
    %v3436 = vand.u32 %v3435, 4294901760
    %3437 = vmatpush1.msra.mxu0 %v3436
    %3438 = vmatprep.subr.mxu0 0.0
    %v3439 = vand.u32 %v2006, 4294901760
    %v3440 = vsub.f32 %v2006, %v3439
    %v3441 = vand.u32 %v3440, 4294901760
    %3442 = vmatpush1.msra.mxu0 %v3441
    %3443 = vmatprep.subr.mxu0 0.0
    %v3444 = vand.u32 %v2007, 4294901760
    %v3445 = vsub.f32 %v2007, %v3444
    %v3446 = vand.u32 %v3445, 4294901760
    %3447 = vmatpush1.msra.mxu0 %v3446
    %3448 = vmatprep.subr.mxu0 0.0
    %v3449 = vand.u32 %v2008, 4294901760
    %v3450 = vsub.f32 %v2008, %v3449
    %v3451 = vand.u32 %v3450, 4294901760
    %3452 = vmatpush1.msra.mxu0 %v3451
    %3453 = vmatprep.subr.mxu0 0.0
    %v3454 = vand.u32 %v2009, 4294901760
    %v3455 = vsub.f32 %v2009, %v3454
    %v3456 = vand.u32 %v3455, 4294901760
    %3457 = vmatpush1.msra.mxu0 %v3456
    %3458 = vmatprep.subr.mxu0 0.0
    %v3459 = vand.u32 %v2010, 4294901760
    %v3460 = vsub.f32 %v2010, %v3459
    %v3461 = vand.u32 %v3460, 4294901760
    %3462 = vmatpush1.msra.mxu0 %v3461
    %3463 = vmatprep.subr.mxu0 0.0
    %v3464 = vand.u32 %v2011, 4294901760
    %v3465 = vsub.f32 %v2011, %v3464
    %v3466 = vand.u32 %v3465, 4294901760
    %3467 = vmatpush1.msra.mxu0 %v3466
    %3468 = vmatprep.subr.mxu0 0.0
    %v3469 = vand.u32 %v2012, 4294901760
    %v3470 = vsub.f32 %v2012, %v3469
    %v3471 = vand.u32 %v3470, 4294901760
    %3472 = vmatpush1.msra.mxu0 %v3471
    %3473 = vmatprep.subr.mxu0 0.0
    %v3474 = vand.u32 %v2013, 4294901760
    %v3475 = vsub.f32 %v2013, %v3474
    %v3476 = vand.u32 %v3475, 4294901760
    %3477 = vmatpush1.msra.mxu0 %v3476
    %3478 = vmatprep.subr.mxu0 0.0
    %v3479 = vand.u32 %v2014, 4294901760
    %v3480 = vsub.f32 %v2014, %v3479
    %v3481 = vand.u32 %v3480, 4294901760
    %3482 = vmatpush1.msra.mxu0 %v3481
    %3483 = vmatprep.subr.mxu0 0.0
    %v3484 = vand.u32 %v2015, 4294901760
    %v3485 = vsub.f32 %v2015, %v3484
    %v3486 = vand.u32 %v3485, 4294901760
    %3487 = vmatpush1.msra.mxu0 %v3486
    %3488 = vmatprep.subr.mxu0 0.0
    %v3489 = vand.u32 %v2016, 4294901760
    %v3490 = vsub.f32 %v2016, %v3489
    %v3491 = vand.u32 %v3490, 4294901760
    %3492 = vmatpush1.msra.mxu0 %v3491
    %3493 = vmatprep.subr.mxu0 0.0
    %3494 = vmatpush1.msra.mxu0 0.0
    %3495 = vmatprep.subr.mxu0 0.0
    %3496 = vmatpush1.msra.mxu0 0.0
    %3497 = vmatprep.subr.mxu0 0.0
    %3498 = vmatpush1.msra.mxu0 0.0
    %3499 = vmatprep.subr.mxu0 0.0
    %3500 = vmatpush1.msra.mxu0 0.0
    %3501 = vmatprep.subr.mxu0 0.0
    %3502 = vmatpush1.msra.mxu0 0.0
    %3503 = vmatprep.subr.mxu0 0.0
    %3504 = vmatpush1.msra.mxu0 0.0
    %3505 = vmatprep.subr.mxu0 0.0
    %3506 = vmatpush1.msra.mxu0 0.0
    %3507 = vmatprep.subr.mxu0 0.0
    %3508 = vmatpush1.msra.mxu0 0.0
    %3509 = vmatprep.subr.mxu0 0.0
    %3510 = vmatpush1.msra.mxu0 0.0
    %3511 = vmatprep.subr.mxu0 0.0
    %3512 = vmatpush1.msra.mxu0 0.0
    %3513 = vmatprep.subr.mxu0 0.0
    %3514 = vmatpush1.msra.mxu0 0.0
    %3515 = vmatprep.subr.mxu0 0.0
    %3516 = vmatpush1.msra.mxu0 0.0
    %3517 = vmatprep.subr.mxu0 0.0
    %3518 = vmatpush1.msra.mxu0 0.0
    %3519 = vmatprep.subr.mxu0 0.0
    %3520 = vmatpush1.msra.mxu0 0.0
    %3521 = vmatprep.subr.mxu0 0.0
    %3522 = vmatpush1.msra.mxu0 0.0
    %3523 = vmatprep.subr.mxu0 0.0
    %3524 = vmatpush1.msra.mxu0 0.0
    %3525 = vmatprep.mubr.f32.mxu0 0.0
    %v3526 = vand.u32 %v1969, 4294901760
    %3527 = vmatmul.mubr.f32.gmra.mrb[0].mxu0 %v3526
    %v3528 = vpop.f32.mrb[0].mxu0
    %v3529 = vadd.f32 %v3162, %v3528
    %v3530 = vpop.f32.mrb[0].mxu0
    %3531 = vmatprep.mubr.f32.mxu0 0.0
    %v3532 = vand.u32 %v1970, 4294901760
    %3533 = vmatmul.mubr.f32.gmra.mrb[0].mxu0 %v3532
    %v3534 = vpop.f32.mrb[0].mxu0
    %v3535 = vadd.f32 %v3170, %v3534
    %v3536 = vpop.f32.mrb[0].mxu0
    %3537 = vmatprep.mubr.f32.mxu0 0.0
    %v3538 = vand.u32 %v1971, 4294901760
    %3539 = vmatmul.mubr.f32.gmra.mrb[0].mxu0 %v3538
    %v3540 = vpop.f32.mrb[0].mxu0
    %v3541 = vadd.f32 %v3178, %v3540
    %v3542 = vpop.f32.mrb[0].mxu0
    %3543 = vmatprep.mubr.f32.mxu0 0.0
    %v3544 = vand.u32 %v1972, 4294901760
    %3545 = vmatmul.mubr.f32.gmra.mrb[0].mxu0 %v3544
    %v3546 = vpop.f32.mrb[0].mxu0
    %v3547 = vadd.f32 %v3186, %v3546
    %v3548 = vpop.f32.mrb[0].mxu0
    %3549 = vmatprep.mubr.f32.mxu0 0.0
    %v3550 = vand.u32 %v1973, 4294901760
    %3551 = vmatmul.mubr.f32.gmra.mrb[0].mxu0 %v3550
    %v3552 = vpop.f32.mrb[0].mxu0
    %v3553 = vadd.f32 %v3194, %v3552
    %v3554 = vpop.f32.mrb[0].mxu0
    %3555 = vmatprep.mubr.f32.mxu0 0.0
    %v3556 = vand.u32 %v1974, 4294901760
    %3557 = vmatmul.mubr.f32.gmra.mrb[0].mxu0 %v3556
    %v3558 = vpop.f32.mrb[0].mxu0
    %v3559 = vadd.f32 %v3202, %v3558
    %v3560 = vpop.f32.mrb[0].mxu0
    %3561 = vmatprep.mubr.f32.mxu0 0.0
    %v3562 = vand.u32 %v1975, 4294901760
    %3563 = vmatmul.mubr.f32.gmra.mrb[0].mxu0 %v3562
    %v3564 = vpop.f32.mrb[0].mxu0
    %v3565 = vadd.f32 %v3210, %v3564
    %v3566 = vpop.f32.mrb[0].mxu0
    %3567 = vmatprep.mubr.f32.mxu0 0.0
    %v3568 = vand.u32 %v1976, 4294901760
    %3569 = vmatmul.mubr.f32.gmra.mrb[0].mxu0 %v3568
    %v3570 = vpop.f32.mrb[0].mxu0
    %v3571 = vadd.f32 %v3218, %v3570
    %v3572 = vpop.f32.mrb[0].mxu0
    %3573 = vmatprep.mubr.f32.mxu0 0.0
    %v3574 = vand.u32 %v1977, 4294901760
    %3575 = vmatmul.mubr.f32.gmra.mrb[0].mxu0 %v3574
    %v3576 = vpop.f32.mrb[0].mxu0
    %v3577 = vadd.f32 %v3226, %v3576
    %v3578 = vpop.f32.mrb[0].mxu0
    %3579 = vmatprep.mubr.f32.mxu0 0.0
    %v3580 = vand.u32 %v1978, 4294901760
    %3581 = vmatmul.mubr.f32.gmra.mrb[0].mxu0 %v3580
    %v3582 = vpop.f32.mrb[0].mxu0
    %v3583 = vadd.f32 %v3234, %v3582
    %v3584 = vpop.f32.mrb[0].mxu0
    %3585 = vmatprep.mubr.f32.mxu0 0.0
    %v3586 = vand.u32 %v1979, 4294901760
    %3587 = vmatmul.mubr.f32.gmra.mrb[0].mxu0 %v3586
    %v3588 = vpop.f32.mrb[0].mxu0
    %v3589 = vadd.f32 %v3242, %v3588
    %v3590 = vpop.f32.mrb[0].mxu0
    %3591 = vmatprep.mubr.f32.mxu0 0.0
    %v3592 = vand.u32 %v1980, 4294901760
    %3593 = vmatmul.mubr.f32.gmra.mrb[0].mxu0 %v3592
    %v3594 = vpop.f32.mrb[0].mxu0
    %v3595 = vadd.f32 %v3250, %v3594
    %v3596 = vpop.f32.mrb[0].mxu0
    %3597 = vmatprep.mubr.f32.mxu0 0.0
    %v3598 = vand.u32 %v1981, 4294901760
    %3599 = vmatmul.mubr.f32.gmra.mrb[0].mxu0 %v3598
    %v3600 = vpop.f32.mrb[0].mxu0
    %v3601 = vadd.f32 %v3258, %v3600
    %v3602 = vpop.f32.mrb[0].mxu0
    %3603 = vmatprep.mubr.f32.mxu0 0.0
    %v3604 = vand.u32 %v1982, 4294901760
    %3605 = vmatmul.mubr.f32.gmra.mrb[0].mxu0 %v3604
    %v3606 = vpop.f32.mrb[0].mxu0
    %v3607 = vadd.f32 %v3266, %v3606
    %v3608 = vpop.f32.mrb[0].mxu0
    %3609 = vmatprep.mubr.f32.mxu0 0.0
    %v3610 = vand.u32 %v1983, 4294901760
    %3611 = vmatmul.mubr.f32.gmra.mrb[0].mxu0 %v3610
    %v3612 = vpop.f32.mrb[0].mxu0
    %v3613 = vadd.f32 %v3274, %v3612
    %v3614 = vpop.f32.mrb[0].mxu0
    %3615 = vmatprep.mubr.f32.mxu0 0.0
    %v3616 = vand.u32 %v1984, 4294901760
    %3617 = vmatmul.mubr.f32.gmra.mrb[0].mxu0 %v3616
    %v3618 = vpop.f32.mrb[0].mxu0
    %v3619 = vadd.f32 %v3282, %v3618
    %v3620 = vpop.f32.mrb[0].mxu0
    %3621 = vmatprep.mubr.f32.mxu0 0.0
    %v3622 = vand.u32 %v1985, 4294901760
    %3623 = vmatmul.mubr.f32.gmra.mrb[0].mxu0 %v3622
    %v3624 = vpop.f32.mrb[0].mxu0
    %v3625 = vadd.f32 %v3290, %v3624
    %v3626 = vpop.f32.mrb[0].mxu0
    %3627 = vmatprep.mubr.f32.mxu0 0.0
    %v3628 = vand.u32 %v1986, 4294901760
    %3629 = vmatmul.mubr.f32.gmra.mrb[0].mxu0 %v3628
    %v3630 = vpop.f32.mrb[0].mxu0
    %v3631 = vadd.f32 %v3298, %v3630
    %v3632 = vpop.f32.mrb[0].mxu0
    %3633 = vmatprep.mubr.f32.mxu0 0.0
    %v3634 = vand.u32 %v1987, 4294901760
    %3635 = vmatmul.mubr.f32.gmra.mrb[0].mxu0 %v3634
    %v3636 = vpop.f32.mrb[0].mxu0
    %v3637 = vadd.f32 %v3306, %v3636
    %v3638 = vpop.f32.mrb[0].mxu0
    %3639 = vmatprep.mubr.f32.mxu0 0.0
    %v3640 = vand.u32 %v1988, 4294901760
    %3641 = vmatmul.mubr.f32.gmra.mrb[0].mxu0 %v3640
    %v3642 = vpop.f32.mrb[0].mxu0
    %v3643 = vadd.f32 %v3314, %v3642
    %v3644 = vpop.f32.mrb[0].mxu0
    %3645 = vmatprep.mubr.f32.mxu0 0.0
    %v3646 = vand.u32 %v1989, 4294901760
    %3647 = vmatmul.mubr.f32.gmra.mrb[0].mxu0 %v3646
    %v3648 = vpop.f32.mrb[0].mxu0
    %v3649 = vadd.f32 %v3322, %v3648
    %v3650 = vpop.f32.mrb[0].mxu0
    %3651 = vmatprep.mubr.f32.mxu0 0.0
    %v3652 = vand.u32 %v1990, 4294901760
    %3653 = vmatmul.mubr.f32.gmra.mrb[0].mxu0 %v3652
    %v3654 = vpop.f32.mrb[0].mxu0
    %v3655 = vadd.f32 %v3330, %v3654
    %v3656 = vpop.f32.mrb[0].mxu0
    %3657 = vmatprep.mubr.f32.mxu0 0.0
    %v3658 = vand.u32 %v1991, 4294901760
    %3659 = vmatmul.mubr.f32.gmra.mrb[0].mxu0 %v3658
    %v3660 = vpop.f32.mrb[0].mxu0
    %v3661 = vadd.f32 %v3338, %v3660
    %v3662 = vpop.f32.mrb[0].mxu0
    %3663 = vmatprep.mubr.f32.mxu0 0.0
    %v3664 = vand.u32 %v1992, 4294901760
    %3665 = vmatmul.mubr.f32.gmra.mrb[0].mxu0 %v3664
    %v3666 = vpop.f32.mrb[0].mxu0
    %v3667 = vadd.f32 %v3346, %v3666
    %v3668 = vpop.f32.mrb[0].mxu0
    %3669 = vmatprep.mubr.f32.mxu0 0.0
    %v3670 = vand.u32 %v1993, 4294901760
    %3671 = vmatmul.mubr.f32.gmra.mrb[0].mxu0 %v3670
    %v3672 = vpop.f32.mrb[0].mxu0
    %v3673 = vadd.f32 %v3354, %v3672
    %v3674 = vpop.f32.mrb[0].mxu0
    %3675 = vmatprep.mubr.f32.mxu0 0.0
    %v3676 = vand.u32 %v1994, 4294901760
    %3677 = vmatmul.mubr.f32.gmra.mrb[0].mxu0 %v3676
    %v3678 = vpop.f32.mrb[0].mxu0
    %v3679 = vadd.f32 %v3362, %v3678
    %v3680 = vpop.f32.mrb[0].mxu0
    %3681 = vmatprep.mubr.f32.mxu0 0.0
    %v3682 = vand.u32 %v1995, 4294901760
    %3683 = vmatmul.mubr.f32.gmra.mrb[0].mxu0 %v3682
    %v3684 = vpop.f32.mrb[0].mxu0
    %v3685 = vadd.f32 %v3370, %v3684
    %v3686 = vpop.f32.mrb[0].mxu0
    %3687 = vmatprep.mubr.f32.mxu0 0.0
    %v3688 = vand.u32 %v1996, 4294901760
    %3689 = vmatmul.mubr.f32.gmra.mrb[0].mxu0 %v3688
    %v3690 = vpop.f32.mrb[0].mxu0
    %v3691 = vadd.f32 %v3378, %v3690
    %v3692 = vpop.f32.mrb[0].mxu0
    %3693 = vmatprep.mubr.f32.mxu0 0.0
    %v3694 = vand.u32 %v1997, 4294901760
    %3695 = vmatmul.mubr.f32.gmra.mrb[0].mxu0 %v3694
    %v3696 = vpop.f32.mrb[0].mxu0
    %v3697 = vadd.f32 %v3386, %v3696
    %v3698 = vpop.f32.mrb[0].mxu0
    %3699 = vmatprep.mubr.f32.mxu0 0.0
    %v3700 = vand.u32 %v1998, 4294901760
    %3701 = vmatmul.mubr.f32.gmra.mrb[0].mxu0 %v3700
    %v3702 = vpop.f32.mrb[0].mxu0
    %v3703 = vadd.f32 %v3394, %v3702
    %v3704 = vpop.f32.mrb[0].mxu0
    %3705 = vmatprep.mubr.f32.mxu0 0.0
    %v3706 = vand.u32 %v1999, 4294901760
    %3707 = vmatmul.mubr.f32.gmra.mrb[0].mxu0 %v3706
    %v3708 = vpop.f32.mrb[0].mxu0
    %v3709 = vadd.f32 %v3402, %v3708
    %v3710 = vpop.f32.mrb[0].mxu0
    %3711 = vmatprep.mubr.f32.mxu0 0.0
    %v3712 = vand.u32 %v2000, 4294901760
    %3713 = vmatmul.mubr.f32.gmra.mrb[0].mxu0 %v3712
    %v3714 = vpop.f32.mrb[0].mxu0
    %v3715 = vadd.f32 %v3410, %v3714
    %v3716 = vpop.f32.mrb[0].mxu0
    %3717 = vdwg.mxu0
    %3718 = vmatprep.subr.mxu0 0.0
    %v3719 = vand.u32 %v2001, 4294901760
    %3720 = vmatpush1.msra.mxu0 %v3719
    %3721 = vmatprep.subr.mxu0 0.0
    %v3722 = vand.u32 %v2002, 4294901760
    %3723 = vmatpush1.msra.mxu0 %v3722
    %3724 = vmatprep.subr.mxu0 0.0
    %v3725 = vand.u32 %v2003, 4294901760
    %3726 = vmatpush1.msra.mxu0 %v3725
    %3727 = vmatprep.subr.mxu0 0.0
    %v3728 = vand.u32 %v2004, 4294901760
    %3729 = vmatpush1.msra.mxu0 %v3728
    %3730 = vmatprep.subr.mxu0 0.0
    %v3731 = vand.u32 %v2005, 4294901760
    %3732 = vmatpush1.msra.mxu0 %v3731
    %3733 = vmatprep.subr.mxu0 0.0
    %v3734 = vand.u32 %v2006, 4294901760
    %3735 = vmatpush1.msra.mxu0 %v3734
    %3736 = vmatprep.subr.mxu0 0.0
    %v3737 = vand.u32 %v2007, 4294901760
    %3738 = vmatpush1.msra.mxu0 %v3737
    %3739 = vmatprep.subr.mxu0 0.0
    %v3740 = vand.u32 %v2008, 4294901760
    %3741 = vmatpush1.msra.mxu0 %v3740
    %3742 = vmatprep.subr.mxu0 0.0
    %v3743 = vand.u32 %v2009, 4294901760
    %3744 = vmatpush1.msra.mxu0 %v3743
    %3745 = vmatprep.subr.mxu0 0.0
    %v3746 = vand.u32 %v2010, 4294901760
    %3747 = vmatpush1.msra.mxu0 %v3746
    %3748 = vmatprep.subr.mxu0 0.0
    %v3749 = vand.u32 %v2011, 4294901760
    %3750 = vmatpush1.msra.mxu0 %v3749
    %3751 = vmatprep.subr.mxu0 0.0
    %v3752 = vand.u32 %v2012, 4294901760
    %3753 = vmatpush1.msra.mxu0 %v3752
    %3754 = vmatprep.subr.mxu0 0.0
    %v3755 = vand.u32 %v2013, 4294901760
    %3756 = vmatpush1.msra.mxu0 %v3755
    %3757 = vmatprep.subr.mxu0 0.0
    %v3758 = vand.u32 %v2014, 4294901760
    %3759 = vmatpush1.msra.mxu0 %v3758
    %3760 = vmatprep.subr.mxu0 0.0
    %v3761 = vand.u32 %v2015, 4294901760
    %3762 = vmatpush1.msra.mxu0 %v3761
    %3763 = vmatprep.subr.mxu0 0.0
    %v3764 = vand.u32 %v2016, 4294901760
    %3765 = vmatpush1.msra.mxu0 %v3764
    %3766 = vmatprep.subr.mxu0 0.0
    %3767 = vmatpush1.msra.mxu0 0.0
    %3768 = vmatprep.subr.mxu0 0.0
    %3769 = vmatpush1.msra.mxu0 0.0
    %3770 = vmatprep.subr.mxu0 0.0
    %3771 = vmatpush1.msra.mxu0 0.0
    %3772 = vmatprep.subr.mxu0 0.0
    %3773 = vmatpush1.msra.mxu0 0.0
    %3774 = vmatprep.subr.mxu0 0.0
    %3775 = vmatpush1.msra.mxu0 0.0
    %3776 = vmatprep.subr.mxu0 0.0
    %3777 = vmatpush1.msra.mxu0 0.0
    %3778 = vmatprep.subr.mxu0 0.0
    %3779 = vmatpush1.msra.mxu0 0.0
    %3780 = vmatprep.subr.mxu0 0.0
    %3781 = vmatpush1.msra.mxu0 0.0
    %3782 = vmatprep.subr.mxu0 0.0
    %3783 = vmatpush1.msra.mxu0 0.0
    %3784 = vmatprep.subr.mxu0 0.0
    %3785 = vmatpush1.msra.mxu0 0.0
    %3786 = vmatprep.subr.mxu0 0.0
    %3787 = vmatpush1.msra.mxu0 0.0
    %3788 = vmatprep.subr.mxu0 0.0
    %3789 = vmatpush1.msra.mxu0 0.0
    %3790 = vmatprep.subr.mxu0 0.0
    %3791 = vmatpush1.msra.mxu0 0.0
    %3792 = vmatprep.subr.mxu0 0.0
    %3793 = vmatpush1.msra.mxu0 0.0
    %3794 = vmatprep.subr.mxu0 0.0
    %3795 = vmatpush1.msra.mxu0 0.0
    %3796 = vmatprep.subr.mxu0 0.0
    %3797 = vmatpush1.msra.mxu0 0.0
    %3798 = vmatprep.mubr.f32.mxu0 0.0
    %v3799 = vand.u32 %v1969, 4294901760
    %3800 = vmatmul.mubr.f32.gmra.mrb[0].mxu0 %v3799
    %v3801 = vpop.f32.mrb[0].mxu0
    %v3802 = vadd.f32 %v3529, %v3801
    %v3803 = vpop.f32.mrb[0].mxu0
    %3804 = vmatprep.mubr.f32.mxu0 0.0
    %v3805 = vand.u32 %v1970, 4294901760
    %3806 = vmatmul.mubr.f32.gmra.mrb[0].mxu0 %v3805
    %v3807 = vpop.f32.mrb[0].mxu0
    %v3808 = vadd.f32 %v3535, %v3807
    %v3809 = vpop.f32.mrb[0].mxu0
    %3810 = vmatprep.mubr.f32.mxu0 0.0
    %v3811 = vand.u32 %v1971, 4294901760
    %3812 = vmatmul.mubr.f32.gmra.mrb[0].mxu0 %v3811
    %v3813 = vpop.f32.mrb[0].mxu0
    %v3814 = vadd.f32 %v3541, %v3813
    %v3815 = vpop.f32.mrb[0].mxu0
    %3816 = vmatprep.mubr.f32.mxu0 0.0
    %v3817 = vand.u32 %v1972, 4294901760
    %3818 = vmatmul.mubr.f32.gmra.mrb[0].mxu0 %v3817
    %v3819 = vpop.f32.mrb[0].mxu0
    %v3820 = vadd.f32 %v3547, %v3819
    %v3821 = vpop.f32.mrb[0].mxu0
    %3822 = vmatprep.mubr.f32.mxu0 0.0
    %v3823 = vand.u32 %v1973, 4294901760
    %3824 = vmatmul.mubr.f32.gmra.mrb[0].mxu0 %v3823
    %v3825 = vpop.f32.mrb[0].mxu0
    %v3826 = vadd.f32 %v3553, %v3825
    %v3827 = vpop.f32.mrb[0].mxu0
    %3828 = vmatprep.mubr.f32.mxu0 0.0
    %v3829 = vand.u32 %v1974, 4294901760
    %3830 = vmatmul.mubr.f32.gmra.mrb[0].mxu0 %v3829
    %v3831 = vpop.f32.mrb[0].mxu0
    %v3832 = vadd.f32 %v3559, %v3831
    %v3833 = vpop.f32.mrb[0].mxu0
    %3834 = vmatprep.mubr.f32.mxu0 0.0
    %v3835 = vand.u32 %v1975, 4294901760
    %3836 = vmatmul.mubr.f32.gmra.mrb[0].mxu0 %v3835
    %v3837 = vpop.f32.mrb[0].mxu0
    %v3838 = vadd.f32 %v3565, %v3837
    %v3839 = vpop.f32.mrb[0].mxu0
    %3840 = vmatprep.mubr.f32.mxu0 0.0
    %v3841 = vand.u32 %v1976, 4294901760
    %3842 = vmatmul.mubr.f32.gmra.mrb[0].mxu0 %v3841
    %v3843 = vpop.f32.mrb[0].mxu0
    %v3844 = vadd.f32 %v3571, %v3843
    %v3845 = vpop.f32.mrb[0].mxu0
    %3846 = vmatprep.mubr.f32.mxu0 0.0
    %v3847 = vand.u32 %v1977, 4294901760
    %3848 = vmatmul.mubr.f32.gmra.mrb[0].mxu0 %v3847
    %v3849 = vpop.f32.mrb[0].mxu0
    %v3850 = vadd.f32 %v3577, %v3849
    %v3851 = vpop.f32.mrb[0].mxu0
    %3852 = vmatprep.mubr.f32.mxu0 0.0
    %v3853 = vand.u32 %v1978, 4294901760
    %3854 = vmatmul.mubr.f32.gmra.mrb[0].mxu0 %v3853
    %v3855 = vpop.f32.mrb[0].mxu0
    %v3856 = vadd.f32 %v3583, %v3855
    %v3857 = vpop.f32.mrb[0].mxu0
    %3858 = vmatprep.mubr.f32.mxu0 0.0
    %v3859 = vand.u32 %v1979, 4294901760
    %3860 = vmatmul.mubr.f32.gmra.mrb[0].mxu0 %v3859
    %v3861 = vpop.f32.mrb[0].mxu0
    %v3862 = vadd.f32 %v3589, %v3861
    %v3863 = vpop.f32.mrb[0].mxu0
    %3864 = vmatprep.mubr.f32.mxu0 0.0
    %v3865 = vand.u32 %v1980, 4294901760
    %3866 = vmatmul.mubr.f32.gmra.mrb[0].mxu0 %v3865
    %v3867 = vpop.f32.mrb[0].mxu0
    %v3868 = vadd.f32 %v3595, %v3867
    %v3869 = vpop.f32.mrb[0].mxu0
    %3870 = vmatprep.mubr.f32.mxu0 0.0
    %v3871 = vand.u32 %v1981, 4294901760
    %3872 = vmatmul.mubr.f32.gmra.mrb[0].mxu0 %v3871
    %v3873 = vpop.f32.mrb[0].mxu0
    %v3874 = vadd.f32 %v3601, %v3873
    %v3875 = vpop.f32.mrb[0].mxu0
    %3876 = vmatprep.mubr.f32.mxu0 0.0
    %v3877 = vand.u32 %v1982, 4294901760
    %3878 = vmatmul.mubr.f32.gmra.mrb[0].mxu0 %v3877
    %v3879 = vpop.f32.mrb[0].mxu0
    %v3880 = vadd.f32 %v3607, %v3879
    %v3881 = vpop.f32.mrb[0].mxu0
    %3882 = vmatprep.mubr.f32.mxu0 0.0
    %v3883 = vand.u32 %v1983, 4294901760
    %3884 = vmatmul.mubr.f32.gmra.mrb[0].mxu0 %v3883
    %v3885 = vpop.f32.mrb[0].mxu0
    %v3886 = vadd.f32 %v3613, %v3885
    %v3887 = vpop.f32.mrb[0].mxu0
    %3888 = vmatprep.mubr.f32.mxu0 0.0
    %v3889 = vand.u32 %v1984, 4294901760
    %3890 = vmatmul.mubr.f32.gmra.mrb[0].mxu0 %v3889
    %v3891 = vpop.f32.mrb[0].mxu0
    %v3892 = vadd.f32 %v3619, %v3891
    %v3893 = vpop.f32.mrb[0].mxu0
    %3894 = vmatprep.mubr.f32.mxu0 0.0
    %v3895 = vand.u32 %v1985, 4294901760
    %3896 = vmatmul.mubr.f32.gmra.mrb[0].mxu0 %v3895
    %v3897 = vpop.f32.mrb[0].mxu0
    %v3898 = vadd.f32 %v3625, %v3897
    %v3899 = vpop.f32.mrb[0].mxu0
    %3900 = vmatprep.mubr.f32.mxu0 0.0
    %v3901 = vand.u32 %v1986, 4294901760
    %3902 = vmatmul.mubr.f32.gmra.mrb[0].mxu0 %v3901
    %v3903 = vpop.f32.mrb[0].mxu0
    %v3904 = vadd.f32 %v3631, %v3903
    %v3905 = vpop.f32.mrb[0].mxu0
    %3906 = vmatprep.mubr.f32.mxu0 0.0
    %v3907 = vand.u32 %v1987, 4294901760
    %3908 = vmatmul.mubr.f32.gmra.mrb[0].mxu0 %v3907
    %v3909 = vpop.f32.mrb[0].mxu0
    %v3910 = vadd.f32 %v3637, %v3909
    %v3911 = vpop.f32.mrb[0].mxu0
    %3912 = vmatprep.mubr.f32.mxu0 0.0
    %v3913 = vand.u32 %v1988, 4294901760
    %3914 = vmatmul.mubr.f32.gmra.mrb[0].mxu0 %v3913
    %v3915 = vpop.f32.mrb[0].mxu0
    %v3916 = vadd.f32 %v3643, %v3915
    %v3917 = vpop.f32.mrb[0].mxu0
    %3918 = vmatprep.mubr.f32.mxu0 0.0
    %v3919 = vand.u32 %v1989, 4294901760
    %3920 = vmatmul.mubr.f32.gmra.mrb[0].mxu0 %v3919
    %v3921 = vpop.f32.mrb[0].mxu0
    %v3922 = vadd.f32 %v3649, %v3921
    %v3923 = vpop.f32.mrb[0].mxu0
    %3924 = vmatprep.mubr.f32.mxu0 0.0
    %v3925 = vand.u32 %v1990, 4294901760
    %3926 = vmatmul.mubr.f32.gmra.mrb[0].mxu0 %v3925
    %v3927 = vpop.f32.mrb[0].mxu0
    %v3928 = vadd.f32 %v3655, %v3927
    %v3929 = vpop.f32.mrb[0].mxu0
    %3930 = vmatprep.mubr.f32.mxu0 0.0
    %v3931 = vand.u32 %v1991, 4294901760
    %3932 = vmatmul.mubr.f32.gmra.mrb[0].mxu0 %v3931
    %v3933 = vpop.f32.mrb[0].mxu0
    %v3934 = vadd.f32 %v3661, %v3933
    %v3935 = vpop.f32.mrb[0].mxu0
    %3936 = vmatprep.mubr.f32.mxu0 0.0
    %v3937 = vand.u32 %v1992, 4294901760
    %3938 = vmatmul.mubr.f32.gmra.mrb[0].mxu0 %v3937
    %v3939 = vpop.f32.mrb[0].mxu0
    %v3940 = vadd.f32 %v3667, %v3939
    %v3941 = vpop.f32.mrb[0].mxu0
    %3942 = vmatprep.mubr.f32.mxu0 0.0
    %v3943 = vand.u32 %v1993, 4294901760
    %3944 = vmatmul.mubr.f32.gmra.mrb[0].mxu0 %v3943
    %v3945 = vpop.f32.mrb[0].mxu0
    %v3946 = vadd.f32 %v3673, %v3945
    %v3947 = vpop.f32.mrb[0].mxu0
    %3948 = vmatprep.mubr.f32.mxu0 0.0
    %v3949 = vand.u32 %v1994, 4294901760
    %3950 = vmatmul.mubr.f32.gmra.mrb[0].mxu0 %v3949
    %v3951 = vpop.f32.mrb[0].mxu0
    %v3952 = vadd.f32 %v3679, %v3951
    %v3953 = vpop.f32.mrb[0].mxu0
    %3954 = vmatprep.mubr.f32.mxu0 0.0
    %v3955 = vand.u32 %v1995, 4294901760
    %3956 = vmatmul.mubr.f32.gmra.mrb[0].mxu0 %v3955
    %v3957 = vpop.f32.mrb[0].mxu0
    %v3958 = vadd.f32 %v3685, %v3957
    %v3959 = vpop.f32.mrb[0].mxu0
    %3960 = vmatprep.mubr.f32.mxu0 0.0
    %v3961 = vand.u32 %v1996, 4294901760
    %3962 = vmatmul.mubr.f32.gmra.mrb[0].mxu0 %v3961
    %v3963 = vpop.f32.mrb[0].mxu0
    %v3964 = vadd.f32 %v3691, %v3963
    %v3965 = vpop.f32.mrb[0].mxu0
    %3966 = vmatprep.mubr.f32.mxu0 0.0
    %v3967 = vand.u32 %v1997, 4294901760
    %3968 = vmatmul.mubr.f32.gmra.mrb[0].mxu0 %v3967
    %v3969 = vpop.f32.mrb[0].mxu0
    %v3970 = vadd.f32 %v3697, %v3969
    %v3971 = vpop.f32.mrb[0].mxu0
    %3972 = vmatprep.mubr.f32.mxu0 0.0
    %v3973 = vand.u32 %v1998, 4294901760
    %3974 = vmatmul.mubr.f32.gmra.mrb[0].mxu0 %v3973
    %v3975 = vpop.f32.mrb[0].mxu0
    %v3976 = vadd.f32 %v3703, %v3975
    %v3977 = vpop.f32.mrb[0].mxu0
    %3978 = vmatprep.mubr.f32.mxu0 0.0
    %v3979 = vand.u32 %v1999, 4294901760
    %3980 = vmatmul.mubr.f32.gmra.mrb[0].mxu0 %v3979
    %v3981 = vpop.f32.mrb[0].mxu0
    %v3982 = vadd.f32 %v3709, %v3981
    %v3983 = vpop.f32.mrb[0].mxu0
    %3984 = vmatprep.mubr.f32.mxu0 0.0
    %v3985 = vand.u32 %v2000, 4294901760
    %3986 = vmatmul.mubr.f32.gmra.mrb[0].mxu0 %v3985
    %v3987 = vpop.f32.mrb[0].mxu0
    %v3988 = vadd.f32 %v3715, %v3987
    %v3989 = vpop.f32.mrb[0].mxu0
    %3990 = vdwg.mxu0
    %v3991 = vmax.f32 %v3802, 0.0
    %v3992 = vmax.f32 %v3808, 0.0
    %v3993 = vmax.f32 %v3814, 0.0
    %v3994 = vmax.f32 %v3820, 0.0
    %v3995 = vmax.f32 %v3826, 0.0
    %v3996 = vmax.f32 %v3832, 0.0
    %v3997 = vmax.f32 %v3838, 0.0
    %v3998 = vmax.f32 %v3844, 0.0
    %v3999 = vmax.f32 %v3850, 0.0
    %v4000 = vmax.f32 %v3856, 0.0
    %v4001 = vmax.f32 %v3862, 0.0
    %v4002 = vmax.f32 %v3868, 0.0
    %v4003 = vmax.f32 %v3874, 0.0
    %v4004 = vmax.f32 %v3880, 0.0
    %v4005 = vmax.f32 %v3886, 0.0
    %v4006 = vmax.f32 %v3892, 0.0
    %v4007 = vmax.f32 %v3898, 0.0
    %v4008 = vmax.f32 %v3904, 0.0
    %v4009 = vmax.f32 %v3910, 0.0
    %v4010 = vmax.f32 %v3916, 0.0
    %v4011 = vmax.f32 %v3922, 0.0
    %v4012 = vmax.f32 %v3928, 0.0
    %v4013 = vmax.f32 %v3934, 0.0
    %v4014 = vmax.f32 %v3940, 0.0
    %v4015 = vmax.f32 %v3946, 0.0
    %v4016 = vmax.f32 %v3952, 0.0
    %v4017 = vmax.f32 %v3958, 0.0
    %v4018 = vmax.f32 %v3964, 0.0
    %v4019 = vmax.f32 %v3970, 0.0
    %v4020 = vmax.f32 %v3976, 0.0
    %v4021 = vmax.f32 %v3982, 0.0
    %v4022 = vmax.f32 %v3988, 0.0
    %v4023 = vld [vmem:[%s3] sm:$0xff]
    %v4024 = vld [vmem:[%s3 + $0x8] sm:$0xff]
    %v4025 = vld [vmem:[%s3 + $0x10] sm:$0xff]
    %v4026 = vld [vmem:[%s3 + $0x18] sm:$0xff]
    %v4027 = vld [vmem:[%s3 + $0x20] sm:$0xff]
    %v4028 = vld [vmem:[%s3 + $0x28] sm:$0xff]
    %v4029 = vld [vmem:[%s3 + $0x30] sm:$0xff]
    %v4030 = vld [vmem:[%s3 + $0x38] sm:$0xff]
    %v4031 = vld [vmem:[%s3 + $0x40] sm:$0xff]
    %v4032 = vld [vmem:[%s3 + $0x48] sm:$0xff]
    %v4033 = vld [vmem:[%s3 + $0x50] sm:$0xff]
    %v4034 = vld [vmem:[%s3 + $0x58] sm:$0xff]
    %v4035 = vld [vmem:[%s3 + $0x60] sm:$0xff]
    %v4036 = vld [vmem:[%s3 + $0x68] sm:$0xff]
    %v4037 = vld [vmem:[%s3 + $0x70] sm:$0xff]
    %v4038 = vld [vmem:[%s3 + $0x78] sm:$0xff]
    %4039 = vmatprep.subr.mxu0 0.0
    %v4040 = vand.u32 %v4023, 4294901760
    %4041 = vmatpush1.msra.mxu0 %v4040
    %4042 = vmatprep.subr.mxu0 0.0
    %v4043 = vand.u32 %v4024, 4294901760
    %4044 = vmatpush1.msra.mxu0 %v4043
    %4045 = vmatprep.subr.mxu0 0.0
    %v4046 = vand.u32 %v4025, 4294901760
    %4047 = vmatpush1.msra.mxu0 %v4046
    %4048 = vmatprep.subr.mxu0 0.0
    %v4049 = vand.u32 %v4026, 4294901760
    %4050 = vmatpush1.msra.mxu0 %v4049
    %4051 = vmatprep.subr.mxu0 0.0
    %v4052 = vand.u32 %v4027, 4294901760
    %4053 = vmatpush1.msra.mxu0 %v4052
    %4054 = vmatprep.subr.mxu0 0.0
    %v4055 = vand.u32 %v4028, 4294901760
    %4056 = vmatpush1.msra.mxu0 %v4055
    %4057 = vmatprep.subr.mxu0 0.0
    %v4058 = vand.u32 %v4029, 4294901760
    %4059 = vmatpush1.msra.mxu0 %v4058
    %4060 = vmatprep.subr.mxu0 0.0
    %v4061 = vand.u32 %v4030, 4294901760
    %4062 = vmatpush1.msra.mxu0 %v4061
    %4063 = vmatprep.subr.mxu0 0.0
    %v4064 = vand.u32 %v4031, 4294901760
    %4065 = vmatpush1.msra.mxu0 %v4064
    %4066 = vmatprep.subr.mxu0 0.0
    %v4067 = vand.u32 %v4032, 4294901760
    %4068 = vmatpush1.msra.mxu0 %v4067
    %4069 = vmatprep.subr.mxu0 0.0
    %v4070 = vand.u32 %v4033, 4294901760
    %4071 = vmatpush1.msra.mxu0 %v4070
    %4072 = vmatprep.subr.mxu0 0.0
    %v4073 = vand.u32 %v4034, 4294901760
    %4074 = vmatpush1.msra.mxu0 %v4073
    %4075 = vmatprep.subr.mxu0 0.0
    %v4076 = vand.u32 %v4035, 4294901760
    %4077 = vmatpush1.msra.mxu0 %v4076
    %4078 = vmatprep.subr.mxu0 0.0
    %v4079 = vand.u32 %v4036, 4294901760
    %4080 = vmatpush1.msra.mxu0 %v4079
    %4081 = vmatprep.subr.mxu0 0.0
    %v4082 = vand.u32 %v4037, 4294901760
    %4083 = vmatpush1.msra.mxu0 %v4082
    %4084 = vmatprep.subr.mxu0 0.0
    %v4085 = vand.u32 %v4038, 4294901760
    %4086 = vmatpush1.msra.mxu0 %v4085
    %4087 = vmatprep.subr.mxu0 0.0
    %4088 = vmatpush1.msra.mxu0 0.0
    %4089 = vmatprep.subr.mxu0 0.0
    %4090 = vmatpush1.msra.mxu0 0.0
    %4091 = vmatprep.subr.mxu0 0.0
    %4092 = vmatpush1.msra.mxu0 0.0
    %4093 = vmatprep.subr.mxu0 0.0
    %4094 = vmatpush1.msra.mxu0 0.0
    %4095 = vmatprep.subr.mxu0 0.0
    %4096 = vmatpush1.msra.mxu0 0.0
    %4097 = vmatprep.subr.mxu0 0.0
    %4098 = vmatpush1.msra.mxu0 0.0
    %4099 = vmatprep.subr.mxu0 0.0
    %4100 = vmatpush1.msra.mxu0 0.0
    %4101 = vmatprep.subr.mxu0 0.0
    %4102 = vmatpush1.msra.mxu0 0.0
    %4103 = vmatprep.subr.mxu0 0.0
    %4104 = vmatpush1.msra.mxu0 0.0
    %4105 = vmatprep.subr.mxu0 0.0
    %4106 = vmatpush1.msra.mxu0 0.0
    %4107 = vmatprep.subr.mxu0 0.0
    %4108 = vmatpush1.msra.mxu0 0.0
    %4109 = vmatprep.subr.mxu0 0.0
    %4110 = vmatpush1.msra.mxu0 0.0
    %4111 = vmatprep.subr.mxu0 0.0
    %4112 = vmatpush1.msra.mxu0 0.0
    %4113 = vmatprep.subr.mxu0 0.0
    %4114 = vmatpush1.msra.mxu0 0.0
    %4115 = vmatprep.subr.mxu0 0.0
    %4116 = vmatpush1.msra.mxu0 0.0
    %4117 = vmatprep.subr.mxu0 0.0
    %4118 = vmatpush1.msra.mxu0 0.0
    %4119 = vmatprep.mubr.f32.mxu0 0.0
    %v4120 = vand.u32 %v3991, 4294901760
    %v4121 = vsub.f32 %v3991, %v4120
    %v4122 = vand.u32 %v4121, 4294901760
    %v4123 = vsub.f32 %v4121, %v4122
    %v4124 = vand.u32 %v4123, 4294901760
    %4125 = vmatmul.mubr.f32.gmra.mrb[0].mxu0 %v4124
    %v4126 = vpop.f32.mrb[0].mxu0
    %v4127 = vadd.f32 0.0, %v4126
    %v4128 = vpop.f32.mrb[0].mxu0
    %4129 = vmatprep.mubr.f32.mxu0 0.0
    %v4130 = vand.u32 %v3992, 4294901760
    %v4131 = vsub.f32 %v3992, %v4130
    %v4132 = vand.u32 %v4131, 4294901760
    %v4133 = vsub.f32 %v4131, %v4132
    %v4134 = vand.u32 %v4133, 4294901760
    %4135 = vmatmul.mubr.f32.gmra.mrb[0].mxu0 %v4134
    %v4136 = vpop.f32.mrb[0].mxu0
    %v4137 = vadd.f32 0.0, %v4136
    %v4138 = vpop.f32.mrb[0].mxu0
    %4139 = vmatprep.mubr.f32.mxu0 0.0
    %v4140 = vand.u32 %v3993, 4294901760
    %v4141 = vsub.f32 %v3993, %v4140
    %v4142 = vand.u32 %v4141, 4294901760
    %v4143 = vsub.f32 %v4141, %v4142
    %v4144 = vand.u32 %v4143, 4294901760
    %4145 = vmatmul.mubr.f32.gmra.mrb[0].mxu0 %v4144
    %v4146 = vpop.f32.mrb[0].mxu0
    %v4147 = vadd.f32 0.0, %v4146
    %v4148 = vpop.f32.mrb[0].mxu0
    %4149 = vmatprep.mubr.f32.mxu0 0.0
    %v4150 = vand.u32 %v3994, 4294901760
    %v4151 = vsub.f32 %v3994, %v4150
    %v4152 = vand.u32 %v4151, 4294901760
    %v4153 = vsub.f32 %v4151, %v4152
    %v4154 = vand.u32 %v4153, 4294901760
    %4155 = vmatmul.mubr.f32.gmra.mrb[0].mxu0 %v4154
    %v4156 = vpop.f32.mrb[0].mxu0
    %v4157 = vadd.f32 0.0, %v4156
    %v4158 = vpop.f32.mrb[0].mxu0
    %4159 = vmatprep.mubr.f32.mxu0 0.0
    %v4160 = vand.u32 %v3995, 4294901760
    %v4161 = vsub.f32 %v3995, %v4160
    %v4162 = vand.u32 %v4161, 4294901760
    %v4163 = vsub.f32 %v4161, %v4162
    %v4164 = vand.u32 %v4163, 4294901760
    %4165 = vmatmul.mubr.f32.gmra.mrb[0].mxu0 %v4164
    %v4166 = vpop.f32.mrb[0].mxu0
    %v4167 = vadd.f32 0.0, %v4166
    %v4168 = vpop.f32.mrb[0].mxu0
    %4169 = vmatprep.mubr.f32.mxu0 0.0
    %v4170 = vand.u32 %v3996, 4294901760
    %v4171 = vsub.f32 %v3996, %v4170
    %v4172 = vand.u32 %v4171, 4294901760
    %v4173 = vsub.f32 %v4171, %v4172
    %v4174 = vand.u32 %v4173, 4294901760
    %4175 = vmatmul.mubr.f32.gmra.mrb[0].mxu0 %v4174
    %v4176 = vpop.f32.mrb[0].mxu0
    %v4177 = vadd.f32 0.0, %v4176
    %v4178 = vpop.f32.mrb[0].mxu0
    %4179 = vmatprep.mubr.f32.mxu0 0.0
    %v4180 = vand.u32 %v3997, 4294901760
    %v4181 = vsub.f32 %v3997, %v4180
    %v4182 = vand.u32 %v4181, 4294901760
    %v4183 = vsub.f32 %v4181, %v4182
    %v4184 = vand.u32 %v4183, 4294901760
    %4185 = vmatmul.mubr.f32.gmra.mrb[0].mxu0 %v4184
    %v4186 = vpop.f32.mrb[0].mxu0
    %v4187 = vadd.f32 0.0, %v4186
    %v4188 = vpop.f32.mrb[0].mxu0
    %4189 = vmatprep.mubr.f32.mxu0 0.0
    %v4190 = vand.u32 %v3998, 4294901760
    %v4191 = vsub.f32 %v3998, %v4190
    %v4192 = vand.u32 %v4191, 4294901760
    %v4193 = vsub.f32 %v4191, %v4192
    %v4194 = vand.u32 %v4193, 4294901760
    %4195 = vmatmul.mubr.f32.gmra.mrb[0].mxu0 %v4194
    %v4196 = vpop.f32.mrb[0].mxu0
    %v4197 = vadd.f32 0.0, %v4196
    %v4198 = vpop.f32.mrb[0].mxu0
    %4199 = vmatprep.mubr.f32.mxu0 0.0
    %v4200 = vand.u32 %v3999, 4294901760
    %v4201 = vsub.f32 %v3999, %v4200
    %v4202 = vand.u32 %v4201, 4294901760
    %v4203 = vsub.f32 %v4201, %v4202
    %v4204 = vand.u32 %v4203, 4294901760
    %4205 = vmatmul.mubr.f32.gmra.mrb[0].mxu0 %v4204
    %v4206 = vpop.f32.mrb[0].mxu0
    %v4207 = vadd.f32 0.0, %v4206
    %v4208 = vpop.f32.mrb[0].mxu0
    %4209 = vmatprep.mubr.f32.mxu0 0.0
    %v4210 = vand.u32 %v4000, 4294901760
    %v4211 = vsub.f32 %v4000, %v4210
    %v4212 = vand.u32 %v4211, 4294901760
    %v4213 = vsub.f32 %v4211, %v4212
    %v4214 = vand.u32 %v4213, 4294901760
    %4215 = vmatmul.mubr.f32.gmra.mrb[0].mxu0 %v4214
    %v4216 = vpop.f32.mrb[0].mxu0
    %v4217 = vadd.f32 0.0, %v4216
    %v4218 = vpop.f32.mrb[0].mxu0
    %4219 = vmatprep.mubr.f32.mxu0 0.0
    %v4220 = vand.u32 %v4001, 4294901760
    %v4221 = vsub.f32 %v4001, %v4220
    %v4222 = vand.u32 %v4221, 4294901760
    %v4223 = vsub.f32 %v4221, %v4222
    %v4224 = vand.u32 %v4223, 4294901760
    %4225 = vmatmul.mubr.f32.gmra.mrb[0].mxu0 %v4224
    %v4226 = vpop.f32.mrb[0].mxu0
    %v4227 = vadd.f32 0.0, %v4226
    %v4228 = vpop.f32.mrb[0].mxu0
    %4229 = vmatprep.mubr.f32.mxu0 0.0
    %v4230 = vand.u32 %v4002, 4294901760
    %v4231 = vsub.f32 %v4002, %v4230
    %v4232 = vand.u32 %v4231, 4294901760
    %v4233 = vsub.f32 %v4231, %v4232
    %v4234 = vand.u32 %v4233, 4294901760
    %4235 = vmatmul.mubr.f32.gmra.mrb[0].mxu0 %v4234
    %v4236 = vpop.f32.mrb[0].mxu0
    %v4237 = vadd.f32 0.0, %v4236
    %v4238 = vpop.f32.mrb[0].mxu0
    %4239 = vmatprep.mubr.f32.mxu0 0.0
    %v4240 = vand.u32 %v4003, 4294901760
    %v4241 = vsub.f32 %v4003, %v4240
    %v4242 = vand.u32 %v4241, 4294901760
    %v4243 = vsub.f32 %v4241, %v4242
    %v4244 = vand.u32 %v4243, 4294901760
    %4245 = vmatmul.mubr.f32.gmra.mrb[0].mxu0 %v4244
    %v4246 = vpop.f32.mrb[0].mxu0
    %v4247 = vadd.f32 0.0, %v4246
    %v4248 = vpop.f32.mrb[0].mxu0
    %4249 = vmatprep.mubr.f32.mxu0 0.0
    %v4250 = vand.u32 %v4004, 4294901760
    %v4251 = vsub.f32 %v4004, %v4250
    %v4252 = vand.u32 %v4251, 4294901760
    %v4253 = vsub.f32 %v4251, %v4252
    %v4254 = vand.u32 %v4253, 4294901760
    %4255 = vmatmul.mubr.f32.gmra.mrb[0].mxu0 %v4254
    %v4256 = vpop.f32.mrb[0].mxu0
    %v4257 = vadd.f32 0.0, %v4256
    %v4258 = vpop.f32.mrb[0].mxu0
    %4259 = vmatprep.mubr.f32.mxu0 0.0
    %v4260 = vand.u32 %v4005, 4294901760
    %v4261 = vsub.f32 %v4005, %v4260
    %v4262 = vand.u32 %v4261, 4294901760
    %v4263 = vsub.f32 %v4261, %v4262
    %v4264 = vand.u32 %v4263, 4294901760
    %4265 = vmatmul.mubr.f32.gmra.mrb[0].mxu0 %v4264
    %v4266 = vpop.f32.mrb[0].mxu0
    %v4267 = vadd.f32 0.0, %v4266
    %v4268 = vpop.f32.mrb[0].mxu0
    %4269 = vmatprep.mubr.f32.mxu0 0.0
    %v4270 = vand.u32 %v4006, 4294901760
    %v4271 = vsub.f32 %v4006, %v4270
    %v4272 = vand.u32 %v4271, 4294901760
    %v4273 = vsub.f32 %v4271, %v4272
    %v4274 = vand.u32 %v4273, 4294901760
    %4275 = vmatmul.mubr.f32.gmra.mrb[0].mxu0 %v4274
    %v4276 = vpop.f32.mrb[0].mxu0
    %v4277 = vadd.f32 0.0, %v4276
    %v4278 = vpop.f32.mrb[0].mxu0
    %4279 = vmatprep.mubr.f32.mxu0 0.0
    %v4280 = vand.u32 %v4007, 4294901760
    %v4281 = vsub.f32 %v4007, %v4280
    %v4282 = vand.u32 %v4281, 4294901760
    %v4283 = vsub.f32 %v4281, %v4282
    %v4284 = vand.u32 %v4283, 4294901760
    %4285 = vmatmul.mubr.f32.gmra.mrb[0].mxu0 %v4284
    %v4286 = vpop.f32.mrb[0].mxu0
    %v4287 = vadd.f32 0.0, %v4286
    %v4288 = vpop.f32.mrb[0].mxu0
    %4289 = vmatprep.mubr.f32.mxu0 0.0
    %v4290 = vand.u32 %v4008, 4294901760
    %v4291 = vsub.f32 %v4008, %v4290
    %v4292 = vand.u32 %v4291, 4294901760
    %v4293 = vsub.f32 %v4291, %v4292
    %v4294 = vand.u32 %v4293, 4294901760
    %4295 = vmatmul.mubr.f32.gmra.mrb[0].mxu0 %v4294
    %v4296 = vpop.f32.mrb[0].mxu0
    %v4297 = vadd.f32 0.0, %v4296
    %v4298 = vpop.f32.mrb[0].mxu0
    %4299 = vmatprep.mubr.f32.mxu0 0.0
    %v4300 = vand.u32 %v4009, 4294901760
    %v4301 = vsub.f32 %v4009, %v4300
    %v4302 = vand.u32 %v4301, 4294901760
    %v4303 = vsub.f32 %v4301, %v4302
    %v4304 = vand.u32 %v4303, 4294901760
    %4305 = vmatmul.mubr.f32.gmra.mrb[0].mxu0 %v4304
    %v4306 = vpop.f32.mrb[0].mxu0
    %v4307 = vadd.f32 0.0, %v4306
    %v4308 = vpop.f32.mrb[0].mxu0
    %4309 = vmatprep.mubr.f32.mxu0 0.0
    %v4310 = vand.u32 %v4010, 4294901760
    %v4311 = vsub.f32 %v4010, %v4310
    %v4312 = vand.u32 %v4311, 4294901760
    %v4313 = vsub.f32 %v4311, %v4312
    %v4314 = vand.u32 %v4313, 4294901760
    %4315 = vmatmul.mubr.f32.gmra.mrb[0].mxu0 %v4314
    %v4316 = vpop.f32.mrb[0].mxu0
    %v4317 = vadd.f32 0.0, %v4316
    %v4318 = vpop.f32.mrb[0].mxu0
    %4319 = vmatprep.mubr.f32.mxu0 0.0
    %v4320 = vand.u32 %v4011, 4294901760
    %v4321 = vsub.f32 %v4011, %v4320
    %v4322 = vand.u32 %v4321, 4294901760
    %v4323 = vsub.f32 %v4321, %v4322
    %v4324 = vand.u32 %v4323, 4294901760
    %4325 = vmatmul.mubr.f32.gmra.mrb[0].mxu0 %v4324
    %v4326 = vpop.f32.mrb[0].mxu0
    %v4327 = vadd.f32 0.0, %v4326
    %v4328 = vpop.f32.mrb[0].mxu0
    %4329 = vmatprep.mubr.f32.mxu0 0.0
    %v4330 = vand.u32 %v4012, 4294901760
    %v4331 = vsub.f32 %v4012, %v4330
    %v4332 = vand.u32 %v4331, 4294901760
    %v4333 = vsub.f32 %v4331, %v4332
    %v4334 = vand.u32 %v4333, 4294901760
    %4335 = vmatmul.mubr.f32.gmra.mrb[0].mxu0 %v4334
    %v4336 = vpop.f32.mrb[0].mxu0
    %v4337 = vadd.f32 0.0, %v4336
    %v4338 = vpop.f32.mrb[0].mxu0
    %4339 = vmatprep.mubr.f32.mxu0 0.0
    %v4340 = vand.u32 %v4013, 4294901760
    %v4341 = vsub.f32 %v4013, %v4340
    %v4342 = vand.u32 %v4341, 4294901760
    %v4343 = vsub.f32 %v4341, %v4342
    %v4344 = vand.u32 %v4343, 4294901760
    %4345 = vmatmul.mubr.f32.gmra.mrb[0].mxu0 %v4344
    %v4346 = vpop.f32.mrb[0].mxu0
    %v4347 = vadd.f32 0.0, %v4346
    %v4348 = vpop.f32.mrb[0].mxu0
    %4349 = vmatprep.mubr.f32.mxu0 0.0
    %v4350 = vand.u32 %v4014, 4294901760
    %v4351 = vsub.f32 %v4014, %v4350
    %v4352 = vand.u32 %v4351, 4294901760
    %v4353 = vsub.f32 %v4351, %v4352
    %v4354 = vand.u32 %v4353, 4294901760
    %4355 = vmatmul.mubr.f32.gmra.mrb[0].mxu0 %v4354
    %v4356 = vpop.f32.mrb[0].mxu0
    %v4357 = vadd.f32 0.0, %v4356
    %v4358 = vpop.f32.mrb[0].mxu0
    %4359 = vmatprep.mubr.f32.mxu0 0.0
    %v4360 = vand.u32 %v4015, 4294901760
    %v4361 = vsub.f32 %v4015, %v4360
    %v4362 = vand.u32 %v4361, 4294901760
    %v4363 = vsub.f32 %v4361, %v4362
    %v4364 = vand.u32 %v4363, 4294901760
    %4365 = vmatmul.mubr.f32.gmra.mrb[0].mxu0 %v4364
    %v4366 = vpop.f32.mrb[0].mxu0
    %v4367 = vadd.f32 0.0, %v4366
    %v4368 = vpop.f32.mrb[0].mxu0
    %4369 = vmatprep.mubr.f32.mxu0 0.0
    %v4370 = vand.u32 %v4016, 4294901760
    %v4371 = vsub.f32 %v4016, %v4370
    %v4372 = vand.u32 %v4371, 4294901760
    %v4373 = vsub.f32 %v4371, %v4372
    %v4374 = vand.u32 %v4373, 4294901760
    %4375 = vmatmul.mubr.f32.gmra.mrb[0].mxu0 %v4374
    %v4376 = vpop.f32.mrb[0].mxu0
    %v4377 = vadd.f32 0.0, %v4376
    %v4378 = vpop.f32.mrb[0].mxu0
    %4379 = vmatprep.mubr.f32.mxu0 0.0
    %v4380 = vand.u32 %v4017, 4294901760
    %v4381 = vsub.f32 %v4017, %v4380
    %v4382 = vand.u32 %v4381, 4294901760
    %v4383 = vsub.f32 %v4381, %v4382
    %v4384 = vand.u32 %v4383, 4294901760
    %4385 = vmatmul.mubr.f32.gmra.mrb[0].mxu0 %v4384
    %v4386 = vpop.f32.mrb[0].mxu0
    %v4387 = vadd.f32 0.0, %v4386
    %v4388 = vpop.f32.mrb[0].mxu0
    %4389 = vmatprep.mubr.f32.mxu0 0.0
    %v4390 = vand.u32 %v4018, 4294901760
    %v4391 = vsub.f32 %v4018, %v4390
    %v4392 = vand.u32 %v4391, 4294901760
    %v4393 = vsub.f32 %v4391, %v4392
    %v4394 = vand.u32 %v4393, 4294901760
    %4395 = vmatmul.mubr.f32.gmra.mrb[0].mxu0 %v4394
    %v4396 = vpop.f32.mrb[0].mxu0
    %v4397 = vadd.f32 0.0, %v4396
    %v4398 = vpop.f32.mrb[0].mxu0
    %4399 = vmatprep.mubr.f32.mxu0 0.0
    %v4400 = vand.u32 %v4019, 4294901760
    %v4401 = vsub.f32 %v4019, %v4400
    %v4402 = vand.u32 %v4401, 4294901760
    %v4403 = vsub.f32 %v4401, %v4402
    %v4404 = vand.u32 %v4403, 4294901760
    %4405 = vmatmul.mubr.f32.gmra.mrb[0].mxu0 %v4404
    %v4406 = vpop.f32.mrb[0].mxu0
    %v4407 = vadd.f32 0.0, %v4406
    %v4408 = vpop.f32.mrb[0].mxu0
    %4409 = vmatprep.mubr.f32.mxu0 0.0
    %v4410 = vand.u32 %v4020, 4294901760
    %v4411 = vsub.f32 %v4020, %v4410
    %v4412 = vand.u32 %v4411, 4294901760
    %v4413 = vsub.f32 %v4411, %v4412
    %v4414 = vand.u32 %v4413, 4294901760
    %4415 = vmatmul.mubr.f32.gmra.mrb[0].mxu0 %v4414
    %v4416 = vpop.f32.mrb[0].mxu0
    %v4417 = vadd.f32 0.0, %v4416
    %v4418 = vpop.f32.mrb[0].mxu0
    %4419 = vmatprep.mubr.f32.mxu0 0.0
    %v4420 = vand.u32 %v4021, 4294901760
    %v4421 = vsub.f32 %v4021, %v4420
    %v4422 = vand.u32 %v4421, 4294901760
    %v4423 = vsub.f32 %v4421, %v4422
    %v4424 = vand.u32 %v4423, 4294901760
    %4425 = vmatmul.mubr.f32.gmra.mrb[0].mxu0 %v4424
    %v4426 = vpop.f32.mrb[0].mxu0
    %v4427 = vadd.f32 0.0, %v4426
    %v4428 = vpop.f32.mrb[0].mxu0
    %4429 = vmatprep.mubr.f32.mxu0 0.0
    %v4430 = vand.u32 %v4022, 4294901760
    %v4431 = vsub.f32 %v4022, %v4430
    %v4432 = vand.u32 %v4431, 4294901760
    %v4433 = vsub.f32 %v4431, %v4432
    %v4434 = vand.u32 %v4433, 4294901760
    %4435 = vmatmul.mubr.f32.gmra.mrb[0].mxu0 %v4434
    %v4436 = vpop.f32.mrb[0].mxu0
    %v4437 = vadd.f32 0.0, %v4436
    %v4438 = vpop.f32.mrb[0].mxu0
    %4439 = vdwg.mxu0
    %4440 = vmatprep.subr.mxu0 0.0
    %v4441 = vand.u32 %v4023, 4294901760
    %v4442 = vsub.f32 %v4023, %v4441
    %v4443 = vand.u32 %v4442, 4294901760
    %v4444 = vsub.f32 %v4442, %v4443
    %v4445 = vand.u32 %v4444, 4294901760
    %4446 = vmatpush1.msra.mxu0 %v4445
    %4447 = vmatprep.subr.mxu0 0.0
    %v4448 = vand.u32 %v4024, 4294901760
    %v4449 = vsub.f32 %v4024, %v4448
    %v4450 = vand.u32 %v4449, 4294901760
    %v4451 = vsub.f32 %v4449, %v4450
    %v4452 = vand.u32 %v4451, 4294901760
    %4453 = vmatpush1.msra.mxu0 %v4452
    %4454 = vmatprep.subr.mxu0 0.0
    %v4455 = vand.u32 %v4025, 4294901760
    %v4456 = vsub.f32 %v4025, %v4455
    %v4457 = vand.u32 %v4456, 4294901760
    %v4458 = vsub.f32 %v4456, %v4457
    %v4459 = vand.u32 %v4458, 4294901760
    %4460 = vmatpush1.msra.mxu0 %v4459
    %4461 = vmatprep.subr.mxu0 0.0
    %v4462 = vand.u32 %v4026, 4294901760
    %v4463 = vsub.f32 %v4026, %v4462
    %v4464 = vand.u32 %v4463, 4294901760
    %v4465 = vsub.f32 %v4463, %v4464
    %v4466 = vand.u32 %v4465, 4294901760
    %4467 = vmatpush1.msra.mxu0 %v4466
    %4468 = vmatprep.subr.mxu0 0.0
    %v4469 = vand.u32 %v4027, 4294901760
    %v4470 = vsub.f32 %v4027, %v4469
    %v4471 = vand.u32 %v4470, 4294901760
    %v4472 = vsub.f32 %v4470, %v4471
    %v4473 = vand.u32 %v4472, 4294901760
    %4474 = vmatpush1.msra.mxu0 %v4473
    %4475 = vmatprep.subr.mxu0 0.0
    %v4476 = vand.u32 %v4028, 4294901760
    %v4477 = vsub.f32 %v4028, %v4476
    %v4478 = vand.u32 %v4477, 4294901760
    %v4479 = vsub.f32 %v4477, %v4478
    %v4480 = vand.u32 %v4479, 4294901760
    %4481 = vmatpush1.msra.mxu0 %v4480
    %4482 = vmatprep.subr.mxu0 0.0
    %v4483 = vand.u32 %v4029, 4294901760
    %v4484 = vsub.f32 %v4029, %v4483
    %v4485 = vand.u32 %v4484, 4294901760
    %v4486 = vsub.f32 %v4484, %v4485
    %v4487 = vand.u32 %v4486, 4294901760
    %4488 = vmatpush1.msra.mxu0 %v4487
    %4489 = vmatprep.subr.mxu0 0.0
    %v4490 = vand.u32 %v4030, 4294901760
    %v4491 = vsub.f32 %v4030, %v4490
    %v4492 = vand.u32 %v4491, 4294901760
    %v4493 = vsub.f32 %v4491, %v4492
    %v4494 = vand.u32 %v4493, 4294901760
    %4495 = vmatpush1.msra.mxu0 %v4494
    %4496 = vmatprep.subr.mxu0 0.0
    %v4497 = vand.u32 %v4031, 4294901760
    %v4498 = vsub.f32 %v4031, %v4497
    %v4499 = vand.u32 %v4498, 4294901760
    %v4500 = vsub.f32 %v4498, %v4499
    %v4501 = vand.u32 %v4500, 4294901760
    %4502 = vmatpush1.msra.mxu0 %v4501
    %4503 = vmatprep.subr.mxu0 0.0
    %v4504 = vand.u32 %v4032, 4294901760
    %v4505 = vsub.f32 %v4032, %v4504
    %v4506 = vand.u32 %v4505, 4294901760
    %v4507 = vsub.f32 %v4505, %v4506
    %v4508 = vand.u32 %v4507, 4294901760
    %4509 = vmatpush1.msra.mxu0 %v4508
    %4510 = vmatprep.subr.mxu0 0.0
    %v4511 = vand.u32 %v4033, 4294901760
    %v4512 = vsub.f32 %v4033, %v4511
    %v4513 = vand.u32 %v4512, 4294901760
    %v4514 = vsub.f32 %v4512, %v4513
    %v4515 = vand.u32 %v4514, 4294901760
    %4516 = vmatpush1.msra.mxu0 %v4515
    %4517 = vmatprep.subr.mxu0 0.0
    %v4518 = vand.u32 %v4034, 4294901760
    %v4519 = vsub.f32 %v4034, %v4518
    %v4520 = vand.u32 %v4519, 4294901760
    %v4521 = vsub.f32 %v4519, %v4520
    %v4522 = vand.u32 %v4521, 4294901760
    %4523 = vmatpush1.msra.mxu0 %v4522
    %4524 = vmatprep.subr.mxu0 0.0
    %v4525 = vand.u32 %v4035, 4294901760
    %v4526 = vsub.f32 %v4035, %v4525
    %v4527 = vand.u32 %v4526, 4294901760
    %v4528 = vsub.f32 %v4526, %v4527
    %v4529 = vand.u32 %v4528, 4294901760
    %4530 = vmatpush1.msra.mxu0 %v4529
    %4531 = vmatprep.subr.mxu0 0.0
    %v4532 = vand.u32 %v4036, 4294901760
    %v4533 = vsub.f32 %v4036, %v4532
    %v4534 = vand.u32 %v4533, 4294901760
    %v4535 = vsub.f32 %v4533, %v4534
    %v4536 = vand.u32 %v4535, 4294901760
    %4537 = vmatpush1.msra.mxu0 %v4536
    %4538 = vmatprep.subr.mxu0 0.0
    %v4539 = vand.u32 %v4037, 4294901760
    %v4540 = vsub.f32 %v4037, %v4539
    %v4541 = vand.u32 %v4540, 4294901760
    %v4542 = vsub.f32 %v4540, %v4541
    %v4543 = vand.u32 %v4542, 4294901760
    %4544 = vmatpush1.msra.mxu0 %v4543
    %4545 = vmatprep.subr.mxu0 0.0
    %v4546 = vand.u32 %v4038, 4294901760
    %v4547 = vsub.f32 %v4038, %v4546
    %v4548 = vand.u32 %v4547, 4294901760
    %v4549 = vsub.f32 %v4547, %v4548
    %v4550 = vand.u32 %v4549, 4294901760
    %4551 = vmatpush1.msra.mxu0 %v4550
    %4552 = vmatprep.subr.mxu0 0.0
    %4553 = vmatpush1.msra.mxu0 0.0
    %4554 = vmatprep.subr.mxu0 0.0
    %4555 = vmatpush1.msra.mxu0 0.0
    %4556 = vmatprep.subr.mxu0 0.0
    %4557 = vmatpush1.msra.mxu0 0.0
    %4558 = vmatprep.subr.mxu0 0.0
    %4559 = vmatpush1.msra.mxu0 0.0
    %4560 = vmatprep.subr.mxu0 0.0
    %4561 = vmatpush1.msra.mxu0 0.0
    %4562 = vmatprep.subr.mxu0 0.0
    %4563 = vmatpush1.msra.mxu0 0.0
    %4564 = vmatprep.subr.mxu0 0.0
    %4565 = vmatpush1.msra.mxu0 0.0
    %4566 = vmatprep.subr.mxu0 0.0
    %4567 = vmatpush1.msra.mxu0 0.0
    %4568 = vmatprep.subr.mxu0 0.0
    %4569 = vmatpush1.msra.mxu0 0.0
    %4570 = vmatprep.subr.mxu0 0.0
    %4571 = vmatpush1.msra.mxu0 0.0
    %4572 = vmatprep.subr.mxu0 0.0
    %4573 = vmatpush1.msra.mxu0 0.0
    %4574 = vmatprep.subr.mxu0 0.0
    %4575 = vmatpush1.msra.mxu0 0.0
    %4576 = vmatprep.subr.mxu0 0.0
    %4577 = vmatpush1.msra.mxu0 0.0
    %4578 = vmatprep.subr.mxu0 0.0
    %4579 = vmatpush1.msra.mxu0 0.0
    %4580 = vmatprep.subr.mxu0 0.0
    %4581 = vmatpush1.msra.mxu0 0.0
    %4582 = vmatprep.subr.mxu0 0.0
    %4583 = vmatpush1.msra.mxu0 0.0
    %4584 = vmatprep.mubr.f32.mxu0 0.0
    %v4585 = vand.u32 %v3991, 4294901760
    %4586 = vmatmul.mubr.f32.gmra.mrb[0].mxu0 %v4585
    %v4587 = vpop.f32.mrb[0].mxu0
    %v4588 = vadd.f32 %v4127, %v4587
    %v4589 = vpop.f32.mrb[0].mxu0
    %4590 = vmatprep.mubr.f32.mxu0 0.0
    %v4591 = vand.u32 %v3992, 4294901760
    %4592 = vmatmul.mubr.f32.gmra.mrb[0].mxu0 %v4591
    %v4593 = vpop.f32.mrb[0].mxu0
    %v4594 = vadd.f32 %v4137, %v4593
    %v4595 = vpop.f32.mrb[0].mxu0
    %4596 = vmatprep.mubr.f32.mxu0 0.0
    %v4597 = vand.u32 %v3993, 4294901760
    %4598 = vmatmul.mubr.f32.gmra.mrb[0].mxu0 %v4597
    %v4599 = vpop.f32.mrb[0].mxu0
    %v4600 = vadd.f32 %v4147, %v4599
    %v4601 = vpop.f32.mrb[0].mxu0
    %4602 = vmatprep.mubr.f32.mxu0 0.0
    %v4603 = vand.u32 %v3994, 4294901760
    %4604 = vmatmul.mubr.f32.gmra.mrb[0].mxu0 %v4603
    %v4605 = vpop.f32.mrb[0].mxu0
    %v4606 = vadd.f32 %v4157, %v4605
    %v4607 = vpop.f32.mrb[0].mxu0
    %4608 = vmatprep.mubr.f32.mxu0 0.0
    %v4609 = vand.u32 %v3995, 4294901760
    %4610 = vmatmul.mubr.f32.gmra.mrb[0].mxu0 %v4609
    %v4611 = vpop.f32.mrb[0].mxu0
    %v4612 = vadd.f32 %v4167, %v4611
    %v4613 = vpop.f32.mrb[0].mxu0
    %4614 = vmatprep.mubr.f32.mxu0 0.0
    %v4615 = vand.u32 %v3996, 4294901760
    %4616 = vmatmul.mubr.f32.gmra.mrb[0].mxu0 %v4615
    %v4617 = vpop.f32.mrb[0].mxu0
    %v4618 = vadd.f32 %v4177, %v4617
    %v4619 = vpop.f32.mrb[0].mxu0
    %4620 = vmatprep.mubr.f32.mxu0 0.0
    %v4621 = vand.u32 %v3997, 4294901760
    %4622 = vmatmul.mubr.f32.gmra.mrb[0].mxu0 %v4621
    %v4623 = vpop.f32.mrb[0].mxu0
    %v4624 = vadd.f32 %v4187, %v4623
    %v4625 = vpop.f32.mrb[0].mxu0
    %4626 = vmatprep.mubr.f32.mxu0 0.0
    %v4627 = vand.u32 %v3998, 4294901760
    %4628 = vmatmul.mubr.f32.gmra.mrb[0].mxu0 %v4627
    %v4629 = vpop.f32.mrb[0].mxu0
    %v4630 = vadd.f32 %v4197, %v4629
    %v4631 = vpop.f32.mrb[0].mxu0
    %4632 = vmatprep.mubr.f32.mxu0 0.0
    %v4633 = vand.u32 %v3999, 4294901760
    %4634 = vmatmul.mubr.f32.gmra.mrb[0].mxu0 %v4633
    %v4635 = vpop.f32.mrb[0].mxu0
    %v4636 = vadd.f32 %v4207, %v4635
    %v4637 = vpop.f32.mrb[0].mxu0
    %4638 = vmatprep.mubr.f32.mxu0 0.0
    %v4639 = vand.u32 %v4000, 4294901760
    %4640 = vmatmul.mubr.f32.gmra.mrb[0].mxu0 %v4639
    %v4641 = vpop.f32.mrb[0].mxu0
    %v4642 = vadd.f32 %v4217, %v4641
    %v4643 = vpop.f32.mrb[0].mxu0
    %4644 = vmatprep.mubr.f32.mxu0 0.0
    %v4645 = vand.u32 %v4001, 4294901760
    %4646 = vmatmul.mubr.f32.gmra.mrb[0].mxu0 %v4645
    %v4647 = vpop.f32.mrb[0].mxu0
    %v4648 = vadd.f32 %v4227, %v4647
    %v4649 = vpop.f32.mrb[0].mxu0
    %4650 = vmatprep.mubr.f32.mxu0 0.0
    %v4651 = vand.u32 %v4002, 4294901760
    %4652 = vmatmul.mubr.f32.gmra.mrb[0].mxu0 %v4651
    %v4653 = vpop.f32.mrb[0].mxu0
    %v4654 = vadd.f32 %v4237, %v4653
    %v4655 = vpop.f32.mrb[0].mxu0
    %4656 = vmatprep.mubr.f32.mxu0 0.0
    %v4657 = vand.u32 %v4003, 4294901760
    %4658 = vmatmul.mubr.f32.gmra.mrb[0].mxu0 %v4657
    %v4659 = vpop.f32.mrb[0].mxu0
    %v4660 = vadd.f32 %v4247, %v4659
    %v4661 = vpop.f32.mrb[0].mxu0
    %4662 = vmatprep.mubr.f32.mxu0 0.0
    %v4663 = vand.u32 %v4004, 4294901760
    %4664 = vmatmul.mubr.f32.gmra.mrb[0].mxu0 %v4663
    %v4665 = vpop.f32.mrb[0].mxu0
    %v4666 = vadd.f32 %v4257, %v4665
    %v4667 = vpop.f32.mrb[0].mxu0
    %4668 = vmatprep.mubr.f32.mxu0 0.0
    %v4669 = vand.u32 %v4005, 4294901760
    %4670 = vmatmul.mubr.f32.gmra.mrb[0].mxu0 %v4669
    %v4671 = vpop.f32.mrb[0].mxu0
    %v4672 = vadd.f32 %v4267, %v4671
    %v4673 = vpop.f32.mrb[0].mxu0
    %4674 = vmatprep.mubr.f32.mxu0 0.0
    %v4675 = vand.u32 %v4006, 4294901760
    %4676 = vmatmul.mubr.f32.gmra.mrb[0].mxu0 %v4675
    %v4677 = vpop.f32.mrb[0].mxu0
    %v4678 = vadd.f32 %v4277, %v4677
    %v4679 = vpop.f32.mrb[0].mxu0
    %4680 = vmatprep.mubr.f32.mxu0 0.0
    %v4681 = vand.u32 %v4007, 4294901760
    %4682 = vmatmul.mubr.f32.gmra.mrb[0].mxu0 %v4681
    %v4683 = vpop.f32.mrb[0].mxu0
    %v4684 = vadd.f32 %v4287, %v4683
    %v4685 = vpop.f32.mrb[0].mxu0
    %4686 = vmatprep.mubr.f32.mxu0 0.0
    %v4687 = vand.u32 %v4008, 4294901760
    %4688 = vmatmul.mubr.f32.gmra.mrb[0].mxu0 %v4687
    %v4689 = vpop.f32.mrb[0].mxu0
    %v4690 = vadd.f32 %v4297, %v4689
    %v4691 = vpop.f32.mrb[0].mxu0
    %4692 = vmatprep.mubr.f32.mxu0 0.0
    %v4693 = vand.u32 %v4009, 4294901760
    %4694 = vmatmul.mubr.f32.gmra.mrb[0].mxu0 %v4693
    %v4695 = vpop.f32.mrb[0].mxu0
    %v4696 = vadd.f32 %v4307, %v4695
    %v4697 = vpop.f32.mrb[0].mxu0
    %4698 = vmatprep.mubr.f32.mxu0 0.0
    %v4699 = vand.u32 %v4010, 4294901760
    %4700 = vmatmul.mubr.f32.gmra.mrb[0].mxu0 %v4699
    %v4701 = vpop.f32.mrb[0].mxu0
    %v4702 = vadd.f32 %v4317, %v4701
    %v4703 = vpop.f32.mrb[0].mxu0
    %4704 = vmatprep.mubr.f32.mxu0 0.0
    %v4705 = vand.u32 %v4011, 4294901760
    %4706 = vmatmul.mubr.f32.gmra.mrb[0].mxu0 %v4705
    %v4707 = vpop.f32.mrb[0].mxu0
    %v4708 = vadd.f32 %v4327, %v4707
    %v4709 = vpop.f32.mrb[0].mxu0
    %4710 = vmatprep.mubr.f32.mxu0 0.0
    %v4711 = vand.u32 %v4012, 4294901760
    %4712 = vmatmul.mubr.f32.gmra.mrb[0].mxu0 %v4711
    %v4713 = vpop.f32.mrb[0].mxu0
    %v4714 = vadd.f32 %v4337, %v4713
    %v4715 = vpop.f32.mrb[0].mxu0
    %4716 = vmatprep.mubr.f32.mxu0 0.0
    %v4717 = vand.u32 %v4013, 4294901760
    %4718 = vmatmul.mubr.f32.gmra.mrb[0].mxu0 %v4717
    %v4719 = vpop.f32.mrb[0].mxu0
    %v4720 = vadd.f32 %v4347, %v4719
    %v4721 = vpop.f32.mrb[0].mxu0
    %4722 = vmatprep.mubr.f32.mxu0 0.0
    %v4723 = vand.u32 %v4014, 4294901760
    %4724 = vmatmul.mubr.f32.gmra.mrb[0].mxu0 %v4723
    %v4725 = vpop.f32.mrb[0].mxu0
    %v4726 = vadd.f32 %v4357, %v4725
    %v4727 = vpop.f32.mrb[0].mxu0
    %4728 = vmatprep.mubr.f32.mxu0 0.0
    %v4729 = vand.u32 %v4015, 4294901760
    %4730 = vmatmul.mubr.f32.gmra.mrb[0].mxu0 %v4729
    %v4731 = vpop.f32.mrb[0].mxu0
    %v4732 = vadd.f32 %v4367, %v4731
    %v4733 = vpop.f32.mrb[0].mxu0
    %4734 = vmatprep.mubr.f32.mxu0 0.0
    %v4735 = vand.u32 %v4016, 4294901760
    %4736 = vmatmul.mubr.f32.gmra.mrb[0].mxu0 %v4735
    %v4737 = vpop.f32.mrb[0].mxu0
    %v4738 = vadd.f32 %v4377, %v4737
    %v4739 = vpop.f32.mrb[0].mxu0
    %4740 = vmatprep.mubr.f32.mxu0 0.0
    %v4741 = vand.u32 %v4017, 4294901760
    %4742 = vmatmul.mubr.f32.gmra.mrb[0].mxu0 %v4741
    %v4743 = vpop.f32.mrb[0].mxu0
    %v4744 = vadd.f32 %v4387, %v4743
    %v4745 = vpop.f32.mrb[0].mxu0
    %4746 = vmatprep.mubr.f32.mxu0 0.0
    %v4747 = vand.u32 %v4018, 4294901760
    %4748 = vmatmul.mubr.f32.gmra.mrb[0].mxu0 %v4747
    %v4749 = vpop.f32.mrb[0].mxu0
    %v4750 = vadd.f32 %v4397, %v4749
    %v4751 = vpop.f32.mrb[0].mxu0
    %4752 = vmatprep.mubr.f32.mxu0 0.0
    %v4753 = vand.u32 %v4019, 4294901760
    %4754 = vmatmul.mubr.f32.gmra.mrb[0].mxu0 %v4753
    %v4755 = vpop.f32.mrb[0].mxu0
    %v4756 = vadd.f32 %v4407, %v4755
    %v4757 = vpop.f32.mrb[0].mxu0
    %4758 = vmatprep.mubr.f32.mxu0 0.0
    %v4759 = vand.u32 %v4020, 4294901760
    %4760 = vmatmul.mubr.f32.gmra.mrb[0].mxu0 %v4759
    %v4761 = vpop.f32.mrb[0].mxu0
    %v4762 = vadd.f32 %v4417, %v4761
    %v4763 = vpop.f32.mrb[0].mxu0
    %4764 = vmatprep.mubr.f32.mxu0 0.0
    %v4765 = vand.u32 %v4021, 4294901760
    %4766 = vmatmul.mubr.f32.gmra.mrb[0].mxu0 %v4765
    %v4767 = vpop.f32.mrb[0].mxu0
    %v4768 = vadd.f32 %v4427, %v4767
    %v4769 = vpop.f32.mrb[0].mxu0
    %4770 = vmatprep.mubr.f32.mxu0 0.0
    %v4771 = vand.u32 %v4022, 4294901760
    %4772 = vmatmul.mubr.f32.gmra.mrb[0].mxu0 %v4771
    %v4773 = vpop.f32.mrb[0].mxu0
    %v4774 = vadd.f32 %v4437, %v4773
    %v4775 = vpop.f32.mrb[0].mxu0
    %4776 = vdwg.mxu0
    %4777 = vmatprep.subr.mxu0 0.0
    %v4778 = vand.u32 %v4023, 4294901760
    %v4779 = vsub.f32 %v4023, %v4778
    %4780 = vmatpush1.msra.mxu0 %v4779
    %4781 = vmatprep.subr.mxu0 0.0
    %v4782 = vand.u32 %v4024, 4294901760
    %v4783 = vsub.f32 %v4024, %v4782
    %4784 = vmatpush1.msra.mxu0 %v4783
    %4785 = vmatprep.subr.mxu0 0.0
    %v4786 = vand.u32 %v4025, 4294901760
    %v4787 = vsub.f32 %v4025, %v4786
    %4788 = vmatpush1.msra.mxu0 %v4787
    %4789 = vmatprep.subr.mxu0 0.0
    %v4790 = vand.u32 %v4026, 4294901760
    %v4791 = vsub.f32 %v4026, %v4790
    %4792 = vmatpush1.msra.mxu0 %v4791
    %4793 = vmatprep.subr.mxu0 0.0
    %v4794 = vand.u32 %v4027, 4294901760
    %v4795 = vsub.f32 %v4027, %v4794
    %4796 = vmatpush1.msra.mxu0 %v4795
    %4797 = vmatprep.subr.mxu0 0.0
    %v4798 = vand.u32 %v4028, 4294901760
    %v4799 = vsub.f32 %v4028, %v4798
    %4800 = vmatpush1.msra.mxu0 %v4799
    %4801 = vmatprep.subr.mxu0 0.0
    %v4802 = vand.u32 %v4029, 4294901760
    %v4803 = vsub.f32 %v4029, %v4802
    %4804 = vmatpush1.msra.mxu0 %v4803
    %4805 = vmatprep.subr.mxu0 0.0
    %v4806 = vand.u32 %v4030, 4294901760
    %v4807 = vsub.f32 %v4030, %v4806
    %4808 = vmatpush1.msra.mxu0 %v4807
    %4809 = vmatprep.subr.mxu0 0.0
    %v4810 = vand.u32 %v4031, 4294901760
    %v4811 = vsub.f32 %v4031, %v4810
    %4812 = vmatpush1.msra.mxu0 %v4811
    %4813 = vmatprep.subr.mxu0 0.0
    %v4814 = vand.u32 %v4032, 4294901760
    %v4815 = vsub.f32 %v4032, %v4814
    %4816 = vmatpush1.msra.mxu0 %v4815
    %4817 = vmatprep.subr.mxu0 0.0
    %v4818 = vand.u32 %v4033, 4294901760
    %v4819 = vsub.f32 %v4033, %v4818
    %4820 = vmatpush1.msra.mxu0 %v4819
    %4821 = vmatprep.subr.mxu0 0.0
    %v4822 = vand.u32 %v4034, 4294901760
    %v4823 = vsub.f32 %v4034, %v4822
    %4824 = vmatpush1.msra.mxu0 %v4823
    %4825 = vmatprep.subr.mxu0 0.0
    %v4826 = vand.u32 %v4035, 4294901760
    %v4827 = vsub.f32 %v4035, %v4826
    %4828 = vmatpush1.msra.mxu0 %v4827
    %4829 = vmatprep.subr.mxu0 0.0
    %v4830 = vand.u32 %v4036, 4294901760
    %v4831 = vsub.f32 %v4036, %v4830
    %4832 = vmatpush1.msra.mxu0 %v4831
    %4833 = vmatprep.subr.mxu0 0.0
    %v4834 = vand.u32 %v4037, 4294901760
    %v4835 = vsub.f32 %v4037, %v4834
    %4836 = vmatpush1.msra.mxu0 %v4835
    %4837 = vmatprep.subr.mxu0 0.0
    %v4838 = vand.u32 %v4038, 4294901760
    %v4839 = vsub.f32 %v4038, %v4838
    %4840 = vmatpush1.msra.mxu0 %v4839
    %4841 = vmatprep.subr.mxu0 0.0
    %4842 = vmatpush1.msra.mxu0 0.0
    %4843 = vmatprep.subr.mxu0 0.0
    %4844 = vmatpush1.msra.mxu0 0.0
    %4845 = vmatprep.subr.mxu0 0.0
    %4846 = vmatpush1.msra.mxu0 0.0
    %4847 = vmatprep.subr.mxu0 0.0
    %4848 = vmatpush1.msra.mxu0 0.0
    %4849 = vmatprep.subr.mxu0 0.0
    %4850 = vmatpush1.msra.mxu0 0.0
    %4851 = vmatprep.subr.mxu0 0.0
    %4852 = vmatpush1.msra.mxu0 0.0
    %4853 = vmatprep.subr.mxu0 0.0
    %4854 = vmatpush1.msra.mxu0 0.0
    %4855 = vmatprep.subr.mxu0 0.0
    %4856 = vmatpush1.msra.mxu0 0.0
    %4857 = vmatprep.subr.mxu0 0.0
    %4858 = vmatpush1.msra.mxu0 0.0
    %4859 = vmatprep.subr.mxu0 0.0
    %4860 = vmatpush1.msra.mxu0 0.0
    %4861 = vmatprep.subr.mxu0 0.0
    %4862 = vmatpush1.msra.mxu0 0.0
    %4863 = vmatprep.subr.mxu0 0.0
    %4864 = vmatpush1.msra.mxu0 0.0
    %4865 = vmatprep.subr.mxu0 0.0
    %4866 = vmatpush1.msra.mxu0 0.0
    %4867 = vmatprep.subr.mxu0 0.0
    %4868 = vmatpush1.msra.mxu0 0.0
    %4869 = vmatprep.subr.mxu0 0.0
    %4870 = vmatpush1.msra.mxu0 0.0
    %4871 = vmatprep.subr.mxu0 0.0
    %4872 = vmatpush1.msra.mxu0 0.0
    %4873 = vmatprep.mubr.f32.mxu0 0.0
    %v4874 = vand.u32 %v3991, 4294901760
    %v4875 = vsub.f32 %v3991, %v4874
    %4876 = vmatmul.mubr.f32.gmra.mrb[0].mxu0 %v4875
    %v4877 = vpop.f32.mrb[0].mxu0
    %v4878 = vadd.f32 %v4588, %v4877
    %v4879 = vpop.f32.mrb[0].mxu0
    %4880 = vmatprep.mubr.f32.mxu0 0.0
    %v4881 = vand.u32 %v3992, 4294901760
    %v4882 = vsub.f32 %v3992, %v4881
    %4883 = vmatmul.mubr.f32.gmra.mrb[0].mxu0 %v4882
    %v4884 = vpop.f32.mrb[0].mxu0
    %v4885 = vadd.f32 %v4594, %v4884
    %v4886 = vpop.f32.mrb[0].mxu0
    %4887 = vmatprep.mubr.f32.mxu0 0.0
    %v4888 = vand.u32 %v3993, 4294901760
    %v4889 = vsub.f32 %v3993, %v4888
    %4890 = vmatmul.mubr.f32.gmra.mrb[0].mxu0 %v4889
    %v4891 = vpop.f32.mrb[0].mxu0
    %v4892 = vadd.f32 %v4600, %v4891
    %v4893 = vpop.f32.mrb[0].mxu0
    %4894 = vmatprep.mubr.f32.mxu0 0.0
    %v4895 = vand.u32 %v3994, 4294901760
    %v4896 = vsub.f32 %v3994, %v4895
    %4897 = vmatmul.mubr.f32.gmra.mrb[0].mxu0 %v4896
    %v4898 = vpop.f32.mrb[0].mxu0
    %v4899 = vadd.f32 %v4606, %v4898
    %v4900 = vpop.f32.mrb[0].mxu0
    %4901 = vmatprep.mubr.f32.mxu0 0.0
    %v4902 = vand.u32 %v3995, 4294901760
    %v4903 = vsub.f32 %v3995, %v4902
    %4904 = vmatmul.mubr.f32.gmra.mrb[0].mxu0 %v4903
    %v4905 = vpop.f32.mrb[0].mxu0
    %v4906 = vadd.f32 %v4612, %v4905
    %v4907 = vpop.f32.mrb[0].mxu0
    %4908 = vmatprep.mubr.f32.mxu0 0.0
    %v4909 = vand.u32 %v3996, 4294901760
    %v4910 = vsub.f32 %v3996, %v4909
    %4911 = vmatmul.mubr.f32.gmra.mrb[0].mxu0 %v4910
    %v4912 = vpop.f32.mrb[0].mxu0
    %v4913 = vadd.f32 %v4618, %v4912
    %v4914 = vpop.f32.mrb[0].mxu0
    %4915 = vmatprep.mubr.f32.mxu0 0.0
    %v4916 = vand.u32 %v3997, 4294901760
    %v4917 = vsub.f32 %v3997, %v4916
    %4918 = vmatmul.mubr.f32.gmra.mrb[0].mxu0 %v4917
    %v4919 = vpop.f32.mrb[0].mxu0
    %v4920 = vadd.f32 %v4624, %v4919
    %v4921 = vpop.f32.mrb[0].mxu0
    %4922 = vmatprep.mubr.f32.mxu0 0.0
    %v4923 = vand.u32 %v3998, 4294901760
    %v4924 = vsub.f32 %v3998, %v4923
    %4925 = vmatmul.mubr.f32.gmra.mrb[0].mxu0 %v4924
    %v4926 = vpop.f32.mrb[0].mxu0
    %v4927 = vadd.f32 %v4630, %v4926
    %v4928 = vpop.f32.mrb[0].mxu0
    %4929 = vmatprep.mubr.f32.mxu0 0.0
    %v4930 = vand.u32 %v3999, 4294901760
    %v4931 = vsub.f32 %v3999, %v4930
    %4932 = vmatmul.mubr.f32.gmra.mrb[0].mxu0 %v4931
    %v4933 = vpop.f32.mrb[0].mxu0
    %v4934 = vadd.f32 %v4636, %v4933
    %v4935 = vpop.f32.mrb[0].mxu0
    %4936 = vmatprep.mubr.f32.mxu0 0.0
    %v4937 = vand.u32 %v4000, 4294901760
    %v4938 = vsub.f32 %v4000, %v4937
    %4939 = vmatmul.mubr.f32.gmra.mrb[0].mxu0 %v4938
    %v4940 = vpop.f32.mrb[0].mxu0
    %v4941 = vadd.f32 %v4642, %v4940
    %v4942 = vpop.f32.mrb[0].mxu0
    %4943 = vmatprep.mubr.f32.mxu0 0.0
    %v4944 = vand.u32 %v4001, 4294901760
    %v4945 = vsub.f32 %v4001, %v4944
    %4946 = vmatmul.mubr.f32.gmra.mrb[0].mxu0 %v4945
    %v4947 = vpop.f32.mrb[0].mxu0
    %v4948 = vadd.f32 %v4648, %v4947
    %v4949 = vpop.f32.mrb[0].mxu0
    %4950 = vmatprep.mubr.f32.mxu0 0.0
    %v4951 = vand.u32 %v4002, 4294901760
    %v4952 = vsub.f32 %v4002, %v4951
    %4953 = vmatmul.mubr.f32.gmra.mrb[0].mxu0 %v4952
    %v4954 = vpop.f32.mrb[0].mxu0
    %v4955 = vadd.f32 %v4654, %v4954
    %v4956 = vpop.f32.mrb[0].mxu0
    %4957 = vmatprep.mubr.f32.mxu0 0.0
    %v4958 = vand.u32 %v4003, 4294901760
    %v4959 = vsub.f32 %v4003, %v4958
    %4960 = vmatmul.mubr.f32.gmra.mrb[0].mxu0 %v4959
    %v4961 = vpop.f32.mrb[0].mxu0
    %v4962 = vadd.f32 %v4660, %v4961
    %v4963 = vpop.f32.mrb[0].mxu0
    %4964 = vmatprep.mubr.f32.mxu0 0.0
    %v4965 = vand.u32 %v4004, 4294901760
    %v4966 = vsub.f32 %v4004, %v4965
    %4967 = vmatmul.mubr.f32.gmra.mrb[0].mxu0 %v4966
    %v4968 = vpop.f32.mrb[0].mxu0
    %v4969 = vadd.f32 %v4666, %v4968
    %v4970 = vpop.f32.mrb[0].mxu0
    %4971 = vmatprep.mubr.f32.mxu0 0.0
    %v4972 = vand.u32 %v4005, 4294901760
    %v4973 = vsub.f32 %v4005, %v4972
    %4974 = vmatmul.mubr.f32.gmra.mrb[0].mxu0 %v4973
    %v4975 = vpop.f32.mrb[0].mxu0
    %v4976 = vadd.f32 %v4672, %v4975
    %v4977 = vpop.f32.mrb[0].mxu0
    %4978 = vmatprep.mubr.f32.mxu0 0.0
    %v4979 = vand.u32 %v4006, 4294901760
    %v4980 = vsub.f32 %v4006, %v4979
    %4981 = vmatmul.mubr.f32.gmra.mrb[0].mxu0 %v4980
    %v4982 = vpop.f32.mrb[0].mxu0
    %v4983 = vadd.f32 %v4678, %v4982
    %v4984 = vpop.f32.mrb[0].mxu0
    %4985 = vmatprep.mubr.f32.mxu0 0.0
    %v4986 = vand.u32 %v4007, 4294901760
    %v4987 = vsub.f32 %v4007, %v4986
    %4988 = vmatmul.mubr.f32.gmra.mrb[0].mxu0 %v4987
    %v4989 = vpop.f32.mrb[0].mxu0
    %v4990 = vadd.f32 %v4684, %v4989
    %v4991 = vpop.f32.mrb[0].mxu0
    %4992 = vmatprep.mubr.f32.mxu0 0.0
    %v4993 = vand.u32 %v4008, 4294901760
    %v4994 = vsub.f32 %v4008, %v4993
    %4995 = vmatmul.mubr.f32.gmra.mrb[0].mxu0 %v4994
    %v4996 = vpop.f32.mrb[0].mxu0
    %v4997 = vadd.f32 %v4690, %v4996
    %v4998 = vpop.f32.mrb[0].mxu0
    %4999 = vmatprep.mubr.f32.mxu0 0.0
    %v5000 = vand.u32 %v4009, 4294901760
    %v5001 = vsub.f32 %v4009, %v5000
    %5002 = vmatmul.mubr.f32.gmra.mrb[0].mxu0 %v5001
    %v5003 = vpop.f32.mrb[0].mxu0
    %v5004 = vadd.f32 %v4696, %v5003
    %v5005 = vpop.f32.mrb[0].mxu0
    %5006 = vmatprep.mubr.f32.mxu0 0.0
    %v5007 = vand.u32 %v4010, 4294901760
    %v5008 = vsub.f32 %v4010, %v5007
    %5009 = vmatmul.mubr.f32.gmra.mrb[0].mxu0 %v5008
    %v5010 = vpop.f32.mrb[0].mxu0
    %v5011 = vadd.f32 %v4702, %v5010
    %v5012 = vpop.f32.mrb[0].mxu0
    %5013 = vmatprep.mubr.f32.mxu0 0.0
    %v5014 = vand.u32 %v4011, 4294901760
    %v5015 = vsub.f32 %v4011, %v5014
    %5016 = vmatmul.mubr.f32.gmra.mrb[0].mxu0 %v5015
    %v5017 = vpop.f32.mrb[0].mxu0
    %v5018 = vadd.f32 %v4708, %v5017
    %v5019 = vpop.f32.mrb[0].mxu0
    %5020 = vmatprep.mubr.f32.mxu0 0.0
    %v5021 = vand.u32 %v4012, 4294901760
    %v5022 = vsub.f32 %v4012, %v5021
    %5023 = vmatmul.mubr.f32.gmra.mrb[0].mxu0 %v5022
    %v5024 = vpop.f32.mrb[0].mxu0
    %v5025 = vadd.f32 %v4714, %v5024
    %v5026 = vpop.f32.mrb[0].mxu0
    %5027 = vmatprep.mubr.f32.mxu0 0.0
    %v5028 = vand.u32 %v4013, 4294901760
    %v5029 = vsub.f32 %v4013, %v5028
    %5030 = vmatmul.mubr.f32.gmra.mrb[0].mxu0 %v5029
    %v5031 = vpop.f32.mrb[0].mxu0
    %v5032 = vadd.f32 %v4720, %v5031
    %v5033 = vpop.f32.mrb[0].mxu0
    %5034 = vmatprep.mubr.f32.mxu0 0.0
    %v5035 = vand.u32 %v4014, 4294901760
    %v5036 = vsub.f32 %v4014, %v5035
    %5037 = vmatmul.mubr.f32.gmra.mrb[0].mxu0 %v5036
    %v5038 = vpop.f32.mrb[0].mxu0
    %v5039 = vadd.f32 %v4726, %v5038
    %v5040 = vpop.f32.mrb[0].mxu0
    %5041 = vmatprep.mubr.f32.mxu0 0.0
    %v5042 = vand.u32 %v4015, 4294901760
    %v5043 = vsub.f32 %v4015, %v5042
    %5044 = vmatmul.mubr.f32.gmra.mrb[0].mxu0 %v5043
    %v5045 = vpop.f32.mrb[0].mxu0
    %v5046 = vadd.f32 %v4732, %v5045
    %v5047 = vpop.f32.mrb[0].mxu0
    %5048 = vmatprep.mubr.f32.mxu0 0.0
    %v5049 = vand.u32 %v4016, 4294901760
    %v5050 = vsub.f32 %v4016, %v5049
    %5051 = vmatmul.mubr.f32.gmra.mrb[0].mxu0 %v5050
    %v5052 = vpop.f32.mrb[0].mxu0
    %v5053 = vadd.f32 %v4738, %v5052
    %v5054 = vpop.f32.mrb[0].mxu0
    %5055 = vmatprep.mubr.f32.mxu0 0.0
    %v5056 = vand.u32 %v4017, 4294901760
    %v5057 = vsub.f32 %v4017, %v5056
    %5058 = vmatmul.mubr.f32.gmra.mrb[0].mxu0 %v5057
    %v5059 = vpop.f32.mrb[0].mxu0
    %v5060 = vadd.f32 %v4744, %v5059
    %v5061 = vpop.f32.mrb[0].mxu0
    %5062 = vmatprep.mubr.f32.mxu0 0.0
    %v5063 = vand.u32 %v4018, 4294901760
    %v5064 = vsub.f32 %v4018, %v5063
    %5065 = vmatmul.mubr.f32.gmra.mrb[0].mxu0 %v5064
    %v5066 = vpop.f32.mrb[0].mxu0
    %v5067 = vadd.f32 %v4750, %v5066
    %v5068 = vpop.f32.mrb[0].mxu0
    %5069 = vmatprep.mubr.f32.mxu0 0.0
    %v5070 = vand.u32 %v4019, 4294901760
    %v5071 = vsub.f32 %v4019, %v5070
    %5072 = vmatmul.mubr.f32.gmra.mrb[0].mxu0 %v5071
    %v5073 = vpop.f32.mrb[0].mxu0
    %v5074 = vadd.f32 %v4756, %v5073
    %v5075 = vpop.f32.mrb[0].mxu0
    %5076 = vmatprep.mubr.f32.mxu0 0.0
    %v5077 = vand.u32 %v4020, 4294901760
    %v5078 = vsub.f32 %v4020, %v5077
    %5079 = vmatmul.mubr.f32.gmra.mrb[0].mxu0 %v5078
    %v5080 = vpop.f32.mrb[0].mxu0
    %v5081 = vadd.f32 %v4762, %v5080
    %v5082 = vpop.f32.mrb[0].mxu0
    %5083 = vmatprep.mubr.f32.mxu0 0.0
    %v5084 = vand.u32 %v4021, 4294901760
    %v5085 = vsub.f32 %v4021, %v5084
    %5086 = vmatmul.mubr.f32.gmra.mrb[0].mxu0 %v5085
    %v5087 = vpop.f32.mrb[0].mxu0
    %v5088 = vadd.f32 %v4768, %v5087
    %v5089 = vpop.f32.mrb[0].mxu0
    %5090 = vmatprep.mubr.f32.mxu0 0.0
    %v5091 = vand.u32 %v4022, 4294901760
    %v5092 = vsub.f32 %v4022, %v5091
    %5093 = vmatmul.mubr.f32.gmra.mrb[0].mxu0 %v5092
    %v5094 = vpop.f32.mrb[0].mxu0
    %v5095 = vadd.f32 %v4774, %v5094
    %v5096 = vpop.f32.mrb[0].mxu0
    %5097 = vdwg.mxu0
    %5098 = vmatprep.subr.mxu0 0.0
    %v5099 = vand.u32 %v4023, 4294901760
    %5100 = vmatpush1.msra.mxu0 %v5099
    %5101 = vmatprep.subr.mxu0 0.0
    %v5102 = vand.u32 %v4024, 4294901760
    %5103 = vmatpush1.msra.mxu0 %v5102
    %5104 = vmatprep.subr.mxu0 0.0
    %v5105 = vand.u32 %v4025, 4294901760
    %5106 = vmatpush1.msra.mxu0 %v5105
    %5107 = vmatprep.subr.mxu0 0.0
    %v5108 = vand.u32 %v4026, 4294901760
    %5109 = vmatpush1.msra.mxu0 %v5108
    %5110 = vmatprep.subr.mxu0 0.0
    %v5111 = vand.u32 %v4027, 4294901760
    %5112 = vmatpush1.msra.mxu0 %v5111
    %5113 = vmatprep.subr.mxu0 0.0
    %v5114 = vand.u32 %v4028, 4294901760
    %5115 = vmatpush1.msra.mxu0 %v5114
    %5116 = vmatprep.subr.mxu0 0.0
    %v5117 = vand.u32 %v4029, 4294901760
    %5118 = vmatpush1.msra.mxu0 %v5117
    %5119 = vmatprep.subr.mxu0 0.0
    %v5120 = vand.u32 %v4030, 4294901760
    %5121 = vmatpush1.msra.mxu0 %v5120
    %5122 = vmatprep.subr.mxu0 0.0
    %v5123 = vand.u32 %v4031, 4294901760
    %5124 = vmatpush1.msra.mxu0 %v5123
    %5125 = vmatprep.subr.mxu0 0.0
    %v5126 = vand.u32 %v4032, 4294901760
    %5127 = vmatpush1.msra.mxu0 %v5126
    %5128 = vmatprep.subr.mxu0 0.0
    %v5129 = vand.u32 %v4033, 4294901760
    %5130 = vmatpush1.msra.mxu0 %v5129
    %5131 = vmatprep.subr.mxu0 0.0
    %v5132 = vand.u32 %v4034, 4294901760
    %5133 = vmatpush1.msra.mxu0 %v5132
    %5134 = vmatprep.subr.mxu0 0.0
    %v5135 = vand.u32 %v4035, 4294901760
    %5136 = vmatpush1.msra.mxu0 %v5135
    %5137 = vmatprep.subr.mxu0 0.0
    %v5138 = vand.u32 %v4036, 4294901760
    %5139 = vmatpush1.msra.mxu0 %v5138
    %5140 = vmatprep.subr.mxu0 0.0
    %v5141 = vand.u32 %v4037, 4294901760
    %5142 = vmatpush1.msra.mxu0 %v5141
    %5143 = vmatprep.subr.mxu0 0.0
    %v5144 = vand.u32 %v4038, 4294901760
    %5145 = vmatpush1.msra.mxu0 %v5144
    %5146 = vmatprep.subr.mxu0 0.0
    %5147 = vmatpush1.msra.mxu0 0.0
    %5148 = vmatprep.subr.mxu0 0.0
    %5149 = vmatpush1.msra.mxu0 0.0
    %5150 = vmatprep.subr.mxu0 0.0
    %5151 = vmatpush1.msra.mxu0 0.0
    %5152 = vmatprep.subr.mxu0 0.0
    %5153 = vmatpush1.msra.mxu0 0.0
    %5154 = vmatprep.subr.mxu0 0.0
    %5155 = vmatpush1.msra.mxu0 0.0
    %5156 = vmatprep.subr.mxu0 0.0
    %5157 = vmatpush1.msra.mxu0 0.0
    %5158 = vmatprep.subr.mxu0 0.0
    %5159 = vmatpush1.msra.mxu0 0.0
    %5160 = vmatprep.subr.mxu0 0.0
    %5161 = vmatpush1.msra.mxu0 0.0
    %5162 = vmatprep.subr.mxu0 0.0
    %5163 = vmatpush1.msra.mxu0 0.0
    %5164 = vmatprep.subr.mxu0 0.0
    %5165 = vmatpush1.msra.mxu0 0.0
    %5166 = vmatprep.subr.mxu0 0.0
    %5167 = vmatpush1.msra.mxu0 0.0
    %5168 = vmatprep.subr.mxu0 0.0
    %5169 = vmatpush1.msra.mxu0 0.0
    %5170 = vmatprep.subr.mxu0 0.0
    %5171 = vmatpush1.msra.mxu0 0.0
    %5172 = vmatprep.subr.mxu0 0.0
    %5173 = vmatpush1.msra.mxu0 0.0
    %5174 = vmatprep.subr.mxu0 0.0
    %5175 = vmatpush1.msra.mxu0 0.0
    %5176 = vmatprep.subr.mxu0 0.0
    %5177 = vmatpush1.msra.mxu0 0.0
    %5178 = vmatprep.mubr.f32.mxu0 0.0
    %v5179 = vand.u32 %v3991, 4294901760
    %v5180 = vsub.f32 %v3991, %v5179
    %v5181 = vand.u32 %v5180, 4294901760
    %5182 = vmatmul.mubr.f32.gmra.mrb[0].mxu0 %v5181
    %v5183 = vpop.f32.mrb[0].mxu0
    %v5184 = vadd.f32 %v4878, %v5183
    %v5185 = vpop.f32.mrb[0].mxu0
    %5186 = vmatprep.mubr.f32.mxu0 0.0
    %v5187 = vand.u32 %v3992, 4294901760
    %v5188 = vsub.f32 %v3992, %v5187
    %v5189 = vand.u32 %v5188, 4294901760
    %5190 = vmatmul.mubr.f32.gmra.mrb[0].mxu0 %v5189
    %v5191 = vpop.f32.mrb[0].mxu0
    %v5192 = vadd.f32 %v4885, %v5191
    %v5193 = vpop.f32.mrb[0].mxu0
    %5194 = vmatprep.mubr.f32.mxu0 0.0
    %v5195 = vand.u32 %v3993, 4294901760
    %v5196 = vsub.f32 %v3993, %v5195
    %v5197 = vand.u32 %v5196, 4294901760
    %5198 = vmatmul.mubr.f32.gmra.mrb[0].mxu0 %v5197
    %v5199 = vpop.f32.mrb[0].mxu0
    %v5200 = vadd.f32 %v4892, %v5199
    %v5201 = vpop.f32.mrb[0].mxu0
    %5202 = vmatprep.mubr.f32.mxu0 0.0
    %v5203 = vand.u32 %v3994, 4294901760
    %v5204 = vsub.f32 %v3994, %v5203
    %v5205 = vand.u32 %v5204, 4294901760
    %5206 = vmatmul.mubr.f32.gmra.mrb[0].mxu0 %v5205
    %v5207 = vpop.f32.mrb[0].mxu0
    %v5208 = vadd.f32 %v4899, %v5207
    %v5209 = vpop.f32.mrb[0].mxu0
    %5210 = vmatprep.mubr.f32.mxu0 0.0
    %v5211 = vand.u32 %v3995, 4294901760
    %v5212 = vsub.f32 %v3995, %v5211
    %v5213 = vand.u32 %v5212, 4294901760
    %5214 = vmatmul.mubr.f32.gmra.mrb[0].mxu0 %v5213
    %v5215 = vpop.f32.mrb[0].mxu0
    %v5216 = vadd.f32 %v4906, %v5215
    %v5217 = vpop.f32.mrb[0].mxu0
    %5218 = vmatprep.mubr.f32.mxu0 0.0
    %v5219 = vand.u32 %v3996, 4294901760
    %v5220 = vsub.f32 %v3996, %v5219
    %v5221 = vand.u32 %v5220, 4294901760
    %5222 = vmatmul.mubr.f32.gmra.mrb[0].mxu0 %v5221
    %v5223 = vpop.f32.mrb[0].mxu0
    %v5224 = vadd.f32 %v4913, %v5223
    %v5225 = vpop.f32.mrb[0].mxu0
    %5226 = vmatprep.mubr.f32.mxu0 0.0
    %v5227 = vand.u32 %v3997, 4294901760
    %v5228 = vsub.f32 %v3997, %v5227
    %v5229 = vand.u32 %v5228, 4294901760
    %5230 = vmatmul.mubr.f32.gmra.mrb[0].mxu0 %v5229
    %v5231 = vpop.f32.mrb[0].mxu0
    %v5232 = vadd.f32 %v4920, %v5231
    %v5233 = vpop.f32.mrb[0].mxu0
    %5234 = vmatprep.mubr.f32.mxu0 0.0
    %v5235 = vand.u32 %v3998, 4294901760
    %v5236 = vsub.f32 %v3998, %v5235
    %v5237 = vand.u32 %v5236, 4294901760
    %5238 = vmatmul.mubr.f32.gmra.mrb[0].mxu0 %v5237
    %v5239 = vpop.f32.mrb[0].mxu0
    %v5240 = vadd.f32 %v4927, %v5239
    %v5241 = vpop.f32.mrb[0].mxu0
    %5242 = vmatprep.mubr.f32.mxu0 0.0
    %v5243 = vand.u32 %v3999, 4294901760
    %v5244 = vsub.f32 %v3999, %v5243
    %v5245 = vand.u32 %v5244, 4294901760
    %5246 = vmatmul.mubr.f32.gmra.mrb[0].mxu0 %v5245
    %v5247 = vpop.f32.mrb[0].mxu0
    %v5248 = vadd.f32 %v4934, %v5247
    %v5249 = vpop.f32.mrb[0].mxu0
    %5250 = vmatprep.mubr.f32.mxu0 0.0
    %v5251 = vand.u32 %v4000, 4294901760
    %v5252 = vsub.f32 %v4000, %v5251
    %v5253 = vand.u32 %v5252, 4294901760
    %5254 = vmatmul.mubr.f32.gmra.mrb[0].mxu0 %v5253
    %v5255 = vpop.f32.mrb[0].mxu0
    %v5256 = vadd.f32 %v4941, %v5255
    %v5257 = vpop.f32.mrb[0].mxu0
    %5258 = vmatprep.mubr.f32.mxu0 0.0
    %v5259 = vand.u32 %v4001, 4294901760
    %v5260 = vsub.f32 %v4001, %v5259
    %v5261 = vand.u32 %v5260, 4294901760
    %5262 = vmatmul.mubr.f32.gmra.mrb[0].mxu0 %v5261
    %v5263 = vpop.f32.mrb[0].mxu0
    %v5264 = vadd.f32 %v4948, %v5263
    %v5265 = vpop.f32.mrb[0].mxu0
    %5266 = vmatprep.mubr.f32.mxu0 0.0
    %v5267 = vand.u32 %v4002, 4294901760
    %v5268 = vsub.f32 %v4002, %v5267
    %v5269 = vand.u32 %v5268, 4294901760
    %5270 = vmatmul.mubr.f32.gmra.mrb[0].mxu0 %v5269
    %v5271 = vpop.f32.mrb[0].mxu0
    %v5272 = vadd.f32 %v4955, %v5271
    %v5273 = vpop.f32.mrb[0].mxu0
    %5274 = vmatprep.mubr.f32.mxu0 0.0
    %v5275 = vand.u32 %v4003, 4294901760
    %v5276 = vsub.f32 %v4003, %v5275
    %v5277 = vand.u32 %v5276, 4294901760
    %5278 = vmatmul.mubr.f32.gmra.mrb[0].mxu0 %v5277
    %v5279 = vpop.f32.mrb[0].mxu0
    %v5280 = vadd.f32 %v4962, %v5279
    %v5281 = vpop.f32.mrb[0].mxu0
    %5282 = vmatprep.mubr.f32.mxu0 0.0
    %v5283 = vand.u32 %v4004, 4294901760
    %v5284 = vsub.f32 %v4004, %v5283
    %v5285 = vand.u32 %v5284, 4294901760
    %5286 = vmatmul.mubr.f32.gmra.mrb[0].mxu0 %v5285
    %v5287 = vpop.f32.mrb[0].mxu0
    %v5288 = vadd.f32 %v4969, %v5287
    %v5289 = vpop.f32.mrb[0].mxu0
    %5290 = vmatprep.mubr.f32.mxu0 0.0
    %v5291 = vand.u32 %v4005, 4294901760
    %v5292 = vsub.f32 %v4005, %v5291
    %v5293 = vand.u32 %v5292, 4294901760
    %5294 = vmatmul.mubr.f32.gmra.mrb[0].mxu0 %v5293
    %v5295 = vpop.f32.mrb[0].mxu0
    %v5296 = vadd.f32 %v4976, %v5295
    %v5297 = vpop.f32.mrb[0].mxu0
    %5298 = vmatprep.mubr.f32.mxu0 0.0
    %v5299 = vand.u32 %v4006, 4294901760
    %v5300 = vsub.f32 %v4006, %v5299
    %v5301 = vand.u32 %v5300, 4294901760
    %5302 = vmatmul.mubr.f32.gmra.mrb[0].mxu0 %v5301
    %v5303 = vpop.f32.mrb[0].mxu0
    %v5304 = vadd.f32 %v4983, %v5303
    %v5305 = vpop.f32.mrb[0].mxu0
    %5306 = vmatprep.mubr.f32.mxu0 0.0
    %v5307 = vand.u32 %v4007, 4294901760
    %v5308 = vsub.f32 %v4007, %v5307
    %v5309 = vand.u32 %v5308, 4294901760
    %5310 = vmatmul.mubr.f32.gmra.mrb[0].mxu0 %v5309
    %v5311 = vpop.f32.mrb[0].mxu0
    %v5312 = vadd.f32 %v4990, %v5311
    %v5313 = vpop.f32.mrb[0].mxu0
    %5314 = vmatprep.mubr.f32.mxu0 0.0
    %v5315 = vand.u32 %v4008, 4294901760
    %v5316 = vsub.f32 %v4008, %v5315
    %v5317 = vand.u32 %v5316, 4294901760
    %5318 = vmatmul.mubr.f32.gmra.mrb[0].mxu0 %v5317
    %v5319 = vpop.f32.mrb[0].mxu0
    %v5320 = vadd.f32 %v4997, %v5319
    %v5321 = vpop.f32.mrb[0].mxu0
    %5322 = vmatprep.mubr.f32.mxu0 0.0
    %v5323 = vand.u32 %v4009, 4294901760
    %v5324 = vsub.f32 %v4009, %v5323
    %v5325 = vand.u32 %v5324, 4294901760
    %5326 = vmatmul.mubr.f32.gmra.mrb[0].mxu0 %v5325
    %v5327 = vpop.f32.mrb[0].mxu0
    %v5328 = vadd.f32 %v5004, %v5327
    %v5329 = vpop.f32.mrb[0].mxu0
    %5330 = vmatprep.mubr.f32.mxu0 0.0
    %v5331 = vand.u32 %v4010, 4294901760
    %v5332 = vsub.f32 %v4010, %v5331
    %v5333 = vand.u32 %v5332, 4294901760
    %5334 = vmatmul.mubr.f32.gmra.mrb[0].mxu0 %v5333
    %v5335 = vpop.f32.mrb[0].mxu0
    %v5336 = vadd.f32 %v5011, %v5335
    %v5337 = vpop.f32.mrb[0].mxu0
    %5338 = vmatprep.mubr.f32.mxu0 0.0
    %v5339 = vand.u32 %v4011, 4294901760
    %v5340 = vsub.f32 %v4011, %v5339
    %v5341 = vand.u32 %v5340, 4294901760
    %5342 = vmatmul.mubr.f32.gmra.mrb[0].mxu0 %v5341
    %v5343 = vpop.f32.mrb[0].mxu0
    %v5344 = vadd.f32 %v5018, %v5343
    %v5345 = vpop.f32.mrb[0].mxu0
    %5346 = vmatprep.mubr.f32.mxu0 0.0
    %v5347 = vand.u32 %v4012, 4294901760
    %v5348 = vsub.f32 %v4012, %v5347
    %v5349 = vand.u32 %v5348, 4294901760
    %5350 = vmatmul.mubr.f32.gmra.mrb[0].mxu0 %v5349
    %v5351 = vpop.f32.mrb[0].mxu0
    %v5352 = vadd.f32 %v5025, %v5351
    %v5353 = vpop.f32.mrb[0].mxu0
    %5354 = vmatprep.mubr.f32.mxu0 0.0
    %v5355 = vand.u32 %v4013, 4294901760
    %v5356 = vsub.f32 %v4013, %v5355
    %v5357 = vand.u32 %v5356, 4294901760
    %5358 = vmatmul.mubr.f32.gmra.mrb[0].mxu0 %v5357
    %v5359 = vpop.f32.mrb[0].mxu0
    %v5360 = vadd.f32 %v5032, %v5359
    %v5361 = vpop.f32.mrb[0].mxu0
    %5362 = vmatprep.mubr.f32.mxu0 0.0
    %v5363 = vand.u32 %v4014, 4294901760
    %v5364 = vsub.f32 %v4014, %v5363
    %v5365 = vand.u32 %v5364, 4294901760
    %5366 = vmatmul.mubr.f32.gmra.mrb[0].mxu0 %v5365
    %v5367 = vpop.f32.mrb[0].mxu0
    %v5368 = vadd.f32 %v5039, %v5367
    %v5369 = vpop.f32.mrb[0].mxu0
    %5370 = vmatprep.mubr.f32.mxu0 0.0
    %v5371 = vand.u32 %v4015, 4294901760
    %v5372 = vsub.f32 %v4015, %v5371
    %v5373 = vand.u32 %v5372, 4294901760
    %5374 = vmatmul.mubr.f32.gmra.mrb[0].mxu0 %v5373
    %v5375 = vpop.f32.mrb[0].mxu0
    %v5376 = vadd.f32 %v5046, %v5375
    %v5377 = vpop.f32.mrb[0].mxu0
    %5378 = vmatprep.mubr.f32.mxu0 0.0
    %v5379 = vand.u32 %v4016, 4294901760
    %v5380 = vsub.f32 %v4016, %v5379
    %v5381 = vand.u32 %v5380, 4294901760
    %5382 = vmatmul.mubr.f32.gmra.mrb[0].mxu0 %v5381
    %v5383 = vpop.f32.mrb[0].mxu0
    %v5384 = vadd.f32 %v5053, %v5383
    %v5385 = vpop.f32.mrb[0].mxu0
    %5386 = vmatprep.mubr.f32.mxu0 0.0
    %v5387 = vand.u32 %v4017, 4294901760
    %v5388 = vsub.f32 %v4017, %v5387
    %v5389 = vand.u32 %v5388, 4294901760
    %5390 = vmatmul.mubr.f32.gmra.mrb[0].mxu0 %v5389
    %v5391 = vpop.f32.mrb[0].mxu0
    %v5392 = vadd.f32 %v5060, %v5391
    %v5393 = vpop.f32.mrb[0].mxu0
    %5394 = vmatprep.mubr.f32.mxu0 0.0
    %v5395 = vand.u32 %v4018, 4294901760
    %v5396 = vsub.f32 %v4018, %v5395
    %v5397 = vand.u32 %v5396, 4294901760
    %5398 = vmatmul.mubr.f32.gmra.mrb[0].mxu0 %v5397
    %v5399 = vpop.f32.mrb[0].mxu0
    %v5400 = vadd.f32 %v5067, %v5399
    %v5401 = vpop.f32.mrb[0].mxu0
    %5402 = vmatprep.mubr.f32.mxu0 0.0
    %v5403 = vand.u32 %v4019, 4294901760
    %v5404 = vsub.f32 %v4019, %v5403
    %v5405 = vand.u32 %v5404, 4294901760
    %5406 = vmatmul.mubr.f32.gmra.mrb[0].mxu0 %v5405
    %v5407 = vpop.f32.mrb[0].mxu0
    %v5408 = vadd.f32 %v5074, %v5407
    %v5409 = vpop.f32.mrb[0].mxu0
    %5410 = vmatprep.mubr.f32.mxu0 0.0
    %v5411 = vand.u32 %v4020, 4294901760
    %v5412 = vsub.f32 %v4020, %v5411
    %v5413 = vand.u32 %v5412, 4294901760
    %5414 = vmatmul.mubr.f32.gmra.mrb[0].mxu0 %v5413
    %v5415 = vpop.f32.mrb[0].mxu0
    %v5416 = vadd.f32 %v5081, %v5415
    %v5417 = vpop.f32.mrb[0].mxu0
    %5418 = vmatprep.mubr.f32.mxu0 0.0
    %v5419 = vand.u32 %v4021, 4294901760
    %v5420 = vsub.f32 %v4021, %v5419
    %v5421 = vand.u32 %v5420, 4294901760
    %5422 = vmatmul.mubr.f32.gmra.mrb[0].mxu0 %v5421
    %v5423 = vpop.f32.mrb[0].mxu0
    %v5424 = vadd.f32 %v5088, %v5423
    %v5425 = vpop.f32.mrb[0].mxu0
    %5426 = vmatprep.mubr.f32.mxu0 0.0
    %v5427 = vand.u32 %v4022, 4294901760
    %v5428 = vsub.f32 %v4022, %v5427
    %v5429 = vand.u32 %v5428, 4294901760
    %5430 = vmatmul.mubr.f32.gmra.mrb[0].mxu0 %v5429
    %v5431 = vpop.f32.mrb[0].mxu0
    %v5432 = vadd.f32 %v5095, %v5431
    %v5433 = vpop.f32.mrb[0].mxu0
    %5434 = vdwg.mxu0
    %5435 = vmatprep.subr.mxu0 0.0
    %v5436 = vand.u32 %v4023, 4294901760
    %v5437 = vsub.f32 %v4023, %v5436
    %v5438 = vand.u32 %v5437, 4294901760
    %5439 = vmatpush1.msra.mxu0 %v5438
    %5440 = vmatprep.subr.mxu0 0.0
    %v5441 = vand.u32 %v4024, 4294901760
    %v5442 = vsub.f32 %v4024, %v5441
    %v5443 = vand.u32 %v5442, 4294901760
    %5444 = vmatpush1.msra.mxu0 %v5443
    %5445 = vmatprep.subr.mxu0 0.0
    %v5446 = vand.u32 %v4025, 4294901760
    %v5447 = vsub.f32 %v4025, %v5446
    %v5448 = vand.u32 %v5447, 4294901760
    %5449 = vmatpush1.msra.mxu0 %v5448
    %5450 = vmatprep.subr.mxu0 0.0
    %v5451 = vand.u32 %v4026, 4294901760
    %v5452 = vsub.f32 %v4026, %v5451
    %v5453 = vand.u32 %v5452, 4294901760
    %5454 = vmatpush1.msra.mxu0 %v5453
    %5455 = vmatprep.subr.mxu0 0.0
    %v5456 = vand.u32 %v4027, 4294901760
    %v5457 = vsub.f32 %v4027, %v5456
    %v5458 = vand.u32 %v5457, 4294901760
    %5459 = vmatpush1.msra.mxu0 %v5458
    %5460 = vmatprep.subr.mxu0 0.0
    %v5461 = vand.u32 %v4028, 4294901760
    %v5462 = vsub.f32 %v4028, %v5461
    %v5463 = vand.u32 %v5462, 4294901760
    %5464 = vmatpush1.msra.mxu0 %v5463
    %5465 = vmatprep.subr.mxu0 0.0
    %v5466 = vand.u32 %v4029, 4294901760
    %v5467 = vsub.f32 %v4029, %v5466
    %v5468 = vand.u32 %v5467, 4294901760
    %5469 = vmatpush1.msra.mxu0 %v5468
    %5470 = vmatprep.subr.mxu0 0.0
    %v5471 = vand.u32 %v4030, 4294901760
    %v5472 = vsub.f32 %v4030, %v5471
    %v5473 = vand.u32 %v5472, 4294901760
    %5474 = vmatpush1.msra.mxu0 %v5473
    %5475 = vmatprep.subr.mxu0 0.0
    %v5476 = vand.u32 %v4031, 4294901760
    %v5477 = vsub.f32 %v4031, %v5476
    %v5478 = vand.u32 %v5477, 4294901760
    %5479 = vmatpush1.msra.mxu0 %v5478
    %5480 = vmatprep.subr.mxu0 0.0
    %v5481 = vand.u32 %v4032, 4294901760
    %v5482 = vsub.f32 %v4032, %v5481
    %v5483 = vand.u32 %v5482, 4294901760
    %5484 = vmatpush1.msra.mxu0 %v5483
    %5485 = vmatprep.subr.mxu0 0.0
    %v5486 = vand.u32 %v4033, 4294901760
    %v5487 = vsub.f32 %v4033, %v5486
    %v5488 = vand.u32 %v5487, 4294901760
    %5489 = vmatpush1.msra.mxu0 %v5488
    %5490 = vmatprep.subr.mxu0 0.0
    %v5491 = vand.u32 %v4034, 4294901760
    %v5492 = vsub.f32 %v4034, %v5491
    %v5493 = vand.u32 %v5492, 4294901760
    %5494 = vmatpush1.msra.mxu0 %v5493
    %5495 = vmatprep.subr.mxu0 0.0
    %v5496 = vand.u32 %v4035, 4294901760
    %v5497 = vsub.f32 %v4035, %v5496
    %v5498 = vand.u32 %v5497, 4294901760
    %5499 = vmatpush1.msra.mxu0 %v5498
    %5500 = vmatprep.subr.mxu0 0.0
    %v5501 = vand.u32 %v4036, 4294901760
    %v5502 = vsub.f32 %v4036, %v5501
    %v5503 = vand.u32 %v5502, 4294901760
    %5504 = vmatpush1.msra.mxu0 %v5503
    %5505 = vmatprep.subr.mxu0 0.0
    %v5506 = vand.u32 %v4037, 4294901760
    %v5507 = vsub.f32 %v4037, %v5506
    %v5508 = vand.u32 %v5507, 4294901760
    %5509 = vmatpush1.msra.mxu0 %v5508
    %5510 = vmatprep.subr.mxu0 0.0
    %v5511 = vand.u32 %v4038, 4294901760
    %v5512 = vsub.f32 %v4038, %v5511
    %v5513 = vand.u32 %v5512, 4294901760
    %5514 = vmatpush1.msra.mxu0 %v5513
    %5515 = vmatprep.subr.mxu0 0.0
    %5516 = vmatpush1.msra.mxu0 0.0
    %5517 = vmatprep.subr.mxu0 0.0
    %5518 = vmatpush1.msra.mxu0 0.0
    %5519 = vmatprep.subr.mxu0 0.0
    %5520 = vmatpush1.msra.mxu0 0.0
    %5521 = vmatprep.subr.mxu0 0.0
    %5522 = vmatpush1.msra.mxu0 0.0
    %5523 = vmatprep.subr.mxu0 0.0
    %5524 = vmatpush1.msra.mxu0 0.0
    %5525 = vmatprep.subr.mxu0 0.0
    %5526 = vmatpush1.msra.mxu0 0.0
    %5527 = vmatprep.subr.mxu0 0.0
    %5528 = vmatpush1.msra.mxu0 0.0
    %5529 = vmatprep.subr.mxu0 0.0
    %5530 = vmatpush1.msra.mxu0 0.0
    %5531 = vmatprep.subr.mxu0 0.0
    %5532 = vmatpush1.msra.mxu0 0.0
    %5533 = vmatprep.subr.mxu0 0.0
    %5534 = vmatpush1.msra.mxu0 0.0
    %5535 = vmatprep.subr.mxu0 0.0
    %5536 = vmatpush1.msra.mxu0 0.0
    %5537 = vmatprep.subr.mxu0 0.0
    %5538 = vmatpush1.msra.mxu0 0.0
    %5539 = vmatprep.subr.mxu0 0.0
    %5540 = vmatpush1.msra.mxu0 0.0
    %5541 = vmatprep.subr.mxu0 0.0
    %5542 = vmatpush1.msra.mxu0 0.0
    %5543 = vmatprep.subr.mxu0 0.0
    %5544 = vmatpush1.msra.mxu0 0.0
    %5545 = vmatprep.subr.mxu0 0.0
    %5546 = vmatpush1.msra.mxu0 0.0
    %5547 = vmatprep.mubr.f32.mxu0 0.0
    %v5548 = vand.u32 %v3991, 4294901760
    %5549 = vmatmul.mubr.f32.gmra.mrb[0].mxu0 %v5548
    %v5550 = vpop.f32.mrb[0].mxu0
    %v5551 = vadd.f32 %v5184, %v5550
    %v5552 = vpop.f32.mrb[0].mxu0
    %5553 = vmatprep.mubr.f32.mxu0 0.0
    %v5554 = vand.u32 %v3992, 4294901760
    %5555 = vmatmul.mubr.f32.gmra.mrb[0].mxu0 %v5554
    %v5556 = vpop.f32.mrb[0].mxu0
    %v5557 = vadd.f32 %v5192, %v5556
    %v5558 = vpop.f32.mrb[0].mxu0
    %5559 = vmatprep.mubr.f32.mxu0 0.0
    %v5560 = vand.u32 %v3993, 4294901760
    %5561 = vmatmul.mubr.f32.gmra.mrb[0].mxu0 %v5560
    %v5562 = vpop.f32.mrb[0].mxu0
    %v5563 = vadd.f32 %v5200, %v5562
    %v5564 = vpop.f32.mrb[0].mxu0
    %5565 = vmatprep.mubr.f32.mxu0 0.0
    %v5566 = vand.u32 %v3994, 4294901760
    %5567 = vmatmul.mubr.f32.gmra.mrb[0].mxu0 %v5566
    %v5568 = vpop.f32.mrb[0].mxu0
    %v5569 = vadd.f32 %v5208, %v5568
    %v5570 = vpop.f32.mrb[0].mxu0
    %5571 = vmatprep.mubr.f32.mxu0 0.0
    %v5572 = vand.u32 %v3995, 4294901760
    %5573 = vmatmul.mubr.f32.gmra.mrb[0].mxu0 %v5572
    %v5574 = vpop.f32.mrb[0].mxu0
    %v5575 = vadd.f32 %v5216, %v5574
    %v5576 = vpop.f32.mrb[0].mxu0
    %5577 = vmatprep.mubr.f32.mxu0 0.0
    %v5578 = vand.u32 %v3996, 4294901760
    %5579 = vmatmul.mubr.f32.gmra.mrb[0].mxu0 %v5578
    %v5580 = vpop.f32.mrb[0].mxu0
    %v5581 = vadd.f32 %v5224, %v5580
    %v5582 = vpop.f32.mrb[0].mxu0
    %5583 = vmatprep.mubr.f32.mxu0 0.0
    %v5584 = vand.u32 %v3997, 4294901760
    %5585 = vmatmul.mubr.f32.gmra.mrb[0].mxu0 %v5584
    %v5586 = vpop.f32.mrb[0].mxu0
    %v5587 = vadd.f32 %v5232, %v5586
    %v5588 = vpop.f32.mrb[0].mxu0
    %5589 = vmatprep.mubr.f32.mxu0 0.0
    %v5590 = vand.u32 %v3998, 4294901760
    %5591 = vmatmul.mubr.f32.gmra.mrb[0].mxu0 %v5590
    %v5592 = vpop.f32.mrb[0].mxu0
    %v5593 = vadd.f32 %v5240, %v5592
    %v5594 = vpop.f32.mrb[0].mxu0
    %5595 = vmatprep.mubr.f32.mxu0 0.0
    %v5596 = vand.u32 %v3999, 4294901760
    %5597 = vmatmul.mubr.f32.gmra.mrb[0].mxu0 %v5596
    %v5598 = vpop.f32.mrb[0].mxu0
    %v5599 = vadd.f32 %v5248, %v5598
    %v5600 = vpop.f32.mrb[0].mxu0
    %5601 = vmatprep.mubr.f32.mxu0 0.0
    %v5602 = vand.u32 %v4000, 4294901760
    %5603 = vmatmul.mubr.f32.gmra.mrb[0].mxu0 %v5602
    %v5604 = vpop.f32.mrb[0].mxu0
    %v5605 = vadd.f32 %v5256, %v5604
    %v5606 = vpop.f32.mrb[0].mxu0
    %5607 = vmatprep.mubr.f32.mxu0 0.0
    %v5608 = vand.u32 %v4001, 4294901760
    %5609 = vmatmul.mubr.f32.gmra.mrb[0].mxu0 %v5608
    %v5610 = vpop.f32.mrb[0].mxu0
    %v5611 = vadd.f32 %v5264, %v5610
    %v5612 = vpop.f32.mrb[0].mxu0
    %5613 = vmatprep.mubr.f32.mxu0 0.0
    %v5614 = vand.u32 %v4002, 4294901760
    %5615 = vmatmul.mubr.f32.gmra.mrb[0].mxu0 %v5614
    %v5616 = vpop.f32.mrb[0].mxu0
    %v5617 = vadd.f32 %v5272, %v5616
    %v5618 = vpop.f32.mrb[0].mxu0
    %5619 = vmatprep.mubr.f32.mxu0 0.0
    %v5620 = vand.u32 %v4003, 4294901760
    %5621 = vmatmul.mubr.f32.gmra.mrb[0].mxu0 %v5620
    %v5622 = vpop.f32.mrb[0].mxu0
    %v5623 = vadd.f32 %v5280, %v5622
    %v5624 = vpop.f32.mrb[0].mxu0
    %5625 = vmatprep.mubr.f32.mxu0 0.0
    %v5626 = vand.u32 %v4004, 4294901760
    %5627 = vmatmul.mubr.f32.gmra.mrb[0].mxu0 %v5626
    %v5628 = vpop.f32.mrb[0].mxu0
    %v5629 = vadd.f32 %v5288, %v5628
    %v5630 = vpop.f32.mrb[0].mxu0
    %5631 = vmatprep.mubr.f32.mxu0 0.0
    %v5632 = vand.u32 %v4005, 4294901760
    %5633 = vmatmul.mubr.f32.gmra.mrb[0].mxu0 %v5632
    %v5634 = vpop.f32.mrb[0].mxu0
    %v5635 = vadd.f32 %v5296, %v5634
    %v5636 = vpop.f32.mrb[0].mxu0
    %5637 = vmatprep.mubr.f32.mxu0 0.0
    %v5638 = vand.u32 %v4006, 4294901760
    %5639 = vmatmul.mubr.f32.gmra.mrb[0].mxu0 %v5638
    %v5640 = vpop.f32.mrb[0].mxu0
    %v5641 = vadd.f32 %v5304, %v5640
    %v5642 = vpop.f32.mrb[0].mxu0
    %5643 = vmatprep.mubr.f32.mxu0 0.0
    %v5644 = vand.u32 %v4007, 4294901760
    %5645 = vmatmul.mubr.f32.gmra.mrb[0].mxu0 %v5644
    %v5646 = vpop.f32.mrb[0].mxu0
    %v5647 = vadd.f32 %v5312, %v5646
    %v5648 = vpop.f32.mrb[0].mxu0
    %5649 = vmatprep.mubr.f32.mxu0 0.0
    %v5650 = vand.u32 %v4008, 4294901760
    %5651 = vmatmul.mubr.f32.gmra.mrb[0].mxu0 %v5650
    %v5652 = vpop.f32.mrb[0].mxu0
    %v5653 = vadd.f32 %v5320, %v5652
    %v5654 = vpop.f32.mrb[0].mxu0
    %5655 = vmatprep.mubr.f32.mxu0 0.0
    %v5656 = vand.u32 %v4009, 4294901760
    %5657 = vmatmul.mubr.f32.gmra.mrb[0].mxu0 %v5656
    %v5658 = vpop.f32.mrb[0].mxu0
    %v5659 = vadd.f32 %v5328, %v5658
    %v5660 = vpop.f32.mrb[0].mxu0
    %5661 = vmatprep.mubr.f32.mxu0 0.0
    %v5662 = vand.u32 %v4010, 4294901760
    %5663 = vmatmul.mubr.f32.gmra.mrb[0].mxu0 %v5662
    %v5664 = vpop.f32.mrb[0].mxu0
    %v5665 = vadd.f32 %v5336, %v5664
    %v5666 = vpop.f32.mrb[0].mxu0
    %5667 = vmatprep.mubr.f32.mxu0 0.0
    %v5668 = vand.u32 %v4011, 4294901760
    %5669 = vmatmul.mubr.f32.gmra.mrb[0].mxu0 %v5668
    %v5670 = vpop.f32.mrb[0].mxu0
    %v5671 = vadd.f32 %v5344, %v5670
    %v5672 = vpop.f32.mrb[0].mxu0
    %5673 = vmatprep.mubr.f32.mxu0 0.0
    %v5674 = vand.u32 %v4012, 4294901760
    %5675 = vmatmul.mubr.f32.gmra.mrb[0].mxu0 %v5674
    %v5676 = vpop.f32.mrb[0].mxu0
    %v5677 = vadd.f32 %v5352, %v5676
    %v5678 = vpop.f32.mrb[0].mxu0
    %5679 = vmatprep.mubr.f32.mxu0 0.0
    %v5680 = vand.u32 %v4013, 4294901760
    %5681 = vmatmul.mubr.f32.gmra.mrb[0].mxu0 %v5680
    %v5682 = vpop.f32.mrb[0].mxu0
    %v5683 = vadd.f32 %v5360, %v5682
    %v5684 = vpop.f32.mrb[0].mxu0
    %5685 = vmatprep.mubr.f32.mxu0 0.0
    %v5686 = vand.u32 %v4014, 4294901760
    %5687 = vmatmul.mubr.f32.gmra.mrb[0].mxu0 %v5686
    %v5688 = vpop.f32.mrb[0].mxu0
    %v5689 = vadd.f32 %v5368, %v5688
    %v5690 = vpop.f32.mrb[0].mxu0
    %5691 = vmatprep.mubr.f32.mxu0 0.0
    %v5692 = vand.u32 %v4015, 4294901760
    %5693 = vmatmul.mubr.f32.gmra.mrb[0].mxu0 %v5692
    %v5694 = vpop.f32.mrb[0].mxu0
    %v5695 = vadd.f32 %v5376, %v5694
    %v5696 = vpop.f32.mrb[0].mxu0
    %5697 = vmatprep.mubr.f32.mxu0 0.0
    %v5698 = vand.u32 %v4016, 4294901760
    %5699 = vmatmul.mubr.f32.gmra.mrb[0].mxu0 %v5698
    %v5700 = vpop.f32.mrb[0].mxu0
    %v5701 = vadd.f32 %v5384, %v5700
    %v5702 = vpop.f32.mrb[0].mxu0
    %5703 = vmatprep.mubr.f32.mxu0 0.0
    %v5704 = vand.u32 %v4017, 4294901760
    %5705 = vmatmul.mubr.f32.gmra.mrb[0].mxu0 %v5704
    %v5706 = vpop.f32.mrb[0].mxu0
    %v5707 = vadd.f32 %v5392, %v5706
    %v5708 = vpop.f32.mrb[0].mxu0
    %5709 = vmatprep.mubr.f32.mxu0 0.0
    %v5710 = vand.u32 %v4018, 4294901760
    %5711 = vmatmul.mubr.f32.gmra.mrb[0].mxu0 %v5710
    %v5712 = vpop.f32.mrb[0].mxu0
    %v5713 = vadd.f32 %v5400, %v5712
    %v5714 = vpop.f32.mrb[0].mxu0
    %5715 = vmatprep.mubr.f32.mxu0 0.0
    %v5716 = vand.u32 %v4019, 4294901760
    %5717 = vmatmul.mubr.f32.gmra.mrb[0].mxu0 %v5716
    %v5718 = vpop.f32.mrb[0].mxu0
    %v5719 = vadd.f32 %v5408, %v5718
    %v5720 = vpop.f32.mrb[0].mxu0
    %5721 = vmatprep.mubr.f32.mxu0 0.0
    %v5722 = vand.u32 %v4020, 4294901760
    %5723 = vmatmul.mubr.f32.gmra.mrb[0].mxu0 %v5722
    %v5724 = vpop.f32.mrb[0].mxu0
    %v5725 = vadd.f32 %v5416, %v5724
    %v5726 = vpop.f32.mrb[0].mxu0
    %5727 = vmatprep.mubr.f32.mxu0 0.0
    %v5728 = vand.u32 %v4021, 4294901760
    %5729 = vmatmul.mubr.f32.gmra.mrb[0].mxu0 %v5728
    %v5730 = vpop.f32.mrb[0].mxu0
    %v5731 = vadd.f32 %v5424, %v5730
    %v5732 = vpop.f32.mrb[0].mxu0
    %5733 = vmatprep.mubr.f32.mxu0 0.0
    %v5734 = vand.u32 %v4022, 4294901760
    %5735 = vmatmul.mubr.f32.gmra.mrb[0].mxu0 %v5734
    %v5736 = vpop.f32.mrb[0].mxu0
    %v5737 = vadd.f32 %v5432, %v5736
    %v5738 = vpop.f32.mrb[0].mxu0
    %5739 = vdwg.mxu0
    %5740 = vmatprep.subr.mxu0 0.0
    %v5741 = vand.u32 %v4023, 4294901760
    %5742 = vmatpush1.msra.mxu0 %v5741
    %5743 = vmatprep.subr.mxu0 0.0
    %v5744 = vand.u32 %v4024, 4294901760
    %5745 = vmatpush1.msra.mxu0 %v5744
    %5746 = vmatprep.subr.mxu0 0.0
    %v5747 = vand.u32 %v4025, 4294901760
    %5748 = vmatpush1.msra.mxu0 %v5747
    %5749 = vmatprep.subr.mxu0 0.0
    %v5750 = vand.u32 %v4026, 4294901760
    %5751 = vmatpush1.msra.mxu0 %v5750
    %5752 = vmatprep.subr.mxu0 0.0
    %v5753 = vand.u32 %v4027, 4294901760
    %5754 = vmatpush1.msra.mxu0 %v5753
    %5755 = vmatprep.subr.mxu0 0.0
    %v5756 = vand.u32 %v4028, 4294901760
    %5757 = vmatpush1.msra.mxu0 %v5756
    %5758 = vmatprep.subr.mxu0 0.0
    %v5759 = vand.u32 %v4029, 4294901760
    %5760 = vmatpush1.msra.mxu0 %v5759
    %5761 = vmatprep.subr.mxu0 0.0
    %v5762 = vand.u32 %v4030, 4294901760
    %5763 = vmatpush1.msra.mxu0 %v5762
    %5764 = vmatprep.subr.mxu0 0.0
    %v5765 = vand.u32 %v4031, 4294901760
    %5766 = vmatpush1.msra.mxu0 %v5765
    %5767 = vmatprep.subr.mxu0 0.0
    %v5768 = vand.u32 %v4032, 4294901760
    %5769 = vmatpush1.msra.mxu0 %v5768
    %5770 = vmatprep.subr.mxu0 0.0
    %v5771 = vand.u32 %v4033, 4294901760
    %5772 = vmatpush1.msra.mxu0 %v5771
    %5773 = vmatprep.subr.mxu0 0.0
    %v5774 = vand.u32 %v4034, 4294901760
    %5775 = vmatpush1.msra.mxu0 %v5774
    %5776 = vmatprep.subr.mxu0 0.0
    %v5777 = vand.u32 %v4035, 4294901760
    %5778 = vmatpush1.msra.mxu0 %v5777
    %5779 = vmatprep.subr.mxu0 0.0
    %v5780 = vand.u32 %v4036, 4294901760
    %5781 = vmatpush1.msra.mxu0 %v5780
    %5782 = vmatprep.subr.mxu0 0.0
    %v5783 = vand.u32 %v4037, 4294901760
    %5784 = vmatpush1.msra.mxu0 %v5783
    %5785 = vmatprep.subr.mxu0 0.0
    %v5786 = vand.u32 %v4038, 4294901760
    %5787 = vmatpush1.msra.mxu0 %v5786
    %5788 = vmatprep.subr.mxu0 0.0
    %5789 = vmatpush1.msra.mxu0 0.0
    %5790 = vmatprep.subr.mxu0 0.0
    %5791 = vmatpush1.msra.mxu0 0.0
    %5792 = vmatprep.subr.mxu0 0.0
    %5793 = vmatpush1.msra.mxu0 0.0
    %5794 = vmatprep.subr.mxu0 0.0
    %5795 = vmatpush1.msra.mxu0 0.0
    %5796 = vmatprep.subr.mxu0 0.0
    %5797 = vmatpush1.msra.mxu0 0.0
    %5798 = vmatprep.subr.mxu0 0.0
    %5799 = vmatpush1.msra.mxu0 0.0
    %5800 = vmatprep.subr.mxu0 0.0
    %5801 = vmatpush1.msra.mxu0 0.0
    %5802 = vmatprep.subr.mxu0 0.0
    %5803 = vmatpush1.msra.mxu0 0.0
    %5804 = vmatprep.subr.mxu0 0.0
    %5805 = vmatpush1.msra.mxu0 0.0
    %5806 = vmatprep.subr.mxu0 0.0
    %5807 = vmatpush1.msra.mxu0 0.0
    %5808 = vmatprep.subr.mxu0 0.0
    %5809 = vmatpush1.msra.mxu0 0.0
    %5810 = vmatprep.subr.mxu0 0.0
    %5811 = vmatpush1.msra.mxu0 0.0
    %5812 = vmatprep.subr.mxu0 0.0
    %5813 = vmatpush1.msra.mxu0 0.0
    %5814 = vmatprep.subr.mxu0 0.0
    %5815 = vmatpush1.msra.mxu0 0.0
    %5816 = vmatprep.subr.mxu0 0.0
    %5817 = vmatpush1.msra.mxu0 0.0
    %5818 = vmatprep.subr.mxu0 0.0
    %5819 = vmatpush1.msra.mxu0 0.0
    %5820 = vmatprep.mubr.f32.mxu0 0.0
    %v5821 = vand.u32 %v3991, 4294901760
    %5822 = vmatmul.mubr.f32.gmra.mrb[0].mxu0 %v5821
    %v5823 = vpop.f32.mrb[0].mxu0
    %v5824 = vadd.f32 %v5551, %v5823
    %v5825 = vpop.f32.mrb[0].mxu0
    %5826 = vmatprep.mubr.f32.mxu0 0.0
    %v5827 = vand.u32 %v3992, 4294901760
    %5828 = vmatmul.mubr.f32.gmra.mrb[0].mxu0 %v5827
    %v5829 = vpop.f32.mrb[0].mxu0
    %v5830 = vadd.f32 %v5557, %v5829
    %v5831 = vpop.f32.mrb[0].mxu0
    %5832 = vmatprep.mubr.f32.mxu0 0.0
    %v5833 = vand.u32 %v3993, 4294901760
    %5834 = vmatmul.mubr.f32.gmra.mrb[0].mxu0 %v5833
    %v5835 = vpop.f32.mrb[0].mxu0
    %v5836 = vadd.f32 %v5563, %v5835
    %v5837 = vpop.f32.mrb[0].mxu0
    %5838 = vmatprep.mubr.f32.mxu0 0.0
    %v5839 = vand.u32 %v3994, 4294901760
    %5840 = vmatmul.mubr.f32.gmra.mrb[0].mxu0 %v5839
    %v5841 = vpop.f32.mrb[0].mxu0
    %v5842 = vadd.f32 %v5569, %v5841
    %v5843 = vpop.f32.mrb[0].mxu0
    %5844 = vmatprep.mubr.f32.mxu0 0.0
    %v5845 = vand.u32 %v3995, 4294901760
    %5846 = vmatmul.mubr.f32.gmra.mrb[0].mxu0 %v5845
    %v5847 = vpop.f32.mrb[0].mxu0
    %v5848 = vadd.f32 %v5575, %v5847
    %v5849 = vpop.f32.mrb[0].mxu0
    %5850 = vmatprep.mubr.f32.mxu0 0.0
    %v5851 = vand.u32 %v3996, 4294901760
    %5852 = vmatmul.mubr.f32.gmra.mrb[0].mxu0 %v5851
    %v5853 = vpop.f32.mrb[0].mxu0
    %v5854 = vadd.f32 %v5581, %v5853
    %v5855 = vpop.f32.mrb[0].mxu0
    %5856 = vmatprep.mubr.f32.mxu0 0.0
    %v5857 = vand.u32 %v3997, 4294901760
    %5858 = vmatmul.mubr.f32.gmra.mrb[0].mxu0 %v5857
    %v5859 = vpop.f32.mrb[0].mxu0
    %v5860 = vadd.f32 %v5587, %v5859
    %v5861 = vpop.f32.mrb[0].mxu0
    %5862 = vmatprep.mubr.f32.mxu0 0.0
    %v5863 = vand.u32 %v3998, 4294901760
    %5864 = vmatmul.mubr.f32.gmra.mrb[0].mxu0 %v5863
    %v5865 = vpop.f32.mrb[0].mxu0
    %v5866 = vadd.f32 %v5593, %v5865
    %v5867 = vpop.f32.mrb[0].mxu0
    %5868 = vmatprep.mubr.f32.mxu0 0.0
    %v5869 = vand.u32 %v3999, 4294901760
    %5870 = vmatmul.mubr.f32.gmra.mrb[0].mxu0 %v5869
    %v5871 = vpop.f32.mrb[0].mxu0
    %v5872 = vadd.f32 %v5599, %v5871
    %v5873 = vpop.f32.mrb[0].mxu0
    %5874 = vmatprep.mubr.f32.mxu0 0.0
    %v5875 = vand.u32 %v4000, 4294901760
    %5876 = vmatmul.mubr.f32.gmra.mrb[0].mxu0 %v5875
    %v5877 = vpop.f32.mrb[0].mxu0
    %v5878 = vadd.f32 %v5605, %v5877
    %v5879 = vpop.f32.mrb[0].mxu0
    %5880 = vmatprep.mubr.f32.mxu0 0.0
    %v5881 = vand.u32 %v4001, 4294901760
    %5882 = vmatmul.mubr.f32.gmra.mrb[0].mxu0 %v5881
    %v5883 = vpop.f32.mrb[0].mxu0
    %v5884 = vadd.f32 %v5611, %v5883
    %v5885 = vpop.f32.mrb[0].mxu0
    %5886 = vmatprep.mubr.f32.mxu0 0.0
    %v5887 = vand.u32 %v4002, 4294901760
    %5888 = vmatmul.mubr.f32.gmra.mrb[0].mxu0 %v5887
    %v5889 = vpop.f32.mrb[0].mxu0
    %v5890 = vadd.f32 %v5617, %v5889
    %v5891 = vpop.f32.mrb[0].mxu0
    %5892 = vmatprep.mubr.f32.mxu0 0.0
    %v5893 = vand.u32 %v4003, 4294901760
    %5894 = vmatmul.mubr.f32.gmra.mrb[0].mxu0 %v5893
    %v5895 = vpop.f32.mrb[0].mxu0
    %v5896 = vadd.f32 %v5623, %v5895
    %v5897 = vpop.f32.mrb[0].mxu0
    %5898 = vmatprep.mubr.f32.mxu0 0.0
    %v5899 = vand.u32 %v4004, 4294901760
    %5900 = vmatmul.mubr.f32.gmra.mrb[0].mxu0 %v5899
    %v5901 = vpop.f32.mrb[0].mxu0
    %v5902 = vadd.f32 %v5629, %v5901
    %v5903 = vpop.f32.mrb[0].mxu0
    %5904 = vmatprep.mubr.f32.mxu0 0.0
    %v5905 = vand.u32 %v4005, 4294901760
    %5906 = vmatmul.mubr.f32.gmra.mrb[0].mxu0 %v5905
    %v5907 = vpop.f32.mrb[0].mxu0
    %v5908 = vadd.f32 %v5635, %v5907
    %v5909 = vpop.f32.mrb[0].mxu0
    %5910 = vmatprep.mubr.f32.mxu0 0.0
    %v5911 = vand.u32 %v4006, 4294901760
    %5912 = vmatmul.mubr.f32.gmra.mrb[0].mxu0 %v5911
    %v5913 = vpop.f32.mrb[0].mxu0
    %v5914 = vadd.f32 %v5641, %v5913
    %v5915 = vpop.f32.mrb[0].mxu0
    %5916 = vmatprep.mubr.f32.mxu0 0.0
    %v5917 = vand.u32 %v4007, 4294901760
    %5918 = vmatmul.mubr.f32.gmra.mrb[0].mxu0 %v5917
    %v5919 = vpop.f32.mrb[0].mxu0
    %v5920 = vadd.f32 %v5647, %v5919
    %v5921 = vpop.f32.mrb[0].mxu0
    %5922 = vmatprep.mubr.f32.mxu0 0.0
    %v5923 = vand.u32 %v4008, 4294901760
    %5924 = vmatmul.mubr.f32.gmra.mrb[0].mxu0 %v5923
    %v5925 = vpop.f32.mrb[0].mxu0
    %v5926 = vadd.f32 %v5653, %v5925
    %v5927 = vpop.f32.mrb[0].mxu0
    %5928 = vmatprep.mubr.f32.mxu0 0.0
    %v5929 = vand.u32 %v4009, 4294901760
    %5930 = vmatmul.mubr.f32.gmra.mrb[0].mxu0 %v5929
    %v5931 = vpop.f32.mrb[0].mxu0
    %v5932 = vadd.f32 %v5659, %v5931
    %v5933 = vpop.f32.mrb[0].mxu0
    %5934 = vmatprep.mubr.f32.mxu0 0.0
    %v5935 = vand.u32 %v4010, 4294901760
    %5936 = vmatmul.mubr.f32.gmra.mrb[0].mxu0 %v5935
    %v5937 = vpop.f32.mrb[0].mxu0
    %v5938 = vadd.f32 %v5665, %v5937
    %v5939 = vpop.f32.mrb[0].mxu0
    %5940 = vmatprep.mubr.f32.mxu0 0.0
    %v5941 = vand.u32 %v4011, 4294901760
    %5942 = vmatmul.mubr.f32.gmra.mrb[0].mxu0 %v5941
    %v5943 = vpop.f32.mrb[0].mxu0
    %v5944 = vadd.f32 %v5671, %v5943
    %v5945 = vpop.f32.mrb[0].mxu0
    %5946 = vmatprep.mubr.f32.mxu0 0.0
    %v5947 = vand.u32 %v4012, 4294901760
    %5948 = vmatmul.mubr.f32.gmra.mrb[0].mxu0 %v5947
    %v5949 = vpop.f32.mrb[0].mxu0
    %v5950 = vadd.f32 %v5677, %v5949
    %v5951 = vpop.f32.mrb[0].mxu0
    %5952 = vmatprep.mubr.f32.mxu0 0.0
    %v5953 = vand.u32 %v4013, 4294901760
    %5954 = vmatmul.mubr.f32.gmra.mrb[0].mxu0 %v5953
    %v5955 = vpop.f32.mrb[0].mxu0
    %v5956 = vadd.f32 %v5683, %v5955
    %v5957 = vpop.f32.mrb[0].mxu0
    %5958 = vmatprep.mubr.f32.mxu0 0.0
    %v5959 = vand.u32 %v4014, 4294901760
    %5960 = vmatmul.mubr.f32.gmra.mrb[0].mxu0 %v5959
    %v5961 = vpop.f32.mrb[0].mxu0
    %v5962 = vadd.f32 %v5689, %v5961
    %v5963 = vpop.f32.mrb[0].mxu0
    %5964 = vmatprep.mubr.f32.mxu0 0.0
    %v5965 = vand.u32 %v4015, 4294901760
    %5966 = vmatmul.mubr.f32.gmra.mrb[0].mxu0 %v5965
    %v5967 = vpop.f32.mrb[0].mxu0
    %v5968 = vadd.f32 %v5695, %v5967
    %v5969 = vpop.f32.mrb[0].mxu0
    %5970 = vmatprep.mubr.f32.mxu0 0.0
    %v5971 = vand.u32 %v4016, 4294901760
    %5972 = vmatmul.mubr.f32.gmra.mrb[0].mxu0 %v5971
    %v5973 = vpop.f32.mrb[0].mxu0
    %v5974 = vadd.f32 %v5701, %v5973
    %v5975 = vpop.f32.mrb[0].mxu0
    %5976 = vmatprep.mubr.f32.mxu0 0.0
    %v5977 = vand.u32 %v4017, 4294901760
    %5978 = vmatmul.mubr.f32.gmra.mrb[0].mxu0 %v5977
    %v5979 = vpop.f32.mrb[0].mxu0
    %v5980 = vadd.f32 %v5707, %v5979
    %v5981 = vpop.f32.mrb[0].mxu0
    %5982 = vmatprep.mubr.f32.mxu0 0.0
    %v5983 = vand.u32 %v4018, 4294901760
    %5984 = vmatmul.mubr.f32.gmra.mrb[0].mxu0 %v5983
    %v5985 = vpop.f32.mrb[0].mxu0
    %v5986 = vadd.f32 %v5713, %v5985
    %v5987 = vpop.f32.mrb[0].mxu0
    %5988 = vmatprep.mubr.f32.mxu0 0.0
    %v5989 = vand.u32 %v4019, 4294901760
    %5990 = vmatmul.mubr.f32.gmra.mrb[0].mxu0 %v5989
    %v5991 = vpop.f32.mrb[0].mxu0
    %v5992 = vadd.f32 %v5719, %v5991
    %v5993 = vpop.f32.mrb[0].mxu0
    %5994 = vmatprep.mubr.f32.mxu0 0.0
    %v5995 = vand.u32 %v4020, 4294901760
    %5996 = vmatmul.mubr.f32.gmra.mrb[0].mxu0 %v5995
    %v5997 = vpop.f32.mrb[0].mxu0
    %v5998 = vadd.f32 %v5725, %v5997
    %v5999 = vpop.f32.mrb[0].mxu0
    %6000 = vmatprep.mubr.f32.mxu0 0.0
    %v6001 = vand.u32 %v4021, 4294901760
    %6002 = vmatmul.mubr.f32.gmra.mrb[0].mxu0 %v6001
    %v6003 = vpop.f32.mrb[0].mxu0
    %v6004 = vadd.f32 %v5731, %v6003
    %v6005 = vpop.f32.mrb[0].mxu0
    %6006 = vmatprep.mubr.f32.mxu0 0.0
    %v6007 = vand.u32 %v4022, 4294901760
    %6008 = vmatmul.mubr.f32.gmra.mrb[0].mxu0 %v6007
    %v6009 = vpop.f32.mrb[0].mxu0
    %v6010 = vadd.f32 %v5737, %v6009
    %v6011 = vpop.f32.mrb[0].mxu0
    %6012 = vdwg.mxu0
    %v6013 = vmax.f32 %v5824, 0.0
    %v6014 = vmax.f32 %v5830, 0.0
    %v6015 = vmax.f32 %v5836, 0.0
    %v6016 = vmax.f32 %v5842, 0.0
    %v6017 = vmax.f32 %v5848, 0.0
    %v6018 = vmax.f32 %v5854, 0.0
    %v6019 = vmax.f32 %v5860, 0.0
    %v6020 = vmax.f32 %v5866, 0.0
    %v6021 = vmax.f32 %v5872, 0.0
    %v6022 = vmax.f32 %v5878, 0.0
    %v6023 = vmax.f32 %v5884, 0.0
    %v6024 = vmax.f32 %v5890, 0.0
    %v6025 = vmax.f32 %v5896, 0.0
    %v6026 = vmax.f32 %v5902, 0.0
    %v6027 = vmax.f32 %v5908, 0.0
    %v6028 = vmax.f32 %v5914, 0.0
    %v6029 = vmax.f32 %v5920, 0.0
    %v6030 = vmax.f32 %v5926, 0.0
    %v6031 = vmax.f32 %v5932, 0.0
    %v6032 = vmax.f32 %v5938, 0.0
    %v6033 = vmax.f32 %v5944, 0.0
    %v6034 = vmax.f32 %v5950, 0.0
    %v6035 = vmax.f32 %v5956, 0.0
    %v6036 = vmax.f32 %v5962, 0.0
    %v6037 = vmax.f32 %v5968, 0.0
    %v6038 = vmax.f32 %v5974, 0.0
    %v6039 = vmax.f32 %v5980, 0.0
    %v6040 = vmax.f32 %v5986, 0.0
    %v6041 = vmax.f32 %v5992, 0.0
    %v6042 = vmax.f32 %v5998, 0.0
    %v6043 = vmax.f32 %v6004, 0.0
    %v6044 = vmax.f32 %v6010, 0.0
    %6045 = vst [vmem:[#allocation2] sm:$0xff] %v6013
    %6046 = vst [vmem:[#allocation2 + $0x8] sm:$0xff] %v6014
    %6047 = vst [vmem:[#allocation2 + $0x10] sm:$0xff] %v6015
    %6048 = vst [vmem:[#allocation2 + $0x18] sm:$0xff] %v6016
    %6049 = vst [vmem:[#allocation2 + $0x20] sm:$0xff] %v6017
    %6050 = vst [vmem:[#allocation2 + $0x28] sm:$0xff] %v6018
    %6051 = vst [vmem:[#allocation2 + $0x30] sm:$0xff] %v6019
    %6052 = vst [vmem:[#allocation2 + $0x38] sm:$0xff] %v6020
    %6053 = vst [vmem:[#allocation2 + $0x40] sm:$0xff] %v6021
    %6054 = vst [vmem:[#allocation2 + $0x48] sm:$0xff] %v6022
    %6055 = vst [vmem:[#allocation2 + $0x50] sm:$0xff] %v6023
    %6056 = vst [vmem:[#allocation2 + $0x58] sm:$0xff] %v6024
    %6057 = vst [vmem:[#allocation2 + $0x60] sm:$0xff] %v6025
    %6058 = vst [vmem:[#allocation2 + $0x68] sm:$0xff] %v6026
    %6059 = vst [vmem:[#allocation2 + $0x70] sm:$0xff] %v6027
    %6060 = vst [vmem:[#allocation2 + $0x78] sm:$0xff] %v6028
    %6061 = vst [vmem:[#allocation2 + $0x80] sm:$0xff] %v6029
    %6062 = vst [vmem:[#allocation2 + $0x88] sm:$0xff] %v6030
    %6063 = vst [vmem:[#allocation2 + $0x90] sm:$0xff] %v6031
    %6064 = vst [vmem:[#allocation2 + $0x98] sm:$0xff] %v6032
    %6065 = vst [vmem:[#allocation2 + $0xa0] sm:$0xff] %v6033
    %6066 = vst [vmem:[#allocation2 + $0xa8] sm:$0xff] %v6034
    %6067 = vst [vmem:[#allocation2 + $0xb0] sm:$0xff] %v6035
    %6068 = vst [vmem:[#allocation2 + $0xb8] sm:$0xff] %v6036
    %6069 = vst [vmem:[#allocation2 + $0xc0] sm:$0xff] %v6037
    %6070 = vst [vmem:[#allocation2 + $0xc8] sm:$0xff] %v6038
    %6071 = vst [vmem:[#allocation2 + $0xd0] sm:$0xff] %v6039
    %6072 = vst [vmem:[#allocation2 + $0xd8] sm:$0xff] %v6040
    %6073 = vst [vmem:[#allocation2 + $0xe0] sm:$0xff] %v6041
    %6074 = vst [vmem:[#allocation2 + $0xe8] sm:$0xff] %v6042
    %6075 = vst [vmem:[#allocation2 + $0xf0] sm:$0xff] %v6043
    %6076 = vst [vmem:[#allocation2 + $0xf8] sm:$0xff] %v6044
    // Predicated region
    $region18: #{tpu_custom_call.1} parent=1 // pred_check
      _
    $region19: #{tpu_custom_call.1} parent=1 // pred_check_branch
      %6078 = sbr.rel (0) target = $region21
    $region20: #{tpu_custom_call.1} parent=1 // pred_region
      %s6080 = ssub.s32 4096, 4096
      %6081 = vsyncadd [#allocation3], %s6080
      %s6082 = sshll.u32 [#allocation2], 4
      %s6083 = int_to_ptr.vmem [resolvable:$true] %s6082
      %6088 = dma.vmem_to_hbm [thread:$0]  %s6083, 4096, %s4, [#allocation3], 128, 128, 8
    $region21: #{tpu_custom_call.1} parent=1 // pred_fallthru
      _
    // Predicated region
    $region22: #{tpu_custom_call.1} parent=1 // pred_check
      _
    $region23: #{tpu_custom_call.1} parent=1 // pred_check_branch
      %6090 = sbr.rel (0) target = $region25
    $region24: #{tpu_custom_call.1} parent=1 // pred_region
      %6091 = dma.done [#allocation3], 4096
    $region25: #{tpu_custom_call.1} parent=1 // pred_fallthru
      _
    %6092 = vsyncpa [#allocation3], 1

</llo_original>
